<compile_context>
chip_gen: v6e
topology: v6e:2x2x1
jax: 0.10.0
libtpu: 0.0.40
codegen_flags: <defaults>
</compile_context>

<pallas_src>
import numpy as np
import jax
import jax.numpy as jnp
from jax.experimental import pallas as pl
from jax.experimental.pallas import tpu as pltpu


# ------------------------------ Pallas kernel ------------------------------

def _lenet_kernel(x_ref, t1_ref, b1_ref, e1_ref, o1_ref, ce1_ref, co1_ref,
                  t2_ref, b2_ref, e2_ref, o2_ref, ce2_ref, co2_ref,
                  wf1_ref, bf1_ref, wf2_ref, bf2_ref, wf3_ref, bf3_ref,
                  out_ref):
    """Whole LeNet forward for a small batch; everything resident in VMEM."""
    n_batch = x_ref.shape[0]

    def mxu(a, b):
        # bf16 inputs on the MXU, f32 accumulation.  Epilogues (bias/ReLU) stay f32.
        return jnp.dot(a.astype(jnp.bfloat16), b.astype(jnp.bfloat16),
                       preferred_element_type=jnp.float32)

    def seldot(a, b):
        # 0/1 pooling-selection matrices: keep f32 so pooling adds no extra rounding.
        return jnp.dot(a, b, preferred_element_type=jnp.float32)

    fc_rows = []
    for n in range(n_batch):                       # tiny static batch -> fully unrolled
        xn = x_ref[n]                              # (32, 32) f32

        # ---- conv1 (1->6, 5x5 VALID) as 5 row-shifted Toeplitz matmuls ----
        # output lanes are (j, c1) pairs: (28, 28*6) = (28, 168)
        y = mxu(xn[0:28, :], t1_ref[0])
        for di in range(1, 5):
            y = y + mxu(xn[di:di + 28, :], t1_ref[di])
        y = jnp.maximum(y + b1_ref[...], 0.0)                                # (28, 168)

        # ---- fused 2x2/2 max-pool: row/col selection matmuls + max ----
        y = jnp.maximum(seldot(e1_ref[...], y), seldot(o1_ref[...], y))      # (14, 168)
        y = jnp.maximum(seldot(y, ce1_ref[...]), seldot(y, co1_ref[...]))    # (14, 84)

        # ---- conv2 (6->16, 5x5 VALID); lanes are (oj, c2): (10, 160) ----
        z = mxu(y[0:10, :], t2_ref[0])
        for di in range(1, 5):
            z = z + mxu(y[di:di + 10, :], t2_ref[di])
        z = jnp.maximum(z + b2_ref[...], 0.0)                                # (10, 160)

        z = jnp.maximum(seldot(e2_ref[...], z), seldot(o2_ref[...], z))      # (5, 160)
        z = jnp.maximum(seldot(z, ce2_ref[...]), seldot(z, co2_ref[...]))    # (5, 80)

        # ---- fc1: NCHW flatten order is folded into wf1 (5, 80, 120) ----
        h = mxu(z[0:1, :], wf1_ref[0])
        for oi in range(1, 5):
            h = h + mxu(z[oi:oi + 1, :], wf1_ref[oi])
        fc_rows.append(h)                                                    # (1, 120)

    h = jnp.concatenate(fc_rows, axis=0)                                     # (N, 120)
    h = jnp.maximum(h + bf1_ref[...], 0.0)                                   # fc1 + ReLU
    h = jnp.maximum(mxu(h, wf2_ref[...]) + bf2_ref[...], 0.0)                # fc2 + ReLU
    # fc3, padded to 128 output lanes -> single lane-dense HBM store
    out_ref[...] = mxu(h, wf3_ref[...]) + bf3_ref[...]                       # (N, 128)


# --------------------------- one-time weight prep ---------------------------

def prepare_params(p):
    """Pre-transform PyTorch-layout weights ONCE (outside the hot path):
    Toeplitz conv matrices, tiled biases, pool selection matrices, flatten-order
    permutation folded into fc1, fc3 padded to 128 lanes."""
    w1 = np.asarray(p["conv1_w"], np.float32)    # (6, 1, 5, 5)
    b1 = np.asarray(p["conv1_b"], np.float32)
    w2 = np.asarray(p["conv2_w"], np.float32)    # (16, 6, 5, 5)
    b2 = np.asarray(p["conv2_b"], np.float32)
    fw1 = np.asarray(p["fc1_w"], np.float32)     # (120, 400)
    fb1 = np.asarray(p["fc1_b"], np.float32)
    fw2 = np.asarray(p["fc2_w"], np.float32)     # (84, 120)
    fb2 = np.asarray(p["fc2_b"], np.float32)
    fw3 = np.asarray(p["fc3_w"], np.float32)     # (10, 84)
    fb3 = np.asarray(p["fc3_b"], np.float32)

    K = 5
    C1, C2 = 6, 16
    W1o, H1p, W1p = 28, 14, 14
    W2o, H2o, H2p, W2p = 10, 10, 5, 5

    # conv1 Toeplitz: t1[di, p, j*C1+co] = w1[co, 0, di, p-j]
    t1 = np.zeros((K, 32, W1o * C1), np.float32)
    for di in range(K):
        for j in range(W1o):
            for dj in range(K):
                for co in range(C1):
                    t1[di, j + dj, j * C1 + co] = w1[co, 0, di, dj]
    b1t = np.tile(b1, W1o)[None, :]                                  # (1, 168)

    # pool1 selectors (rows / columns)
    e1 = np.zeros((H1p, 28), np.float32)
    o1 = np.zeros((H1p, 28), np.float32)
    for k in range(H1p):
        e1[k, 2 * k] = 1.0
        o1[k, 2 * k + 1] = 1.0
    ce1 = np.zeros((W1o * C1, W1p * C1), np.float32)
    co1 = np.zeros((W1o * C1, W1p * C1), np.float32)
    for k in range(W1p):
        for c in range(C1):
            ce1[(2 * k) * C1 + c, k * C1 + c] = 1.0
            co1[(2 * k + 1) * C1 + c, k * C1 + c] = 1.0

    # conv2 Toeplitz: t2[di, (oj+dj)*C1+cin, oj*C2+c2] = w2[c2, cin, di, dj]
    t2 = np.zeros((K, W1p * C1, W2o * C2), np.float32)
    for di in range(K):
        for oj in range(W2o):
            for dj in range(K):
                for cin in range(C1):
                    for c2 in range(C2):
                        t2[di, (oj + dj) * C1 + cin, oj * C2 + c2] = w2[c2, cin, di, dj]
    b2t = np.tile(b2, W2o)[None, :]                                  # (1, 160)

    e2 = np.zeros((H2p, H2o), np.float32)
    o2 = np.zeros((H2p, H2o), np.float32)
    for k in range(H2p):
        e2[k, 2 * k] = 1.0
        o2[k, 2 * k + 1] = 1.0
    ce2 = np.zeros((W2o * C2, W2p * C2), np.float32)
    co2 = np.zeros((W2o * C2, W2p * C2), np.float32)
    for k in range(W2p):
        for c in range(C2):
            ce2[(2 * k) * C2 + c, k * C2 + c] = 1.0
            co2[(2 * k + 1) * C2 + c, k * C2 + c] = 1.0

    # fc1 with PyTorch NCHW flatten (f = c2*25 + oi*5 + oj) folded in: (5, 80, 120)
    wf1 = np.zeros((H2p, W2p * C2, 120), np.float32)
    for oi in range(H2p):
        for oj in range(W2p):
            for c2 in range(C2):
                f = c2 * (H2p * W2p) + oi * W2p + oj
                wf1[oi, oj * C2 + c2, :] = fw1[:, f]
    bf1 = fb1[None, :]

    wf2 = fw2.T                                                      # (120, 84)
    bf2 = fb2[None, :]

    wf3 = np.zeros((84, 128), np.float32)                            # pad 10 -> 128 lanes
    wf3[:, :10] = fw3.T
    bf3 = np.zeros((1, 128), np.float32)
    bf3[0, :10] = fb3

    bf = lambda a: jnp.asarray(a, jnp.bfloat16)   # matmul weights -> bf16 (f32 accum)
    f32 = lambda a: jnp.asarray(a, jnp.float32)
    return dict(
        t1=bf(t1), b1t=f32(b1t), e1=f32(e1), o1=f32(o1), ce1=f32(ce1), co1=f32(co1),
        t2=bf(t2), b2t=f32(b2t), e2=f32(e2), o2=f32(o2), ce2=f32(ce2), co2=f32(co2),
        wf1=bf(wf1), bf1=f32(bf1), wf2=bf(wf2), bf2=f32(bf2), wf3=bf(wf3), bf3=f32(bf3),
    )


# --------------------------------- wrapper ----------------------------------

def _lenet_forward(x_nchw, prep):
    n = x_nchw.shape[0]
    x3 = x_nchw[:, 0, :, :].astype(jnp.float32)                      # (N, 32, 32)
    args = (x3,
            prep["t1"], prep["b1t"], prep["e1"], prep["o1"], prep["ce1"], prep["co1"],
            prep["t2"], prep["b2t"], prep["e2"], prep["o2"], prep["ce2"], prep["co2"],
            prep["wf1"], prep["bf1"], prep["wf2"], prep["bf2"], prep["wf3"], prep["bf3"])
    out = pl.pallas_call(
        _lenet_kernel,
        out_shape=jax.ShapeDtypeStruct((n, 128), jnp.float32),
        in_specs=[pl.BlockSpec(memory_space=pltpu.MemorySpace.VMEM)] * len(args),
        out_specs=pl.BlockSpec(memory_space=pltpu.MemorySpace.VMEM),
    )(*args)
    return out[:, :10]


net_forward = jax.jit(_lenet_forward)


# ------------------------------ init / reference ----------------------------

def init_params(key):
    ks = jax.random.split(key, 10)

    def t(k, shape, scale):
        return jax.random.normal(k, shape, jnp.float32) * scale

    return {
        "conv1_w": t(ks[0], (6, 1, 5, 5), 0.2),
        "conv1_b": t(ks[1], (6,), 0.1),
        "conv2_w": t(ks[2], (16, 6, 5, 5), 0.1),
        "conv2_b": t(ks[3], (16,), 0.1),
        "fc1_w":  t(ks[4], (120, 400), 0.05),
        "fc1_b":  t(ks[5], (120,), 0.05),
        "fc2_w":  t(ks[6], (84, 120), 0.05),
        "fc2_b":  t(ks[7], (84,), 0.05),
        "fc3_w":  t(ks[8], (10, 84), 0.05),
        "fc3_b":  t(ks[9], (10,), 0.05),
    }


def net_forward_ref(x_nchw, p):
    """Pure-JAX f32 reference (same math, no Pallas)."""
    def conv(x_nhwc, w, b):
        out = jax.lax.conv_general_dilated(
            x_nhwc, jnp.transpose(w, (2, 3, 1, 0)),
            window_strides=(1, 1), padding="VALID",
            dimension_numbers=("NHWC", "HWIO", "NHWC"))
        return out + b

    def pool(x):
        N, H, W, C = x.shape
        return jnp.max(x.reshape(N, H // 2, 2, W // 2, 2, C), axis=(2, 4))

    x = jnp.transpose(x_nchw, (0, 2, 3, 1))
    y = pool(jax.nn.relu(conv(x, p["conv1_w"], p["conv1_b"])))
    y = pool(jax.nn.relu(conv(y, p["conv2_w"], p["conv2_b"])))
    N = y.shape[0]
    y = jnp.transpose(y, (0, 3, 1, 2)).reshape(N, -1)
    y = jax.nn.relu(y @ p["fc1_w"].T + p["fc1_b"])
    y = jax.nn.relu(y @ p["fc2_w"].T + p["fc2_b"])
    return y @ p["fc3_w"].T + p["fc3_b"]


if __name__ == "__main__":
    key = jax.random.PRNGKey(0)
    k_param, k_x = jax.random.split(key)
    params = init_params(k_param)
    prep = prepare_params(params)                      # one-time weight prep
    x = jax.random.normal(k_x, (2, 1, 32, 32), jnp.float32)   # NCHW LeNet input

    out = jax.block_until_ready(net_forward(x, prep))
    ref = jax.block_until_ready(net_forward_ref(x, params))

    # bf16 MXU inputs (f32 accumulation) -> loosened tolerance vs. the f32 reference.
    np.testing.assert_allclose(np.asarray(out), np.asarray(ref), rtol=5e-2, atol=5e-2)
    assert out.shape == (2, 10)
    print("KERNEL_OK")
</pallas_src>

<mosaic_0001>
module attributes {stable_mosaic.version = 11 : i64} {
  func.func @_lenet_kernel(%arg0: memref<2x32x32xf32, #tpu.memory_space<vmem>>, %arg1: memref<5x32x168xbf16, #tpu.memory_space<vmem>>, %arg2: memref<1x168xf32, #tpu.memory_space<vmem>>, %arg3: memref<14x28xf32, #tpu.memory_space<vmem>>, %arg4: memref<14x28xf32, #tpu.memory_space<vmem>>, %arg5: memref<168x84xf32, #tpu.memory_space<vmem>>, %arg6: memref<168x84xf32, #tpu.memory_space<vmem>>, %arg7: memref<5x84x160xbf16, #tpu.memory_space<vmem>>, %arg8: memref<1x160xf32, #tpu.memory_space<vmem>>, %arg9: memref<5x10xf32, #tpu.memory_space<vmem>>, %arg10: memref<5x10xf32, #tpu.memory_space<vmem>>, %arg11: memref<160x80xf32, #tpu.memory_space<vmem>>, %arg12: memref<160x80xf32, #tpu.memory_space<vmem>>, %arg13: memref<5x80x120xbf16, #tpu.memory_space<vmem>>, %arg14: memref<1x120xf32, #tpu.memory_space<vmem>>, %arg15: memref<120x84xbf16, #tpu.memory_space<vmem>>, %arg16: memref<1x84xf32, #tpu.memory_space<vmem>>, %arg17: memref<84x128xbf16, #tpu.memory_space<vmem>>, %arg18: memref<1x128xf32, #tpu.memory_space<vmem>>, %arg19: memref<2x128xf32, #tpu.memory_space<vmem>>) attributes {dimension_semantics = [], scalar_prefetch = 0 : i64, scratch_operands = 0 : i64, tpu.core_type = #tpu.core_type<tc>} {
    %c0 = arith.constant 0 : index
    %c0_0 = arith.constant 0 : index
    %c0_1 = arith.constant 0 : index
    %0 = vector.load %arg0[%c0, %c0_0, %c0_1] : memref<2x32x32xf32, #tpu.memory_space<vmem>>, vector<1x32x32xf32>
    %1 = vector.shape_cast %0 : vector<1x32x32xf32> to vector<32x32xf32>
    %2 = vector.extract_strided_slice %1 {offsets = [0, 0], sizes = [28, 32], strides = [1, 1]} : vector<32x32xf32> to vector<28x32xf32>
    %c0_2 = arith.constant 0 : index
    %c0_3 = arith.constant 0 : index
    %c0_4 = arith.constant 0 : index
    %3 = vector.load %arg1[%c0_2, %c0_3, %c0_4] : memref<5x32x168xbf16, #tpu.memory_space<vmem>>, vector<1x32x168xbf16>
    %4 = vector.shape_cast %3 : vector<1x32x168xbf16> to vector<32x168xbf16>
    %5 = arith.truncf %2 : vector<28x32xf32> to vector<28x32xbf16>
    %cst = arith.constant dense<0.000000e+00> : vector<28x168xf32>
    %6 = tpu.matmul %5, %4, %cst {dimension_numbers = #tpu.dot_dimension_numbers<[1], [0], [0], [1], [0, 0, 1, 1], [], []>} : vector<28x32xbf16>, vector<32x168xbf16>, vector<28x168xf32> -> vector<28x168xf32>
    %7 = vector.extract_strided_slice %1 {offsets = [1, 0], sizes = [28, 32], strides = [1, 1]} : vector<32x32xf32> to vector<28x32xf32>
    %c1 = arith.constant 1 : index
    %c0_5 = arith.constant 0 : index
    %c0_6 = arith.constant 0 : index
    %8 = vector.load %arg1[%c1, %c0_5, %c0_6] : memref<5x32x168xbf16, #tpu.memory_space<vmem>>, vector<1x32x168xbf16>
    %9 = vector.shape_cast %8 : vector<1x32x168xbf16> to vector<32x168xbf16>
    %10 = arith.truncf %7 : vector<28x32xf32> to vector<28x32xbf16>
    %cst_7 = arith.constant dense<0.000000e+00> : vector<28x168xf32>
    %11 = tpu.matmul %10, %9, %cst_7 {dimension_numbers = #tpu.dot_dimension_numbers<[1], [0], [0], [1], [0, 0, 1, 1], [], []>} : vector<28x32xbf16>, vector<32x168xbf16>, vector<28x168xf32> -> vector<28x168xf32>
    %12 = arith.addf %6, %11 : vector<28x168xf32>
    %13 = vector.extract_strided_slice %1 {offsets = [2, 0], sizes = [28, 32], strides = [1, 1]} : vector<32x32xf32> to vector<28x32xf32>
    %c2 = arith.constant 2 : index
    %c0_8 = arith.constant 0 : index
    %c0_9 = arith.constant 0 : index
    %14 = vector.load %arg1[%c2, %c0_8, %c0_9] : memref<5x32x168xbf16, #tpu.memory_space<vmem>>, vector<1x32x168xbf16>
    %15 = vector.shape_cast %14 : vector<1x32x168xbf16> to vector<32x168xbf16>
    %16 = arith.truncf %13 : vector<28x32xf32> to vector<28x32xbf16>
    %cst_10 = arith.constant dense<0.000000e+00> : vector<28x168xf32>
    %17 = tpu.matmul %16, %15, %cst_10 {dimension_numbers = #tpu.dot_dimension_numbers<[1], [0], [0], [1], [0, 0, 1, 1], [], []>} : vector<28x32xbf16>, vector<32x168xbf16>, vector<28x168xf32> -> vector<28x168xf32>
    %18 = arith.addf %12, %17 : vector<28x168xf32>
    %19 = vector.extract_strided_slice %1 {offsets = [3, 0], sizes = [28, 32], strides = [1, 1]} : vector<32x32xf32> to vector<28x32xf32>
    %c3 = arith.constant 3 : index
    %c0_11 = arith.constant 0 : index
    %c0_12 = arith.constant 0 : index
    %20 = vector.load %arg1[%c3, %c0_11, %c0_12] : memref<5x32x168xbf16, #tpu.memory_space<vmem>>, vector<1x32x168xbf16>
    %21 = vector.shape_cast %20 : vector<1x32x168xbf16> to vector<32x168xbf16>
    %22 = arith.truncf %19 : vector<28x32xf32> to vector<28x32xbf16>
    %cst_13 = arith.constant dense<0.000000e+00> : vector<28x168xf32>
    %23 = tpu.matmul %22, %21, %cst_13 {dimension_numbers = #tpu.dot_dimension_numbers<[1], [0], [0], [1], [0, 0, 1, 1], [], []>} : vector<28x32xbf16>, vector<32x168xbf16>, vector<28x168xf32> -> vector<28x168xf32>
    %24 = arith.addf %18, %23 : vector<28x168xf32>
    %25 = vector.extract_strided_slice %1 {offsets = [4, 0], sizes = [28, 32], strides = [1, 1]} : vector<32x32xf32> to vector<28x32xf32>
    %c4 = arith.constant 4 : index
    %c0_14 = arith.constant 0 : index
    %c0_15 = arith.constant 0 : index
    %26 = vector.load %arg1[%c4, %c0_14, %c0_15] : memref<5x32x168xbf16, #tpu.memory_space<vmem>>, vector<1x32x168xbf16>
    %27 = vector.shape_cast %26 : vector<1x32x168xbf16> to vector<32x168xbf16>
    %28 = arith.truncf %25 : vector<28x32xf32> to vector<28x32xbf16>
    %cst_16 = arith.constant dense<0.000000e+00> : vector<28x168xf32>
    %29 = tpu.matmul %28, %27, %cst_16 {dimension_numbers = #tpu.dot_dimension_numbers<[1], [0], [0], [1], [0, 0, 1, 1], [], []>} : vector<28x32xbf16>, vector<32x168xbf16>, vector<28x168xf32> -> vector<28x168xf32>
    %30 = arith.addf %24, %29 : vector<28x168xf32>
    %c0_17 = arith.constant 0 : index
    %c0_18 = arith.constant 0 : index
    %31 = vector.load %arg2[%c0_17, %c0_18] : memref<1x168xf32, #tpu.memory_space<vmem>>, vector<1x168xf32>
    %32 = vector.broadcast %31 : vector<1x168xf32> to vector<28x168xf32>
    %33 = arith.addf %30, %32 : vector<28x168xf32>
    %cst_19 = arith.constant 0.000000e+00 : f32
    %34 = vector.broadcast %cst_19 : f32 to vector<28x168xf32>
    %35 = arith.maximumf %33, %34 : vector<28x168xf32>
    %c0_20 = arith.constant 0 : index
    %c0_21 = arith.constant 0 : index
    %36 = vector.load %arg3[%c0_20, %c0_21] : memref<14x28xf32, #tpu.memory_space<vmem>>, vector<14x28xf32>
    %cst_22 = arith.constant dense<0.000000e+00> : vector<14x168xf32>
    %37 = tpu.matmul %36, %35, %cst_22 {dimension_numbers = #tpu.dot_dimension_numbers<[1], [0], [0], [1], [0, 0, 1, 1], [], []>} : vector<14x28xf32>, vector<28x168xf32>, vector<14x168xf32> -> vector<14x168xf32>
    %c0_23 = arith.constant 0 : index
    %c0_24 = arith.constant 0 : index
    %38 = vector.load %arg4[%c0_23, %c0_24] : memref<14x28xf32, #tpu.memory_space<vmem>>, vector<14x28xf32>
    %cst_25 = arith.constant dense<0.000000e+00> : vector<14x168xf32>
    %39 = tpu.matmul %38, %35, %cst_25 {dimension_numbers = #tpu.dot_dimension_numbers<[1], [0], [0], [1], [0, 0, 1, 1], [], []>} : vector<14x28xf32>, vector<28x168xf32>, vector<14x168xf32> -> vector<14x168xf32>
    %40 = arith.maximumf %37, %39 : vector<14x168xf32>
    %c0_26 = arith.constant 0 : index
    %c0_27 = arith.constant 0 : index
    %41 = vector.load %arg5[%c0_26, %c0_27] : memref<168x84xf32, #tpu.memory_space<vmem>>, vector<168x84xf32>
    %cst_28 = arith.constant dense<0.000000e+00> : vector<14x84xf32>
    %42 = tpu.matmul %40, %41, %cst_28 {dimension_numbers = #tpu.dot_dimension_numbers<[1], [0], [0], [1], [0, 0, 1, 1], [], []>} : vector<14x168xf32>, vector<168x84xf32>, vector<14x84xf32> -> vector<14x84xf32>
    %c0_29 = arith.constant 0 : index
    %c0_30 = arith.constant 0 : index
    %43 = vector.load %arg6[%c0_29, %c0_30] : memref<168x84xf32, #tpu.memory_space<vmem>>, vector<168x84xf32>
    %cst_31 = arith.constant dense<0.000000e+00> : vector<14x84xf32>
    %44 = tpu.matmul %40, %43, %cst_31 {dimension_numbers = #tpu.dot_dimension_numbers<[1], [0], [0], [1], [0, 0, 1, 1], [], []>} : vector<14x168xf32>, vector<168x84xf32>, vector<14x84xf32> -> vector<14x84xf32>
    %45 = arith.maximumf %42, %44 : vector<14x84xf32>
    %46 = vector.extract_strided_slice %45 {offsets = [0, 0], sizes = [10, 84], strides = [1, 1]} : vector<14x84xf32> to vector<10x84xf32>
    %c0_32 = arith.constant 0 : index
    %c0_33 = arith.constant 0 : index
    %c0_34 = arith.constant 0 : index
    %47 = vector.load %arg7[%c0_32, %c0_33, %c0_34] : memref<5x84x160xbf16, #tpu.memory_space<vmem>>, vector<1x84x160xbf16>
    %48 = vector.shape_cast %47 : vector<1x84x160xbf16> to vector<84x160xbf16>
    %49 = arith.truncf %46 : vector<10x84xf32> to vector<10x84xbf16>
    %cst_35 = arith.constant dense<0.000000e+00> : vector<10x160xf32>
    %50 = tpu.matmul %49, %48, %cst_35 {dimension_numbers = #tpu.dot_dimension_numbers<[1], [0], [0], [1], [0, 0, 1, 1], [], []>} : vector<10x84xbf16>, vector<84x160xbf16>, vector<10x160xf32> -> vector<10x160xf32>
    %51 = vector.extract_strided_slice %45 {offsets = [1, 0], sizes = [10, 84], strides = [1, 1]} : vector<14x84xf32> to vector<10x84xf32>
    %c1_36 = arith.constant 1 : index
    %c0_37 = arith.constant 0 : index
    %c0_38 = arith.constant 0 : index
    %52 = vector.load %arg7[%c1_36, %c0_37, %c0_38] : memref<5x84x160xbf16, #tpu.memory_space<vmem>>, vector<1x84x160xbf16>
    %53 = vector.shape_cast %52 : vector<1x84x160xbf16> to vector<84x160xbf16>
    %54 = arith.truncf %51 : vector<10x84xf32> to vector<10x84xbf16>
    %cst_39 = arith.constant dense<0.000000e+00> : vector<10x160xf32>
    %55 = tpu.matmul %54, %53, %cst_39 {dimension_numbers = #tpu.dot_dimension_numbers<[1], [0], [0], [1], [0, 0, 1, 1], [], []>} : vector<10x84xbf16>, vector<84x160xbf16>, vector<10x160xf32> -> vector<10x160xf32>
    %56 = arith.addf %50, %55 : vector<10x160xf32>
    %57 = vector.extract_strided_slice %45 {offsets = [2, 0], sizes = [10, 84], strides = [1, 1]} : vector<14x84xf32> to vector<10x84xf32>
    %c2_40 = arith.constant 2 : index
    %c0_41 = arith.constant 0 : index
    %c0_42 = arith.constant 0 : index
    %58 = vector.load %arg7[%c2_40, %c0_41, %c0_42] : memref<5x84x160xbf16, #tpu.memory_space<vmem>>, vector<1x84x160xbf16>
    %59 = vector.shape_cast %58 : vector<1x84x160xbf16> to vector<84x160xbf16>
    %60 = arith.truncf %57 : vector<10x84xf32> to vector<10x84xbf16>
    %cst_43 = arith.constant dense<0.000000e+00> : vector<10x160xf32>
    %61 = tpu.matmul %60, %59, %cst_43 {dimension_numbers = #tpu.dot_dimension_numbers<[1], [0], [0], [1], [0, 0, 1, 1], [], []>} : vector<10x84xbf16>, vector<84x160xbf16>, vector<10x160xf32> -> vector<10x160xf32>
    %62 = arith.addf %56, %61 : vector<10x160xf32>
    %63 = vector.extract_strided_slice %45 {offsets = [3, 0], sizes = [10, 84], strides = [1, 1]} : vector<14x84xf32> to vector<10x84xf32>
    %c3_44 = arith.constant 3 : index
    %c0_45 = arith.constant 0 : index
    %c0_46 = arith.constant 0 : index
    %64 = vector.load %arg7[%c3_44, %c0_45, %c0_46] : memref<5x84x160xbf16, #tpu.memory_space<vmem>>, vector<1x84x160xbf16>
    %65 = vector.shape_cast %64 : vector<1x84x160xbf16> to vector<84x160xbf16>
    %66 = arith.truncf %63 : vector<10x84xf32> to vector<10x84xbf16>
    %cst_47 = arith.constant dense<0.000000e+00> : vector<10x160xf32>
    %67 = tpu.matmul %66, %65, %cst_47 {dimension_numbers = #tpu.dot_dimension_numbers<[1], [0], [0], [1], [0, 0, 1, 1], [], []>} : vector<10x84xbf16>, vector<84x160xbf16>, vector<10x160xf32> -> vector<10x160xf32>
    %68 = arith.addf %62, %67 : vector<10x160xf32>
    %69 = vector.extract_strided_slice %45 {offsets = [4, 0], sizes = [10, 84], strides = [1, 1]} : vector<14x84xf32> to vector<10x84xf32>
    %c4_48 = arith.constant 4 : index
    %c0_49 = arith.constant 0 : index
    %c0_50 = arith.constant 0 : index
    %70 = vector.load %arg7[%c4_48, %c0_49, %c0_50] : memref<5x84x160xbf16, #tpu.memory_space<vmem>>, vector<1x84x160xbf16>
    %71 = vector.shape_cast %70 : vector<1x84x160xbf16> to vector<84x160xbf16>
    %72 = arith.truncf %69 : vector<10x84xf32> to vector<10x84xbf16>
    %cst_51 = arith.constant dense<0.000000e+00> : vector<10x160xf32>
    %73 = tpu.matmul %72, %71, %cst_51 {dimension_numbers = #tpu.dot_dimension_numbers<[1], [0], [0], [1], [0, 0, 1, 1], [], []>} : vector<10x84xbf16>, vector<84x160xbf16>, vector<10x160xf32> -> vector<10x160xf32>
    %74 = arith.addf %68, %73 : vector<10x160xf32>
    %c0_52 = arith.constant 0 : index
    %c0_53 = arith.constant 0 : index
    %75 = vector.load %arg8[%c0_52, %c0_53] : memref<1x160xf32, #tpu.memory_space<vmem>>, vector<1x160xf32>
    %76 = vector.broadcast %75 : vector<1x160xf32> to vector<10x160xf32>
    %77 = arith.addf %74, %76 : vector<10x160xf32>
    %cst_54 = arith.constant 0.000000e+00 : f32
    %78 = vector.broadcast %cst_54 : f32 to vector<10x160xf32>
    %79 = arith.maximumf %77, %78 : vector<10x160xf32>
    %c0_55 = arith.constant 0 : index
    %c0_56 = arith.constant 0 : index
    %80 = vector.load %arg9[%c0_55, %c0_56] : memref<5x10xf32, #tpu.memory_space<vmem>>, vector<5x10xf32>
    %cst_57 = arith.constant dense<0.000000e+00> : vector<5x160xf32>
    %81 = tpu.matmul %80, %79, %cst_57 {dimension_numbers = #tpu.dot_dimension_numbers<[1], [0], [0], [1], [0, 0, 1, 1], [], []>} : vector<5x10xf32>, vector<10x160xf32>, vector<5x160xf32> -> vector<5x160xf32>
    %c0_58 = arith.constant 0 : index
    %c0_59 = arith.constant 0 : index
    %82 = vector.load %arg10[%c0_58, %c0_59] : memref<5x10xf32, #tpu.memory_space<vmem>>, vector<5x10xf32>
    %cst_60 = arith.constant dense<0.000000e+00> : vector<5x160xf32>
    %83 = tpu.matmul %82, %79, %cst_60 {dimension_numbers = #tpu.dot_dimension_numbers<[1], [0], [0], [1], [0, 0, 1, 1], [], []>} : vector<5x10xf32>, vector<10x160xf32>, vector<5x160xf32> -> vector<5x160xf32>
    %84 = arith.maximumf %81, %83 : vector<5x160xf32>
    %c0_61 = arith.constant 0 : index
    %c0_62 = arith.constant 0 : index
    %85 = vector.load %arg11[%c0_61, %c0_62] : memref<160x80xf32, #tpu.memory_space<vmem>>, vector<160x80xf32>
    %cst_63 = arith.constant dense<0.000000e+00> : vector<5x80xf32>
    %86 = tpu.matmul %84, %85, %cst_63 {dimension_numbers = #tpu.dot_dimension_numbers<[1], [0], [0], [1], [0, 0, 1, 1], [], []>} : vector<5x160xf32>, vector<160x80xf32>, vector<5x80xf32> -> vector<5x80xf32>
    %c0_64 = arith.constant 0 : index
    %c0_65 = arith.constant 0 : index
    %87 = vector.load %arg12[%c0_64, %c0_65] : memref<160x80xf32, #tpu.memory_space<vmem>>, vector<160x80xf32>
    %cst_66 = arith.constant dense<0.000000e+00> : vector<5x80xf32>
    %88 = tpu.matmul %84, %87, %cst_66 {dimension_numbers = #tpu.dot_dimension_numbers<[1], [0], [0], [1], [0, 0, 1, 1], [], []>} : vector<5x160xf32>, vector<160x80xf32>, vector<5x80xf32> -> vector<5x80xf32>
    %89 = arith.maximumf %86, %88 : vector<5x80xf32>
    %90 = vector.extract_strided_slice %89 {offsets = [0, 0], sizes = [1, 80], strides = [1, 1]} : vector<5x80xf32> to vector<1x80xf32>
    %c0_67 = arith.constant 0 : index
    %c0_68 = arith.constant 0 : index
    %c0_69 = arith.constant 0 : index
    %91 = vector.load %arg13[%c0_67, %c0_68, %c0_69] : memref<5x80x120xbf16, #tpu.memory_space<vmem>>, vector<1x80x120xbf16>
    %92 = vector.shape_cast %91 : vector<1x80x120xbf16> to vector<80x120xbf16>
    %93 = arith.truncf %90 : vector<1x80xf32> to vector<1x80xbf16>
    %cst_70 = arith.constant dense<0.000000e+00> : vector<1x120xf32>
    %94 = tpu.matmul %93, %92, %cst_70 {dimension_numbers = #tpu.dot_dimension_numbers<[1], [0], [0], [1], [0, 0, 1, 1], [], []>} : vector<1x80xbf16>, vector<80x120xbf16>, vector<1x120xf32> -> vector<1x120xf32>
    %95 = vector.extract_strided_slice %89 {offsets = [1, 0], sizes = [1, 80], strides = [1, 1]} : vector<5x80xf32> to vector<1x80xf32>
    %c1_71 = arith.constant 1 : index
    %c0_72 = arith.constant 0 : index
    %c0_73 = arith.constant 0 : index
    %96 = vector.load %arg13[%c1_71, %c0_72, %c0_73] : memref<5x80x120xbf16, #tpu.memory_space<vmem>>, vector<1x80x120xbf16>
    %97 = vector.shape_cast %96 : vector<1x80x120xbf16> to vector<80x120xbf16>
    %98 = arith.truncf %95 : vector<1x80xf32> to vector<1x80xbf16>
    %cst_74 = arith.constant dense<0.000000e+00> : vector<1x120xf32>
    %99 = tpu.matmul %98, %97, %cst_74 {dimension_numbers = #tpu.dot_dimension_numbers<[1], [0], [0], [1], [0, 0, 1, 1], [], []>} : vector<1x80xbf16>, vector<80x120xbf16>, vector<1x120xf32> -> vector<1x120xf32>
    %100 = arith.addf %94, %99 : vector<1x120xf32>
    %101 = vector.extract_strided_slice %89 {offsets = [2, 0], sizes = [1, 80], strides = [1, 1]} : vector<5x80xf32> to vector<1x80xf32>
    %c2_75 = arith.constant 2 : index
    %c0_76 = arith.constant 0 : index
    %c0_77 = arith.constant 0 : index
    %102 = vector.load %arg13[%c2_75, %c0_76, %c0_77] : memref<5x80x120xbf16, #tpu.memory_space<vmem>>, vector<1x80x120xbf16>
    %103 = vector.shape_cast %102 : vector<1x80x120xbf16> to vector<80x120xbf16>
    %104 = arith.truncf %101 : vector<1x80xf32> to vector<1x80xbf16>
    %cst_78 = arith.constant dense<0.000000e+00> : vector<1x120xf32>
    %105 = tpu.matmul %104, %103, %cst_78 {dimension_numbers = #tpu.dot_dimension_numbers<[1], [0], [0], [1], [0, 0, 1, 1], [], []>} : vector<1x80xbf16>, vector<80x120xbf16>, vector<1x120xf32> -> vector<1x120xf32>
    %106 = arith.addf %100, %105 : vector<1x120xf32>
    %107 = vector.extract_strided_slice %89 {offsets = [3, 0], sizes = [1, 80], strides = [1, 1]} : vector<5x80xf32> to vector<1x80xf32>
    %c3_79 = arith.constant 3 : index
    %c0_80 = arith.constant 0 : index
    %c0_81 = arith.constant 0 : index
    %108 = vector.load %arg13[%c3_79, %c0_80, %c0_81] : memref<5x80x120xbf16, #tpu.memory_space<vmem>>, vector<1x80x120xbf16>
    %109 = vector.shape_cast %108 : vector<1x80x120xbf16> to vector<80x120xbf16>
    %110 = arith.truncf %107 : vector<1x80xf32> to vector<1x80xbf16>
    %cst_82 = arith.constant dense<0.000000e+00> : vector<1x120xf32>
    %111 = tpu.matmul %110, %109, %cst_82 {dimension_numbers = #tpu.dot_dimension_numbers<[1], [0], [0], [1], [0, 0, 1, 1], [], []>} : vector<1x80xbf16>, vector<80x120xbf16>, vector<1x120xf32> -> vector<1x120xf32>
    %112 = arith.addf %106, %111 : vector<1x120xf32>
    %113 = vector.extract_strided_slice %89 {offsets = [4, 0], sizes = [1, 80], strides = [1, 1]} : vector<5x80xf32> to vector<1x80xf32>
    %c4_83 = arith.constant 4 : index
    %c0_84 = arith.constant 0 : index
    %c0_85 = arith.constant 0 : index
    %114 = vector.load %arg13[%c4_83, %c0_84, %c0_85] : memref<5x80x120xbf16, #tpu.memory_space<vmem>>, vector<1x80x120xbf16>
    %115 = vector.shape_cast %114 : vector<1x80x120xbf16> to vector<80x120xbf16>
    %116 = arith.truncf %113 : vector<1x80xf32> to vector<1x80xbf16>
    %cst_86 = arith.constant dense<0.000000e+00> : vector<1x120xf32>
    %117 = tpu.matmul %116, %115, %cst_86 {dimension_numbers = #tpu.dot_dimension_numbers<[1], [0], [0], [1], [0, 0, 1, 1], [], []>} : vector<1x80xbf16>, vector<80x120xbf16>, vector<1x120xf32> -> vector<1x120xf32>
    %118 = arith.addf %112, %117 : vector<1x120xf32>
    %c1_87 = arith.constant 1 : index
    %c0_88 = arith.constant 0 : index
    %c0_89 = arith.constant 0 : index
    %119 = vector.load %arg0[%c1_87, %c0_88, %c0_89] : memref<2x32x32xf32, #tpu.memory_space<vmem>>, vector<1x32x32xf32>
    %120 = vector.shape_cast %119 : vector<1x32x32xf32> to vector<32x32xf32>
    %121 = vector.extract_strided_slice %120 {offsets = [0, 0], sizes = [28, 32], strides = [1, 1]} : vector<32x32xf32> to vector<28x32xf32>
    %c0_90 = arith.constant 0 : index
    %c0_91 = arith.constant 0 : index
    %c0_92 = arith.constant 0 : index
    %122 = vector.load %arg1[%c0_90, %c0_91, %c0_92] : memref<5x32x168xbf16, #tpu.memory_space<vmem>>, vector<1x32x168xbf16>
    %123 = vector.shape_cast %122 : vector<1x32x168xbf16> to vector<32x168xbf16>
    %124 = arith.truncf %121 : vector<28x32xf32> to vector<28x32xbf16>
    %cst_93 = arith.constant dense<0.000000e+00> : vector<28x168xf32>
    %125 = tpu.matmul %124, %123, %cst_93 {dimension_numbers = #tpu.dot_dimension_numbers<[1], [0], [0], [1], [0, 0, 1, 1], [], []>} : vector<28x32xbf16>, vector<32x168xbf16>, vector<28x168xf32> -> vector<28x168xf32>
    %126 = vector.extract_strided_slice %120 {offsets = [1, 0], sizes = [28, 32], strides = [1, 1]} : vector<32x32xf32> to vector<28x32xf32>
    %c1_94 = arith.constant 1 : index
    %c0_95 = arith.constant 0 : index
    %c0_96 = arith.constant 0 : index
    %127 = vector.load %arg1[%c1_94, %c0_95, %c0_96] : memref<5x32x168xbf16, #tpu.memory_space<vmem>>, vector<1x32x168xbf16>
    %128 = vector.shape_cast %127 : vector<1x32x168xbf16> to vector<32x168xbf16>
    %129 = arith.truncf %126 : vector<28x32xf32> to vector<28x32xbf16>
    %cst_97 = arith.constant dense<0.000000e+00> : vector<28x168xf32>
    %130 = tpu.matmul %129, %128, %cst_97 {dimension_numbers = #tpu.dot_dimension_numbers<[1], [0], [0], [1], [0, 0, 1, 1], [], []>} : vector<28x32xbf16>, vector<32x168xbf16>, vector<28x168xf32> -> vector<28x168xf32>
    %131 = arith.addf %125, %130 : vector<28x168xf32>
    %132 = vector.extract_strided_slice %120 {offsets = [2, 0], sizes = [28, 32], strides = [1, 1]} : vector<32x32xf32> to vector<28x32xf32>
    %c2_98 = arith.constant 2 : index
    %c0_99 = arith.constant 0 : index
    %c0_100 = arith.constant 0 : index
    %133 = vector.load %arg1[%c2_98, %c0_99, %c0_100] : memref<5x32x168xbf16, #tpu.memory_space<vmem>>, vector<1x32x168xbf16>
    %134 = vector.shape_cast %133 : vector<1x32x168xbf16> to vector<32x168xbf16>
    %135 = arith.truncf %132 : vector<28x32xf32> to vector<28x32xbf16>
    %cst_101 = arith.constant dense<0.000000e+00> : vector<28x168xf32>
    %136 = tpu.matmul %135, %134, %cst_101 {dimension_numbers = #tpu.dot_dimension_numbers<[1], [0], [0], [1], [0, 0, 1, 1], [], []>} : vector<28x32xbf16>, vector<32x168xbf16>, vector<28x168xf32> -> vector<28x168xf32>
    %137 = arith.addf %131, %136 : vector<28x168xf32>
    %138 = vector.extract_strided_slice %120 {offsets = [3, 0], sizes = [28, 32], strides = [1, 1]} : vector<32x32xf32> to vector<28x32xf32>
    %c3_102 = arith.constant 3 : index
    %c0_103 = arith.constant 0 : index
    %c0_104 = arith.constant 0 : index
    %139 = vector.load %arg1[%c3_102, %c0_103, %c0_104] : memref<5x32x168xbf16, #tpu.memory_space<vmem>>, vector<1x32x168xbf16>
    %140 = vector.shape_cast %139 : vector<1x32x168xbf16> to vector<32x168xbf16>
    %141 = arith.truncf %138 : vector<28x32xf32> to vector<28x32xbf16>
    %cst_105 = arith.constant dense<0.000000e+00> : vector<28x168xf32>
    %142 = tpu.matmul %141, %140, %cst_105 {dimension_numbers = #tpu.dot_dimension_numbers<[1], [0], [0], [1], [0, 0, 1, 1], [], []>} : vector<28x32xbf16>, vector<32x168xbf16>, vector<28x168xf32> -> vector<28x168xf32>
    %143 = arith.addf %137, %142 : vector<28x168xf32>
    %144 = vector.extract_strided_slice %120 {offsets = [4, 0], sizes = [28, 32], strides = [1, 1]} : vector<32x32xf32> to vector<28x32xf32>
    %c4_106 = arith.constant 4 : index
    %c0_107 = arith.constant 0 : index
    %c0_108 = arith.constant 0 : index
    %145 = vector.load %arg1[%c4_106, %c0_107, %c0_108] : memref<5x32x168xbf16, #tpu.memory_space<vmem>>, vector<1x32x168xbf16>
    %146 = vector.shape_cast %145 : vector<1x32x168xbf16> to vector<32x168xbf16>
    %147 = arith.truncf %144 : vector<28x32xf32> to vector<28x32xbf16>
    %cst_109 = arith.constant dense<0.000000e+00> : vector<28x168xf32>
    %148 = tpu.matmul %147, %146, %cst_109 {dimension_numbers = #tpu.dot_dimension_numbers<[1], [0], [0], [1], [0, 0, 1, 1], [], []>} : vector<28x32xbf16>, vector<32x168xbf16>, vector<28x168xf32> -> vector<28x168xf32>
    %149 = arith.addf %143, %148 : vector<28x168xf32>
    %c0_110 = arith.constant 0 : index
    %c0_111 = arith.constant 0 : index
    %150 = vector.load %arg2[%c0_110, %c0_111] : memref<1x168xf32, #tpu.memory_space<vmem>>, vector<1x168xf32>
    %151 = vector.broadcast %150 : vector<1x168xf32> to vector<28x168xf32>
    %152 = arith.addf %149, %151 : vector<28x168xf32>
    %cst_112 = arith.constant 0.000000e+00 : f32
    %153 = vector.broadcast %cst_112 : f32 to vector<28x168xf32>
    %154 = arith.maximumf %152, %153 : vector<28x168xf32>
    %c0_113 = arith.constant 0 : index
    %c0_114 = arith.constant 0 : index
    %155 = vector.load %arg3[%c0_113, %c0_114] : memref<14x28xf32, #tpu.memory_space<vmem>>, vector<14x28xf32>
    %cst_115 = arith.constant dense<0.000000e+00> : vector<14x168xf32>
    %156 = tpu.matmul %155, %154, %cst_115 {dimension_numbers = #tpu.dot_dimension_numbers<[1], [0], [0], [1], [0, 0, 1, 1], [], []>} : vector<14x28xf32>, vector<28x168xf32>, vector<14x168xf32> -> vector<14x168xf32>
    %c0_116 = arith.constant 0 : index
    %c0_117 = arith.constant 0 : index
    %157 = vector.load %arg4[%c0_116, %c0_117] : memref<14x28xf32, #tpu.memory_space<vmem>>, vector<14x28xf32>
    %cst_118 = arith.constant dense<0.000000e+00> : vector<14x168xf32>
    %158 = tpu.matmul %157, %154, %cst_118 {dimension_numbers = #tpu.dot_dimension_numbers<[1], [0], [0], [1], [0, 0, 1, 1], [], []>} : vector<14x28xf32>, vector<28x168xf32>, vector<14x168xf32> -> vector<14x168xf32>
    %159 = arith.maximumf %156, %158 : vector<14x168xf32>
    %c0_119 = arith.constant 0 : index
    %c0_120 = arith.constant 0 : index
    %160 = vector.load %arg5[%c0_119, %c0_120] : memref<168x84xf32, #tpu.memory_space<vmem>>, vector<168x84xf32>
    %cst_121 = arith.constant dense<0.000000e+00> : vector<14x84xf32>
    %161 = tpu.matmul %159, %160, %cst_121 {dimension_numbers = #tpu.dot_dimension_numbers<[1], [0], [0], [1], [0, 0, 1, 1], [], []>} : vector<14x168xf32>, vector<168x84xf32>, vector<14x84xf32> -> vector<14x84xf32>
    %c0_122 = arith.constant 0 : index
    %c0_123 = arith.constant 0 : index
    %162 = vector.load %arg6[%c0_122, %c0_123] : memref<168x84xf32, #tpu.memory_space<vmem>>, vector<168x84xf32>
    %cst_124 = arith.constant dense<0.000000e+00> : vector<14x84xf32>
    %163 = tpu.matmul %159, %162, %cst_124 {dimension_numbers = #tpu.dot_dimension_numbers<[1], [0], [0], [1], [0, 0, 1, 1], [], []>} : vector<14x168xf32>, vector<168x84xf32>, vector<14x84xf32> -> vector<14x84xf32>
    %164 = arith.maximumf %161, %163 : vector<14x84xf32>
    %165 = vector.extract_strided_slice %164 {offsets = [0, 0], sizes = [10, 84], strides = [1, 1]} : vector<14x84xf32> to vector<10x84xf32>
    %c0_125 = arith.constant 0 : index
    %c0_126 = arith.constant 0 : index
    %c0_127 = arith.constant 0 : index
    %166 = vector.load %arg7[%c0_125, %c0_126, %c0_127] : memref<5x84x160xbf16, #tpu.memory_space<vmem>>, vector<1x84x160xbf16>
    %167 = vector.shape_cast %166 : vector<1x84x160xbf16> to vector<84x160xbf16>
    %168 = arith.truncf %165 : vector<10x84xf32> to vector<10x84xbf16>
    %cst_128 = arith.constant dense<0.000000e+00> : vector<10x160xf32>
    %169 = tpu.matmul %168, %167, %cst_128 {dimension_numbers = #tpu.dot_dimension_numbers<[1], [0], [0], [1], [0, 0, 1, 1], [], []>} : vector<10x84xbf16>, vector<84x160xbf16>, vector<10x160xf32> -> vector<10x160xf32>
    %170 = vector.extract_strided_slice %164 {offsets = [1, 0], sizes = [10, 84], strides = [1, 1]} : vector<14x84xf32> to vector<10x84xf32>
    %c1_129 = arith.constant 1 : index
    %c0_130 = arith.constant 0 : index
    %c0_131 = arith.constant 0 : index
    %171 = vector.load %arg7[%c1_129, %c0_130, %c0_131] : memref<5x84x160xbf16, #tpu.memory_space<vmem>>, vector<1x84x160xbf16>
    %172 = vector.shape_cast %171 : vector<1x84x160xbf16> to vector<84x160xbf16>
    %173 = arith.truncf %170 : vector<10x84xf32> to vector<10x84xbf16>
    %cst_132 = arith.constant dense<0.000000e+00> : vector<10x160xf32>
    %174 = tpu.matmul %173, %172, %cst_132 {dimension_numbers = #tpu.dot_dimension_numbers<[1], [0], [0], [1], [0, 0, 1, 1], [], []>} : vector<10x84xbf16>, vector<84x160xbf16>, vector<10x160xf32> -> vector<10x160xf32>
    %175 = arith.addf %169, %174 : vector<10x160xf32>
    %176 = vector.extract_strided_slice %164 {offsets = [2, 0], sizes = [10, 84], strides = [1, 1]} : vector<14x84xf32> to vector<10x84xf32>
    %c2_133 = arith.constant 2 : index
    %c0_134 = arith.constant 0 : index
    %c0_135 = arith.constant 0 : index
    %177 = vector.load %arg7[%c2_133, %c0_134, %c0_135] : memref<5x84x160xbf16, #tpu.memory_space<vmem>>, vector<1x84x160xbf16>
    %178 = vector.shape_cast %177 : vector<1x84x160xbf16> to vector<84x160xbf16>
    %179 = arith.truncf %176 : vector<10x84xf32> to vector<10x84xbf16>
    %cst_136 = arith.constant dense<0.000000e+00> : vector<10x160xf32>
    %180 = tpu.matmul %179, %178, %cst_136 {dimension_numbers = #tpu.dot_dimension_numbers<[1], [0], [0], [1], [0, 0, 1, 1], [], []>} : vector<10x84xbf16>, vector<84x160xbf16>, vector<10x160xf32> -> vector<10x160xf32>
    %181 = arith.addf %175, %180 : vector<10x160xf32>
    %182 = vector.extract_strided_slice %164 {offsets = [3, 0], sizes = [10, 84], strides = [1, 1]} : vector<14x84xf32> to vector<10x84xf32>
    %c3_137 = arith.constant 3 : index
    %c0_138 = arith.constant 0 : index
    %c0_139 = arith.constant 0 : index
    %183 = vector.load %arg7[%c3_137, %c0_138, %c0_139] : memref<5x84x160xbf16, #tpu.memory_space<vmem>>, vector<1x84x160xbf16>
    %184 = vector.shape_cast %183 : vector<1x84x160xbf16> to vector<84x160xbf16>
    %185 = arith.truncf %182 : vector<10x84xf32> to vector<10x84xbf16>
    %cst_140 = arith.constant dense<0.000000e+00> : vector<10x160xf32>
    %186 = tpu.matmul %185, %184, %cst_140 {dimension_numbers = #tpu.dot_dimension_numbers<[1], [0], [0], [1], [0, 0, 1, 1], [], []>} : vector<10x84xbf16>, vector<84x160xbf16>, vector<10x160xf32> -> vector<10x160xf32>
    %187 = arith.addf %181, %186 : vector<10x160xf32>
    %188 = vector.extract_strided_slice %164 {offsets = [4, 0], sizes = [10, 84], strides = [1, 1]} : vector<14x84xf32> to vector<10x84xf32>
    %c4_141 = arith.constant 4 : index
    %c0_142 = arith.constant 0 : index
    %c0_143 = arith.constant 0 : index
    %189 = vector.load %arg7[%c4_141, %c0_142, %c0_143] : memref<5x84x160xbf16, #tpu.memory_space<vmem>>, vector<1x84x160xbf16>
    %190 = vector.shape_cast %189 : vector<1x84x160xbf16> to vector<84x160xbf16>
    %191 = arith.truncf %188 : vector<10x84xf32> to vector<10x84xbf16>
    %cst_144 = arith.constant dense<0.000000e+00> : vector<10x160xf32>
    %192 = tpu.matmul %191, %190, %cst_144 {dimension_numbers = #tpu.dot_dimension_numbers<[1], [0], [0], [1], [0, 0, 1, 1], [], []>} : vector<10x84xbf16>, vector<84x160xbf16>, vector<10x160xf32> -> vector<10x160xf32>
    %193 = arith.addf %187, %192 : vector<10x160xf32>
    %c0_145 = arith.constant 0 : index
    %c0_146 = arith.constant 0 : index
    %194 = vector.load %arg8[%c0_145, %c0_146] : memref<1x160xf32, #tpu.memory_space<vmem>>, vector<1x160xf32>
    %195 = vector.broadcast %194 : vector<1x160xf32> to vector<10x160xf32>
    %196 = arith.addf %193, %195 : vector<10x160xf32>
    %cst_147 = arith.constant 0.000000e+00 : f32
    %197 = vector.broadcast %cst_147 : f32 to vector<10x160xf32>
    %198 = arith.maximumf %196, %197 : vector<10x160xf32>
    %c0_148 = arith.constant 0 : index
    %c0_149 = arith.constant 0 : index
    %199 = vector.load %arg9[%c0_148, %c0_149] : memref<5x10xf32, #tpu.memory_space<vmem>>, vector<5x10xf32>
    %cst_150 = arith.constant dense<0.000000e+00> : vector<5x160xf32>
    %200 = tpu.matmul %199, %198, %cst_150 {dimension_numbers = #tpu.dot_dimension_numbers<[1], [0], [0], [1], [0, 0, 1, 1], [], []>} : vector<5x10xf32>, vector<10x160xf32>, vector<5x160xf32> -> vector<5x160xf32>
    %c0_151 = arith.constant 0 : index
    %c0_152 = arith.constant 0 : index
    %201 = vector.load %arg10[%c0_151, %c0_152] : memref<5x10xf32, #tpu.memory_space<vmem>>, vector<5x10xf32>
    %cst_153 = arith.constant dense<0.000000e+00> : vector<5x160xf32>
    %202 = tpu.matmul %201, %198, %cst_153 {dimension_numbers = #tpu.dot_dimension_numbers<[1], [0], [0], [1], [0, 0, 1, 1], [], []>} : vector<5x10xf32>, vector<10x160xf32>, vector<5x160xf32> -> vector<5x160xf32>
    %203 = arith.maximumf %200, %202 : vector<5x160xf32>
    %c0_154 = arith.constant 0 : index
    %c0_155 = arith.constant 0 : index
    %204 = vector.load %arg11[%c0_154, %c0_155] : memref<160x80xf32, #tpu.memory_space<vmem>>, vector<160x80xf32>
    %cst_156 = arith.constant dense<0.000000e+00> : vector<5x80xf32>
    %205 = tpu.matmul %203, %204, %cst_156 {dimension_numbers = #tpu.dot_dimension_numbers<[1], [0], [0], [1], [0, 0, 1, 1], [], []>} : vector<5x160xf32>, vector<160x80xf32>, vector<5x80xf32> -> vector<5x80xf32>
    %c0_157 = arith.constant 0 : index
    %c0_158 = arith.constant 0 : index
    %206 = vector.load %arg12[%c0_157, %c0_158] : memref<160x80xf32, #tpu.memory_space<vmem>>, vector<160x80xf32>
    %cst_159 = arith.constant dense<0.000000e+00> : vector<5x80xf32>
    %207 = tpu.matmul %203, %206, %cst_159 {dimension_numbers = #tpu.dot_dimension_numbers<[1], [0], [0], [1], [0, 0, 1, 1], [], []>} : vector<5x160xf32>, vector<160x80xf32>, vector<5x80xf32> -> vector<5x80xf32>
    %208 = arith.maximumf %205, %207 : vector<5x80xf32>
    %209 = vector.extract_strided_slice %208 {offsets = [0, 0], sizes = [1, 80], strides = [1, 1]} : vector<5x80xf32> to vector<1x80xf32>
    %c0_160 = arith.constant 0 : index
    %c0_161 = arith.constant 0 : index
    %c0_162 = arith.constant 0 : index
    %210 = vector.load %arg13[%c0_160, %c0_161, %c0_162] : memref<5x80x120xbf16, #tpu.memory_space<vmem>>, vector<1x80x120xbf16>
    %211 = vector.shape_cast %210 : vector<1x80x120xbf16> to vector<80x120xbf16>
    %212 = arith.truncf %209 : vector<1x80xf32> to vector<1x80xbf16>
    %cst_163 = arith.constant dense<0.000000e+00> : vector<1x120xf32>
    %213 = tpu.matmul %212, %211, %cst_163 {dimension_numbers = #tpu.dot_dimension_numbers<[1], [0], [0], [1], [0, 0, 1, 1], [], []>} : vector<1x80xbf16>, vector<80x120xbf16>, vector<1x120xf32> -> vector<1x120xf32>
    %214 = vector.extract_strided_slice %208 {offsets = [1, 0], sizes = [1, 80], strides = [1, 1]} : vector<5x80xf32> to vector<1x80xf32>
    %c1_164 = arith.constant 1 : index
    %c0_165 = arith.constant 0 : index
    %c0_166 = arith.constant 0 : index
    %215 = vector.load %arg13[%c1_164, %c0_165, %c0_166] : memref<5x80x120xbf16, #tpu.memory_space<vmem>>, vector<1x80x120xbf16>
    %216 = vector.shape_cast %215 : vector<1x80x120xbf16> to vector<80x120xbf16>
    %217 = arith.truncf %214 : vector<1x80xf32> to vector<1x80xbf16>
    %cst_167 = arith.constant dense<0.000000e+00> : vector<1x120xf32>
    %218 = tpu.matmul %217, %216, %cst_167 {dimension_numbers = #tpu.dot_dimension_numbers<[1], [0], [0], [1], [0, 0, 1, 1], [], []>} : vector<1x80xbf16>, vector<80x120xbf16>, vector<1x120xf32> -> vector<1x120xf32>
    %219 = arith.addf %213, %218 : vector<1x120xf32>
    %220 = vector.extract_strided_slice %208 {offsets = [2, 0], sizes = [1, 80], strides = [1, 1]} : vector<5x80xf32> to vector<1x80xf32>
    %c2_168 = arith.constant 2 : index
    %c0_169 = arith.constant 0 : index
    %c0_170 = arith.constant 0 : index
    %221 = vector.load %arg13[%c2_168, %c0_169, %c0_170] : memref<5x80x120xbf16, #tpu.memory_space<vmem>>, vector<1x80x120xbf16>
    %222 = vector.shape_cast %221 : vector<1x80x120xbf16> to vector<80x120xbf16>
    %223 = arith.truncf %220 : vector<1x80xf32> to vector<1x80xbf16>
    %cst_171 = arith.constant dense<0.000000e+00> : vector<1x120xf32>
    %224 = tpu.matmul %223, %222, %cst_171 {dimension_numbers = #tpu.dot_dimension_numbers<[1], [0], [0], [1], [0, 0, 1, 1], [], []>} : vector<1x80xbf16>, vector<80x120xbf16>, vector<1x120xf32> -> vector<1x120xf32>
    %225 = arith.addf %219, %224 : vector<1x120xf32>
    %226 = vector.extract_strided_slice %208 {offsets = [3, 0], sizes = [1, 80], strides = [1, 1]} : vector<5x80xf32> to vector<1x80xf32>
    %c3_172 = arith.constant 3 : index
    %c0_173 = arith.constant 0 : index
    %c0_174 = arith.constant 0 : index
    %227 = vector.load %arg13[%c3_172, %c0_173, %c0_174] : memref<5x80x120xbf16, #tpu.memory_space<vmem>>, vector<1x80x120xbf16>
    %228 = vector.shape_cast %227 : vector<1x80x120xbf16> to vector<80x120xbf16>
    %229 = arith.truncf %226 : vector<1x80xf32> to vector<1x80xbf16>
    %cst_175 = arith.constant dense<0.000000e+00> : vector<1x120xf32>
    %230 = tpu.matmul %229, %228, %cst_175 {dimension_numbers = #tpu.dot_dimension_numbers<[1], [0], [0], [1], [0, 0, 1, 1], [], []>} : vector<1x80xbf16>, vector<80x120xbf16>, vector<1x120xf32> -> vector<1x120xf32>
    %231 = arith.addf %225, %230 : vector<1x120xf32>
    %232 = vector.extract_strided_slice %208 {offsets = [4, 0], sizes = [1, 80], strides = [1, 1]} : vector<5x80xf32> to vector<1x80xf32>
    %c4_176 = arith.constant 4 : index
    %c0_177 = arith.constant 0 : index
    %c0_178 = arith.constant 0 : index
    %233 = vector.load %arg13[%c4_176, %c0_177, %c0_178] : memref<5x80x120xbf16, #tpu.memory_space<vmem>>, vector<1x80x120xbf16>
    %234 = vector.shape_cast %233 : vector<1x80x120xbf16> to vector<80x120xbf16>
    %235 = arith.truncf %232 : vector<1x80xf32> to vector<1x80xbf16>
    %cst_179 = arith.constant dense<0.000000e+00> : vector<1x120xf32>
    %236 = tpu.matmul %235, %234, %cst_179 {dimension_numbers = #tpu.dot_dimension_numbers<[1], [0], [0], [1], [0, 0, 1, 1], [], []>} : vector<1x80xbf16>, vector<80x120xbf16>, vector<1x120xf32> -> vector<1x120xf32>
    %237 = arith.addf %231, %236 : vector<1x120xf32>
    %238 = tpu.concatenate %118, %237 in 0 : vector<1x120xf32>, vector<1x120xf32> -> vector<2x120xf32>
    %c0_180 = arith.constant 0 : index
    %c0_181 = arith.constant 0 : index
    %239 = vector.load %arg14[%c0_180, %c0_181] : memref<1x120xf32, #tpu.memory_space<vmem>>, vector<1x120xf32>
    %240 = vector.broadcast %239 : vector<1x120xf32> to vector<2x120xf32>
    %241 = arith.addf %238, %240 : vector<2x120xf32>
    %cst_182 = arith.constant 0.000000e+00 : f32
    %242 = vector.broadcast %cst_182 : f32 to vector<2x120xf32>
    %243 = arith.maximumf %241, %242 : vector<2x120xf32>
    %c0_183 = arith.constant 0 : index
    %c0_184 = arith.constant 0 : index
    %244 = vector.load %arg15[%c0_183, %c0_184] : memref<120x84xbf16, #tpu.memory_space<vmem>>, vector<120x84xbf16>
    %245 = arith.truncf %243 : vector<2x120xf32> to vector<2x120xbf16>
    %cst_185 = arith.constant dense<0.000000e+00> : vector<2x84xf32>
    %246 = tpu.matmul %245, %244, %cst_185 {dimension_numbers = #tpu.dot_dimension_numbers<[1], [0], [0], [1], [0, 0, 1, 1], [], []>} : vector<2x120xbf16>, vector<120x84xbf16>, vector<2x84xf32> -> vector<2x84xf32>
    %c0_186 = arith.constant 0 : index
    %c0_187 = arith.constant 0 : index
    %247 = vector.load %arg16[%c0_186, %c0_187] : memref<1x84xf32, #tpu.memory_space<vmem>>, vector<1x84xf32>
    %248 = vector.broadcast %247 : vector<1x84xf32> to vector<2x84xf32>
    %249 = arith.addf %246, %248 : vector<2x84xf32>
    %cst_188 = arith.constant 0.000000e+00 : f32
    %250 = vector.broadcast %cst_188 : f32 to vector<2x84xf32>
    %251 = arith.maximumf %249, %250 : vector<2x84xf32>
    %c0_189 = arith.constant 0 : index
    %c0_190 = arith.constant 0 : index
    %252 = vector.load %arg17[%c0_189, %c0_190] : memref<84x128xbf16, #tpu.memory_space<vmem>>, vector<84x128xbf16>
    %253 = arith.truncf %251 : vector<2x84xf32> to vector<2x84xbf16>
    %cst_191 = arith.constant dense<0.000000e+00> : vector<2x128xf32>
    %254 = tpu.matmul %253, %252, %cst_191 {dimension_numbers = #tpu.dot_dimension_numbers<[1], [0], [0], [1], [0, 0, 1, 1], [], []>} : vector<2x84xbf16>, vector<84x128xbf16>, vector<2x128xf32> -> vector<2x128xf32>
    %c0_192 = arith.constant 0 : index
    %c0_193 = arith.constant 0 : index
    %255 = vector.load %arg18[%c0_192, %c0_193] : memref<1x128xf32, #tpu.memory_space<vmem>>, vector<1x128xf32>
    %256 = vector.broadcast %255 : vector<1x128xf32> to vector<2x128xf32>
    %257 = arith.addf %254, %256 : vector<2x128xf32>
    %c0_194 = arith.constant 0 : index
    %c0_195 = arith.constant 0 : index
    %258 = vector.load %arg19[%c0_194, %c0_195] : memref<2x128xf32, #tpu.memory_space<vmem>>, vector<2x128xf32>
    tpu.vector_store %arg19[%c0_194, %c0_195], %257 {strides = array<i32>} : memref<2x128xf32, #tpu.memory_space<vmem>>, vector<2x128xf32>,
    return
  }
}

</mosaic_0001>

<llo_original>
// kernel: _lenet_forward.1
$region0: #{_lenet_forward.1}
  #allocation0 [shape = 'u32[]', space=smem, size = 0x4, offset = 0x4, fixed_abs, tag = 'smem constant byte address 0x4 - core index']
  #allocation1 [shape = 'u32[144,128]{1,0:T(1,128)}', space=vmem, size = 0x12000, scoped, tag = 'internal scratch']
  %s0 = inlined_call_operand.vmem [shape: f32[2,32,32], index: 0, kind: input, shape index: {}]
  %s1 = inlined_call_operand.vmem [shape: bf16[5,32,168], index: 1, kind: input, shape index: {}]
  %s2 = inlined_call_operand.hbm [shape: f32[1,168], index: 2, kind: input, shape index: {}]
  %s3 = inlined_call_operand.hbm [shape: f32[14,28], index: 3, kind: input, shape index: {}]
  %s4 = inlined_call_operand.hbm [shape: f32[14,28], index: 4, kind: input, shape index: {}]
  %s5 = inlined_call_operand.vmem [shape: f32[168,84], index: 5, kind: input, shape index: {}]
  %s6 = inlined_call_operand.vmem [shape: f32[168,84], index: 6, kind: input, shape index: {}]
  %s7 = inlined_call_operand.vmem [shape: bf16[5,84,160], index: 7, kind: input, shape index: {}]
  %s8 = inlined_call_operand.hbm [shape: f32[1,160], index: 8, kind: input, shape index: {}]
  %s9 = inlined_call_operand.hbm [shape: f32[5,10], index: 9, kind: input, shape index: {}]
  %s10 = inlined_call_operand.hbm [shape: f32[5,10], index: 10, kind: input, shape index: {}]
  %s11 = inlined_call_operand.vmem [shape: f32[160,80], index: 11, kind: input, shape index: {}]
  %s12 = inlined_call_operand.hbm [shape: f32[160,80], index: 12, kind: input, shape index: {}]
  %s13 = inlined_call_operand.vmem [shape: bf16[5,80,120], index: 13, kind: input, shape index: {}]
  %s14 = inlined_call_operand.vmem [shape: f32[1,120], index: 14, kind: input, shape index: {}]
  %s15 = inlined_call_operand.vmem [shape: bf16[120,84], index: 15, kind: input, shape index: {}]
  %s16 = inlined_call_operand.hbm [shape: f32[1,84], index: 16, kind: input, shape index: {}]
  %s17 = inlined_call_operand.vmem [shape: bf16[84,128], index: 17, kind: input, shape index: {}]
  %s18 = inlined_call_operand.hbm [shape: f32[1,128], index: 18, kind: input, shape index: {}]
  %s19 = inlined_call_operand.hbm [shape: f32[2,128], index: 19, kind: output, shape index: {}]
  %s20 = sld [smem:[#allocation0]]
  $region122: #{_lenet_forward.1} parent=0
    _
  %s22 = ssub.s32 1, %s20
  %s23 = scalar_select 0, %s22, %s20
  $region1: #{_lenet_forward.1} parent=0
    #allocation2 [shape = 'u8[1024]{0}', space=vmem, size = 0x400, scoped, tag = 'input window, operand 2, single buffered']
    #allocation3 [shape = 's32[1]{0}', space=sflag, size = 0x4, scoped, tag = 'scoped memory for _lenet_forward.1']
    #allocation4 [shape = 's32[1]{0}', space=sflag, size = 0x4, scoped, tag = 'scoped memory for _lenet_forward.1']
    #allocation5 [shape = 'u8[8192]{0}', space=vmem, size = 0x2000, scoped, tag = 'input window, operand 3, single buffered']
    #allocation6 [shape = 's32[1]{0}', space=sflag, size = 0x4, scoped, tag = 'scoped memory for _lenet_forward.1']
    #allocation7 [shape = 'u8[8192]{0}', space=vmem, size = 0x2000, scoped, tag = 'input window, operand 4, single buffered']
    #allocation8 [shape = 'u8[1024]{0}', space=vmem, size = 0x400, scoped, tag = 'input window, operand 8, single buffered']
    #allocation9 [shape = 's32[1]{0}', space=sflag, size = 0x4, scoped, tag = 'scoped memory for _lenet_forward.1']
    #allocation10 [shape = 'u8[4096]{0}', space=vmem, size = 0x1000, scoped, tag = 'input window, operand 9, single buffered']
    #allocation11 [shape = 'u8[4096]{0}', space=vmem, size = 0x1000, scoped, tag = 'input window, operand 10, single buffered']
    #allocation12 [shape = 's32[1]{0}', space=sflag, size = 0x4, scoped, tag = 'scoped memory for _lenet_forward.1']
    #allocation13 [shape = 'u8[81920]{0}', space=vmem, size = 0x14000, scoped, tag = 'input window, operand 12, single buffered']
    #allocation14 [shape = 'u8[512]{0}', space=vmem, size = 0x400, scoped, tag = 'input window, operand 16, single buffered']
    #allocation15 [shape = 's32[1]{0}', space=sflag, size = 0x4, scoped, tag = 'scoped memory for _lenet_forward.1']
    #allocation16 [shape = 'u8[512]{0}', space=vmem, size = 0x400, scoped, tag = 'input window, operand 18, single buffered']
    #allocation17 [shape = 'u8[1024]{0}', space=vmem, size = 0x400, scoped, tag = 'output window, operand 0, single buffered']
    %24 = vsyncpa [#allocation3], 0
    %25 = vsyncpa [#allocation6], 0
    %26 = vsyncpa [#allocation9], 0
    %27 = vsyncpa [#allocation12], 0
    %28 = vsyncpa [#allocation15], 0
    %29 = vsyncpa [#allocation4], 0
    // Predicated region
    $region2: #{_lenet_forward.1} parent=1 // pred_check
      _
    $region3: #{_lenet_forward.1} parent=1 // pred_check_branch
      %31 = sbr.rel (0) target = $region5
    $region4: #{_lenet_forward.1} parent=1 // pred_region
      _
    $region5: #{_lenet_forward.1} parent=1 // pred_fallthru
      _
    // Predicated region
    $region6: #{_lenet_forward.1} parent=1 // pred_check
      _
    $region7: #{_lenet_forward.1} parent=1 // pred_check_branch
      %33 = sbr.rel (0) target = $region9
    $region8: #{_lenet_forward.1} parent=1 // pred_region
      _
    $region9: #{_lenet_forward.1} parent=1 // pred_fallthru
      _
    // Predicated region
    $region10: #{_lenet_forward.1} parent=1 // pred_check
      _
    $region11: #{_lenet_forward.1} parent=1 // pred_check_branch
      %35 = sbr.rel (0) target = $region13
    $region12: #{_lenet_forward.1} parent=1 // pred_region
      %s37 = ssub.s32 32, 32
      %38 = vsyncadd [#allocation3], %s37
      %s40 = sshll.u32 [#allocation2], 4
      %s41 = int_to_ptr.vmem [resolvable:$true] %s40
      %43 = dma.hbm_to_vmem [thread:$0]  %s2, 32, %s41, [#allocation3]
    $region13: #{_lenet_forward.1} parent=1 // pred_fallthru
      _
    // Predicated region
    $region14: #{_lenet_forward.1} parent=1 // pred_check
      _
    $region15: #{_lenet_forward.1} parent=1 // pred_check_branch
      %45 = sbr.rel (0) target = $region17
    $region16: #{_lenet_forward.1} parent=1 // pred_region
      %s47 = ssub.s32 256, 256
      %48 = vsyncadd [#allocation6], %s47
      %s49 = sshll.u32 [#allocation5], 4
      %s50 = int_to_ptr.vmem [resolvable:$true] %s49
      %55 = dma.hbm_to_vmem [thread:$0]  %s3, 256, %s50, [#allocation6], 128, 128, 8
    $region17: #{_lenet_forward.1} parent=1 // pred_fallthru
      _
    // Predicated region
    $region18: #{_lenet_forward.1} parent=1 // pred_check
      _
    $region19: #{_lenet_forward.1} parent=1 // pred_check_branch
      %57 = sbr.rel (0) target = $region21
    $region20: #{_lenet_forward.1} parent=1 // pred_region
      %s59 = ssub.s32 256, 256
      %60 = vsyncadd [#allocation6], %s59
      %s61 = sshll.u32 [#allocation7], 4
      %s62 = int_to_ptr.vmem [resolvable:$true] %s61
      %67 = dma.hbm_to_vmem [thread:$0]  %s4, 256, %s62, [#allocation6], 128, 128, 8
    $region21: #{_lenet_forward.1} parent=1 // pred_fallthru
      _
    // Predicated region
    $region22: #{_lenet_forward.1} parent=1 // pred_check
      _
    $region23: #{_lenet_forward.1} parent=1 // pred_check_branch
      %69 = sbr.rel (0) target = $region25
    $region24: #{_lenet_forward.1} parent=1 // pred_region
      _
    $region25: #{_lenet_forward.1} parent=1 // pred_fallthru
      _
    // Predicated region
    $region26: #{_lenet_forward.1} parent=1 // pred_check
      _
    $region27: #{_lenet_forward.1} parent=1 // pred_check_branch
      %71 = sbr.rel (0) target = $region29
    $region28: #{_lenet_forward.1} parent=1 // pred_region
      _
    $region29: #{_lenet_forward.1} parent=1 // pred_fallthru
      _
    // Predicated region
    $region30: #{_lenet_forward.1} parent=1 // pred_check
      _
    $region31: #{_lenet_forward.1} parent=1 // pred_check_branch
      %73 = sbr.rel (0) target = $region33
    $region32: #{_lenet_forward.1} parent=1 // pred_region
      _
    $region33: #{_lenet_forward.1} parent=1 // pred_fallthru
      _
    // Predicated region
    $region34: #{_lenet_forward.1} parent=1 // pred_check
      _
    $region35: #{_lenet_forward.1} parent=1 // pred_check_branch
      %75 = sbr.rel (0) target = $region37
    $region36: #{_lenet_forward.1} parent=1 // pred_region
      %s77 = ssub.s32 32, 32
      %78 = vsyncadd [#allocation9], %s77
      %s80 = sshll.u32 [#allocation8], 4
      %s81 = int_to_ptr.vmem [resolvable:$true] %s80
      %83 = dma.hbm_to_vmem [thread:$0]  %s8, 32, %s81, [#allocation9]
    $region37: #{_lenet_forward.1} parent=1 // pred_fallthru
      _
    // Predicated region
    $region38: #{_lenet_forward.1} parent=1 // pred_check
      _
    $region39: #{_lenet_forward.1} parent=1 // pred_check_branch
      %85 = sbr.rel (0) target = $region41
    $region40: #{_lenet_forward.1} parent=1 // pred_region
      %s87 = ssub.s32 128, 128
      %88 = vsyncadd [#allocation9], %s87
      %s90 = sshll.u32 [#allocation10], 4
      %s91 = int_to_ptr.vmem [resolvable:$true] %s90
      %93 = dma.hbm_to_vmem [thread:$0]  %s9, 128, %s91, [#allocation9]
    $region41: #{_lenet_forward.1} parent=1 // pred_fallthru
      _
    // Predicated region
    $region42: #{_lenet_forward.1} parent=1 // pred_check
      _
    $region43: #{_lenet_forward.1} parent=1 // pred_check_branch
      %95 = sbr.rel (0) target = $region45
    $region44: #{_lenet_forward.1} parent=1 // pred_region
      %s97 = ssub.s32 128, 128
      %98 = vsyncadd [#allocation12], %s97
      %s100 = sshll.u32 [#allocation11], 4
      %s101 = int_to_ptr.vmem [resolvable:$true] %s100
      %103 = dma.hbm_to_vmem [thread:$0]  %s10, 128, %s101, [#allocation12]
    $region45: #{_lenet_forward.1} parent=1 // pred_fallthru
      _
    // Predicated region
    $region46: #{_lenet_forward.1} parent=1 // pred_check
      _
    $region47: #{_lenet_forward.1} parent=1 // pred_check_branch
      %105 = sbr.rel (0) target = $region49
    $region48: #{_lenet_forward.1} parent=1 // pred_region
      _
    $region49: #{_lenet_forward.1} parent=1 // pred_fallthru
      _
    // Predicated region
    $region50: #{_lenet_forward.1} parent=1 // pred_check
      _
    $region51: #{_lenet_forward.1} parent=1 // pred_check_branch
      %107 = sbr.rel (0) target = $region53
    $region52: #{_lenet_forward.1} parent=1 // pred_region
      %s109 = ssub.s32 2560, 2560
      %110 = vsyncadd [#allocation12], %s109
      %s111 = sshll.u32 [#allocation13], 4
      %s112 = int_to_ptr.vmem [resolvable:$true] %s111
      %117 = dma.hbm_to_vmem [thread:$0]  %s12, 2560, %s112, [#allocation12], 128, 128, 8
    $region53: #{_lenet_forward.1} parent=1 // pred_fallthru
      _
    // Predicated region
    $region54: #{_lenet_forward.1} parent=1 // pred_check
      _
    $region55: #{_lenet_forward.1} parent=1 // pred_check_branch
      %119 = sbr.rel (0) target = $region57
    $region56: #{_lenet_forward.1} parent=1 // pred_region
      _
    $region57: #{_lenet_forward.1} parent=1 // pred_fallthru
      _
    // Predicated region
    $region58: #{_lenet_forward.1} parent=1 // pred_check
      _
    $region59: #{_lenet_forward.1} parent=1 // pred_check_branch
      %121 = sbr.rel (0) target = $region61
    $region60: #{_lenet_forward.1} parent=1 // pred_region
      _
    $region61: #{_lenet_forward.1} parent=1 // pred_fallthru
      _
    // Predicated region
    $region62: #{_lenet_forward.1} parent=1 // pred_check
      _
    $region63: #{_lenet_forward.1} parent=1 // pred_check_branch
      %123 = sbr.rel (0) target = $region65
    $region64: #{_lenet_forward.1} parent=1 // pred_region
      _
    $region65: #{_lenet_forward.1} parent=1 // pred_fallthru
      _
    // Predicated region
    $region66: #{_lenet_forward.1} parent=1 // pred_check
      _
    $region67: #{_lenet_forward.1} parent=1 // pred_check_branch
      %125 = sbr.rel (0) target = $region69
    $region68: #{_lenet_forward.1} parent=1 // pred_region
      %s127 = ssub.s32 16, 16
      %128 = vsyncadd [#allocation15], %s127
      %s130 = sshll.u32 [#allocation14], 4
      %s131 = int_to_ptr.vmem [resolvable:$true] %s130
      %133 = dma.hbm_to_vmem [thread:$0]  %s16, 16, %s131, [#allocation15]
    $region69: #{_lenet_forward.1} parent=1 // pred_fallthru
      _
    // Predicated region
    $region70: #{_lenet_forward.1} parent=1 // pred_check
      _
    $region71: #{_lenet_forward.1} parent=1 // pred_check_branch
      %135 = sbr.rel (0) target = $region73
    $region72: #{_lenet_forward.1} parent=1 // pred_region
      _
    $region73: #{_lenet_forward.1} parent=1 // pred_fallthru
      _
    // Predicated region
    $region74: #{_lenet_forward.1} parent=1 // pred_check
      _
    $region75: #{_lenet_forward.1} parent=1 // pred_check_branch
      %137 = sbr.rel (0) target = $region77
    $region76: #{_lenet_forward.1} parent=1 // pred_region
      %s139 = ssub.s32 16, 16
      %140 = vsyncadd [#allocation15], %s139
      %s142 = sshll.u32 [#allocation16], 4
      %s143 = int_to_ptr.vmem [resolvable:$true] %s142
      %145 = dma.hbm_to_vmem [thread:$0]  %s18, 16, %s143, [#allocation15]
    $region77: #{_lenet_forward.1} parent=1 // pred_fallthru
      _
    // Predicated region
    $region78: #{_lenet_forward.1} parent=1 // pred_check
      _
    $region79: #{_lenet_forward.1} parent=1 // pred_check_branch
      %147 = sbr.rel (0) target = $region81
    $region80: #{_lenet_forward.1} parent=1 // pred_region
      %148 = dma.done [#allocation3], 32
    $region81: #{_lenet_forward.1} parent=1 // pred_fallthru
      _
    // Predicated region
    $region82: #{_lenet_forward.1} parent=1 // pred_check
      _
    $region83: #{_lenet_forward.1} parent=1 // pred_check_branch
      %150 = sbr.rel (0) target = $region85
    $region84: #{_lenet_forward.1} parent=1 // pred_region
      %151 = dma.done [#allocation6], 256
    $region85: #{_lenet_forward.1} parent=1 // pred_fallthru
      _
    // Predicated region
    $region86: #{_lenet_forward.1} parent=1 // pred_check
      _
    $region87: #{_lenet_forward.1} parent=1 // pred_check_branch
      %153 = sbr.rel (0) target = $region89
    $region88: #{_lenet_forward.1} parent=1 // pred_region
      %154 = dma.done [#allocation6], 256
    $region89: #{_lenet_forward.1} parent=1 // pred_fallthru
      _
    // Predicated region
    $region90: #{_lenet_forward.1} parent=1 // pred_check
      _
    $region91: #{_lenet_forward.1} parent=1 // pred_check_branch
      %156 = sbr.rel (0) target = $region93
    $region92: #{_lenet_forward.1} parent=1 // pred_region
      %157 = dma.done [#allocation9], 32
    $region93: #{_lenet_forward.1} parent=1 // pred_fallthru
      _
    // Predicated region
    $region94: #{_lenet_forward.1} parent=1 // pred_check
      _
    $region95: #{_lenet_forward.1} parent=1 // pred_check_branch
      %159 = sbr.rel (0) target = $region97
    $region96: #{_lenet_forward.1} parent=1 // pred_region
      %160 = dma.done [#allocation9], 128
    $region97: #{_lenet_forward.1} parent=1 // pred_fallthru
      _
    // Predicated region
    $region98: #{_lenet_forward.1} parent=1 // pred_check
      _
    $region99: #{_lenet_forward.1} parent=1 // pred_check_branch
      %162 = sbr.rel (0) target = $region101
    $region100: #{_lenet_forward.1} parent=1 // pred_region
      %163 = dma.done [#allocation12], 128
    $region101: #{_lenet_forward.1} parent=1 // pred_fallthru
      _
    // Predicated region
    $region102: #{_lenet_forward.1} parent=1 // pred_check
      _
    $region103: #{_lenet_forward.1} parent=1 // pred_check_branch
      %165 = sbr.rel (0) target = $region105
    $region104: #{_lenet_forward.1} parent=1 // pred_region
      %166 = dma.done [#allocation12], 2560
    $region105: #{_lenet_forward.1} parent=1 // pred_fallthru
      _
    // Predicated region
    $region106: #{_lenet_forward.1} parent=1 // pred_check
      _
    $region107: #{_lenet_forward.1} parent=1 // pred_check_branch
      %168 = sbr.rel (0) target = $region109
    $region108: #{_lenet_forward.1} parent=1 // pred_region
      %169 = dma.done [#allocation15], 16
    $region109: #{_lenet_forward.1} parent=1 // pred_fallthru
      _
    // Predicated region
    $region110: #{_lenet_forward.1} parent=1 // pred_check
      _
    $region111: #{_lenet_forward.1} parent=1 // pred_check_branch
      %171 = sbr.rel (0) target = $region113
    $region112: #{_lenet_forward.1} parent=1 // pred_region
      %172 = dma.done [#allocation15], 16
    $region113: #{_lenet_forward.1} parent=1 // pred_fallthru
      _
    %v174 = vld [vmem:[%s0] sm:$0xff]
    %v175 = vld [vmem:[%s0 + $0x8] sm:$0xff]
    %v176 = vld [vmem:[%s0 + $0x10] sm:$0xff]
    %v177 = vld [vmem:[%s0 + $0x18] sm:$0xff]
    %v178 = vld [vmem:[%s1] sm:$0xff]
    %v179 = vld [vmem:[%s1 + $0x8] sm:$0xff]
    %v180 = vld [vmem:[%s1 + $0x10] sm:$0xff]
    %v181 = vld [vmem:[%s1 + $0x18] sm:$0xff]
    %v182 = vpack.c.bf16 %v175, %v174
    %v183 = vpack.c.bf16 %v177, %v176
    %s184 = scalar_lea.vmem %s1, 32
    %v185 = vld [vmem:[%s184] sm:$0xff]
    %v186 = vld [vmem:[%s184 + $0x8] sm:$0xff]
    %v187 = vld [vmem:[%s184 + $0x10] sm:$0xff]
    %v188 = vld [vmem:[%s184 + $0x18] sm:$0xff]
    %vm189 = vsmask.f32 7424
    %v191 = vshrl.u32 %v182, 16
    %v193 = vshll.u32 %v182, 16
    %v195 = vrot.slane %v193, 1
    %v196 = vor.u32 %v191, %v195
    %v198 = vshll.u32 %v183, 16
    %v200 = vrot.slane %v198, 1
    %v201 = vsel %vm189, %v196, %v200
    %v202 = vshrl.u32 %v183, 16
    %v204 = vor.u32 %v202, %v200
    %v209 = vunpack.c.l.b16 %v185
    %v210 = vunpack.c.h.b16 %v185
    %v211 = vunpack.c.l.b16 %v186
    %v212 = vunpack.c.h.b16 %v186
    %v213 = vunpack.c.l.b16 %v187
    %v214 = vunpack.c.h.b16 %v187
    %v215 = vunpack.c.l.b16 %v188
    %v216 = vunpack.c.h.b16 %v188
    %v217 = vpack.c.b16 %v211, %v209
    %v218 = vpack.c.b16 %v212, %v210
    %v219 = vpack.c.b16 %v215, %v213
    %v220 = vpack.c.b16 %v216, %v214
    %vm225 = vcmask 261120
    %v227 = vsel %vm225, %v201, 0
    %v230 = vsel %vm225, %v204, 0
    %232 = vmatprep.subr.bf16.mxu0 0
    %233 = vmatpush1.bf16.msra.mxu0 0
    %234 = vmatprep.subr.bf16.mxu0 0
    %235 = vmatpush1.bf16.msra.mxu0 0
    %236 = vmatprep.subr.bf16.mxu0 0
    %237 = vmatpush1.bf16.msra.mxu0 0
    %238 = vmatprep.subr.bf16.mxu0 0
    %239 = vmatpush1.bf16.msra.mxu0 0
    %240 = vmatprep.subr.bf16.mxu0 0
    %241 = vmatpush1.bf16.msra.mxu0 0
    %242 = vmatprep.subr.bf16.mxu0 0
    %243 = vmatpush1.bf16.msra.mxu0 0
    %244 = vmatprep.subr.bf16.mxu0 %v220
    %245 = vmatpush1.bf16.msra.mxu0 %v219
    %246 = vmatprep.subr.bf16.mxu0 %v218
    %247 = vmatpush1.bf16.msra.mxu0 %v217
    %248 = vmatprep.subr.bf16.mxu0 0
    %249 = vmatpush2.bf16.msra.mxu0 0
    %250 = vmatprep.subr.bf16.mxu0 0
    %251 = vmatpush2.bf16.msra.mxu0 0
    %252 = vmatprep.subr.bf16.mxu0 0
    %253 = vmatpush2.bf16.msra.mxu0 0
    %254 = vmatprep.subr.bf16.mxu0 0
    %255 = vmatpush2.bf16.msra.mxu0 0
    %256 = vmatprep.subr.bf16.mxu0 0
    %257 = vmatpush2.bf16.msra.mxu0 0
    %258 = vmatprep.subr.bf16.mxu0 0
    %259 = vmatpush2.bf16.msra.mxu0 0
    %260 = vmatprep.subr.bf16.mxu0 0
    %261 = vmatpush2.bf16.msra.mxu0 0
    %262 = vmatprep.subr.bf16.mxu0 0
    %263 = vmatpush2.bf16.msra.mxu0 0
    %264 = vmatprep.mubr.bf16.mxu0 0
    %265 = vmatmul.mubr.bf16.gmra.mxu0 %v227
    %v266 = vpop.f32.mrf.mxu0
    %v267 = vadd.f32 0.0, %v266
    %v268 = vpop.f32.mrf.mxu0
    %v269 = vadd.f32 0.0, %v268
    %v270 = vpop.f32.mrf.mxu0
    %v271 = vadd.f32 0.0, %v270
    %v272 = vpop.f32.mrf.mxu0
    %v273 = vadd.f32 0.0, %v272
    %274 = vmatprep.mubr.bf16.mxu0 0
    %275 = vmatmul.mubr.bf16.gmra.mxu0 %v230
    %v276 = vpop.f32.mrf.mxu0
    %v277 = vadd.f32 0.0, %v276
    %v278 = vpop.f32.mrf.mxu0
    %v279 = vadd.f32 0.0, %v278
    %v280 = vpop.f32.mrf.mxu0
    %v281 = vadd.f32 0.0, %v280
    %v282 = vpop.f32.mrf.mxu0
    %v283 = vadd.f32 0.0, %v282
    %284 = vdwg.mxu0
    %v289 = vunpack.c.l.b16 %v178
    %v290 = vunpack.c.h.b16 %v178
    %v291 = vunpack.c.l.b16 %v179
    %v292 = vunpack.c.h.b16 %v179
    %v293 = vunpack.c.l.b16 %v180
    %v294 = vunpack.c.h.b16 %v180
    %v295 = vunpack.c.l.b16 %v181
    %v296 = vunpack.c.h.b16 %v181
    %v297 = vpack.c.b16 %v291, %v289
    %v298 = vpack.c.b16 %v292, %v290
    %v299 = vpack.c.b16 %v295, %v293
    %v300 = vpack.c.b16 %v296, %v294
    %v305 = vsel %vm225, %v182, 0
    %v307 = vsel %vm225, %v183, 0
    %309 = vmatprep.subr.bf16.mxu0 0
    %310 = vmatpush1.bf16.msra.mxu0 0
    %311 = vmatprep.subr.bf16.mxu0 0
    %312 = vmatpush1.bf16.msra.mxu0 0
    %313 = vmatprep.subr.bf16.mxu0 0
    %314 = vmatpush1.bf16.msra.mxu0 0
    %315 = vmatprep.subr.bf16.mxu0 0
    %316 = vmatpush1.bf16.msra.mxu0 0
    %317 = vmatprep.subr.bf16.mxu0 0
    %318 = vmatpush1.bf16.msra.mxu0 0
    %319 = vmatprep.subr.bf16.mxu0 0
    %320 = vmatpush1.bf16.msra.mxu0 0
    %321 = vmatprep.subr.bf16.mxu0 %v300
    %322 = vmatpush1.bf16.msra.mxu0 %v299
    %323 = vmatprep.subr.bf16.mxu0 %v298
    %324 = vmatpush1.bf16.msra.mxu0 %v297
    %325 = vmatprep.subr.bf16.mxu0 0
    %326 = vmatpush2.bf16.msra.mxu0 0
    %327 = vmatprep.subr.bf16.mxu0 0
    %328 = vmatpush2.bf16.msra.mxu0 0
    %329 = vmatprep.subr.bf16.mxu0 0
    %330 = vmatpush2.bf16.msra.mxu0 0
    %331 = vmatprep.subr.bf16.mxu0 0
    %332 = vmatpush2.bf16.msra.mxu0 0
    %333 = vmatprep.subr.bf16.mxu0 0
    %334 = vmatpush2.bf16.msra.mxu0 0
    %335 = vmatprep.subr.bf16.mxu0 0
    %336 = vmatpush2.bf16.msra.mxu0 0
    %337 = vmatprep.subr.bf16.mxu0 0
    %338 = vmatpush2.bf16.msra.mxu0 0
    %339 = vmatprep.subr.bf16.mxu0 0
    %340 = vmatpush2.bf16.msra.mxu0 0
    %341 = vmatprep.mubr.bf16.mxu0 0
    %342 = vmatmul.mubr.bf16.gmra.mxu0 %v305
    %v343 = vpop.f32.mrf.mxu0
    %v344 = vadd.f32 %v267, %v343
    %v345 = vpop.f32.mrf.mxu0
    %v346 = vadd.f32 %v269, %v345
    %v347 = vpop.f32.mrf.mxu0
    %v348 = vadd.f32 %v271, %v347
    %v349 = vpop.f32.mrf.mxu0
    %v350 = vadd.f32 %v273, %v349
    %351 = vmatprep.mubr.bf16.mxu0 0
    %352 = vmatmul.mubr.bf16.gmra.mxu0 %v307
    %v353 = vpop.f32.mrf.mxu0
    %v354 = vadd.f32 %v277, %v353
    %v355 = vpop.f32.mrf.mxu0
    %v356 = vadd.f32 %v279, %v355
    %v357 = vpop.f32.mrf.mxu0
    %v358 = vadd.f32 %v281, %v357
    %v359 = vpop.f32.mrf.mxu0
    %v360 = vadd.f32 %v283, %v359
    %361 = vdwg.mxu0
    %s362 = scalar_lea.vmem %s1, 64
    %v363 = vld [vmem:[%s362] sm:$0xff]
    %v364 = vld [vmem:[%s362 + $0x8] sm:$0xff]
    %v365 = vld [vmem:[%s362 + $0x10] sm:$0xff]
    %v366 = vld [vmem:[%s362 + $0x18] sm:$0xff]
    %vm369 = vcmask 1046528
    %v370 = vrot.slane %v182, 1
    %v371 = vrot.slane %v183, 1
    %v372 = vsel %vm369, %v370, %v371
    %v377 = vunpack.c.l.b16 %v363
    %v378 = vunpack.c.h.b16 %v363
    %v379 = vunpack.c.l.b16 %v364
    %v380 = vunpack.c.h.b16 %v364
    %v381 = vunpack.c.l.b16 %v365
    %v382 = vunpack.c.h.b16 %v365
    %v383 = vunpack.c.l.b16 %v366
    %v384 = vunpack.c.h.b16 %v366
    %v385 = vpack.c.b16 %v379, %v377
    %v386 = vpack.c.b16 %v380, %v378
    %v387 = vpack.c.b16 %v383, %v381
    %v388 = vpack.c.b16 %v384, %v382
    %v394 = vsel %vm225, %v372, 0
    %v397 = vsel %vm225, %v371, 0
    %399 = vmatprep.subr.bf16.mxu0 0
    %400 = vmatpush1.bf16.msra.mxu0 0
    %401 = vmatprep.subr.bf16.mxu0 0
    %402 = vmatpush1.bf16.msra.mxu0 0
    %403 = vmatprep.subr.bf16.mxu0 0
    %404 = vmatpush1.bf16.msra.mxu0 0
    %405 = vmatprep.subr.bf16.mxu0 0
    %406 = vmatpush1.bf16.msra.mxu0 0
    %407 = vmatprep.subr.bf16.mxu0 0
    %408 = vmatpush1.bf16.msra.mxu0 0
    %409 = vmatprep.subr.bf16.mxu0 0
    %410 = vmatpush1.bf16.msra.mxu0 0
    %411 = vmatprep.subr.bf16.mxu0 %v388
    %412 = vmatpush1.bf16.msra.mxu0 %v387
    %413 = vmatprep.subr.bf16.mxu0 %v386
    %414 = vmatpush1.bf16.msra.mxu0 %v385
    %415 = vmatprep.subr.bf16.mxu0 0
    %416 = vmatpush2.bf16.msra.mxu0 0
    %417 = vmatprep.subr.bf16.mxu0 0
    %418 = vmatpush2.bf16.msra.mxu0 0
    %419 = vmatprep.subr.bf16.mxu0 0
    %420 = vmatpush2.bf16.msra.mxu0 0
    %421 = vmatprep.subr.bf16.mxu0 0
    %422 = vmatpush2.bf16.msra.mxu0 0
    %423 = vmatprep.subr.bf16.mxu0 0
    %424 = vmatpush2.bf16.msra.mxu0 0
    %425 = vmatprep.subr.bf16.mxu0 0
    %426 = vmatpush2.bf16.msra.mxu0 0
    %427 = vmatprep.subr.bf16.mxu0 0
    %428 = vmatpush2.bf16.msra.mxu0 0
    %429 = vmatprep.subr.bf16.mxu0 0
    %430 = vmatpush2.bf16.msra.mxu0 0
    %431 = vmatprep.mubr.bf16.mxu0 0
    %432 = vmatmul.mubr.bf16.gmra.mxu0 %v394
    %v433 = vpop.f32.mrf.mxu0
    %v434 = vadd.f32 0.0, %v433
    %v435 = vpop.f32.mrf.mxu0
    %v436 = vadd.f32 0.0, %v435
    %v437 = vpop.f32.mrf.mxu0
    %v438 = vadd.f32 0.0, %v437
    %v439 = vpop.f32.mrf.mxu0
    %v440 = vadd.f32 0.0, %v439
    %441 = vmatprep.mubr.bf16.mxu0 0
    %442 = vmatmul.mubr.bf16.gmra.mxu0 %v397
    %v443 = vpop.f32.mrf.mxu0
    %v444 = vadd.f32 0.0, %v443
    %v445 = vpop.f32.mrf.mxu0
    %v446 = vadd.f32 0.0, %v445
    %v447 = vpop.f32.mrf.mxu0
    %v448 = vadd.f32 0.0, %v447
    %v449 = vpop.f32.mrf.mxu0
    %v450 = vadd.f32 0.0, %v449
    %451 = vdwg.mxu0
    %v452 = vadd.f32 %v344, %v434
    %v453 = vadd.f32 %v346, %v436
    %v454 = vadd.f32 %v348, %v438
    %v455 = vadd.f32 %v350, %v440
    %v456 = vadd.f32 %v354, %v444
    %v457 = vadd.f32 %v356, %v446
    %v458 = vadd.f32 %v358, %v448
    %v459 = vadd.f32 %v360, %v450
    %s460 = scalar_lea.vmem %s1, 96
    %v461 = vld [vmem:[%s460] sm:$0xff]
    %v462 = vld [vmem:[%s460 + $0x8] sm:$0xff]
    %v463 = vld [vmem:[%s460 + $0x10] sm:$0xff]
    %v464 = vld [vmem:[%s460 + $0x18] sm:$0xff]
    %vm465 = vsmask.f32 6400
    %v466 = vrot.slane %v191, 1
    %v467 = vrot.slane %v193, 2
    %v468 = vor.u32 %v466, %v467
    %v469 = vrot.slane %v202, 1
    %v470 = vrot.slane %v198, 2
    %v471 = vor.u32 %v469, %v470
    %v472 = vsel %vm465, %v468, %v471
    %v477 = vunpack.c.l.b16 %v461
    %v478 = vunpack.c.h.b16 %v461
    %v479 = vunpack.c.l.b16 %v462
    %v480 = vunpack.c.h.b16 %v462
    %v481 = vunpack.c.l.b16 %v463
    %v482 = vunpack.c.h.b16 %v463
    %v483 = vunpack.c.l.b16 %v464
    %v484 = vunpack.c.h.b16 %v464
    %v485 = vpack.c.b16 %v479, %v477
    %v486 = vpack.c.b16 %v480, %v478
    %v487 = vpack.c.b16 %v483, %v481
    %v488 = vpack.c.b16 %v484, %v482
    %v494 = vsel %vm225, %v472, 0
    %v497 = vsel %vm225, %v471, 0
    %499 = vmatprep.subr.bf16.mxu0 0
    %500 = vmatpush1.bf16.msra.mxu0 0
    %501 = vmatprep.subr.bf16.mxu0 0
    %502 = vmatpush1.bf16.msra.mxu0 0
    %503 = vmatprep.subr.bf16.mxu0 0
    %504 = vmatpush1.bf16.msra.mxu0 0
    %505 = vmatprep.subr.bf16.mxu0 0
    %506 = vmatpush1.bf16.msra.mxu0 0
    %507 = vmatprep.subr.bf16.mxu0 0
    %508 = vmatpush1.bf16.msra.mxu0 0
    %509 = vmatprep.subr.bf16.mxu0 0
    %510 = vmatpush1.bf16.msra.mxu0 0
    %511 = vmatprep.subr.bf16.mxu0 %v488
    %512 = vmatpush1.bf16.msra.mxu0 %v487
    %513 = vmatprep.subr.bf16.mxu0 %v486
    %514 = vmatpush1.bf16.msra.mxu0 %v485
    %515 = vmatprep.subr.bf16.mxu0 0
    %516 = vmatpush2.bf16.msra.mxu0 0
    %517 = vmatprep.subr.bf16.mxu0 0
    %518 = vmatpush2.bf16.msra.mxu0 0
    %519 = vmatprep.subr.bf16.mxu0 0
    %520 = vmatpush2.bf16.msra.mxu0 0
    %521 = vmatprep.subr.bf16.mxu0 0
    %522 = vmatpush2.bf16.msra.mxu0 0
    %523 = vmatprep.subr.bf16.mxu0 0
    %524 = vmatpush2.bf16.msra.mxu0 0
    %525 = vmatprep.subr.bf16.mxu0 0
    %526 = vmatpush2.bf16.msra.mxu0 0
    %527 = vmatprep.subr.bf16.mxu0 0
    %528 = vmatpush2.bf16.msra.mxu0 0
    %529 = vmatprep.subr.bf16.mxu0 0
    %530 = vmatpush2.bf16.msra.mxu0 0
    %531 = vmatprep.mubr.bf16.mxu0 0
    %532 = vmatmul.mubr.bf16.gmra.mxu0 %v494
    %v533 = vpop.f32.mrf.mxu0
    %v534 = vadd.f32 0.0, %v533
    %v535 = vpop.f32.mrf.mxu0
    %v536 = vadd.f32 0.0, %v535
    %v537 = vpop.f32.mrf.mxu0
    %v538 = vadd.f32 0.0, %v537
    %v539 = vpop.f32.mrf.mxu0
    %v540 = vadd.f32 0.0, %v539
    %541 = vmatprep.mubr.bf16.mxu0 0
    %542 = vmatmul.mubr.bf16.gmra.mxu0 %v497
    %v543 = vpop.f32.mrf.mxu0
    %v544 = vadd.f32 0.0, %v543
    %v545 = vpop.f32.mrf.mxu0
    %v546 = vadd.f32 0.0, %v545
    %v547 = vpop.f32.mrf.mxu0
    %v548 = vadd.f32 0.0, %v547
    %v549 = vpop.f32.mrf.mxu0
    %v550 = vadd.f32 0.0, %v549
    %551 = vdwg.mxu0
    %v552 = vadd.f32 %v452, %v534
    %v553 = vadd.f32 %v453, %v536
    %v554 = vadd.f32 %v454, %v538
    %v555 = vadd.f32 %v455, %v540
    %v556 = vadd.f32 %v456, %v544
    %v557 = vadd.f32 %v457, %v546
    %v558 = vadd.f32 %v458, %v548
    %v559 = vadd.f32 %v459, %v550
    %s560 = scalar_lea.vmem %s1, 128
    %v561 = vld [vmem:[%s560] sm:$0xff]
    %v562 = vld [vmem:[%s560 + $0x8] sm:$0xff]
    %v563 = vld [vmem:[%s560 + $0x10] sm:$0xff]
    %v564 = vld [vmem:[%s560 + $0x18] sm:$0xff]
    %vm565 = vcmask 1045504
    %v566 = vrot.slane %v182, 2
    %v567 = vrot.slane %v183, 2
    %v568 = vsel %vm565, %v566, %v567
    %v573 = vunpack.c.l.b16 %v561
    %v574 = vunpack.c.h.b16 %v561
    %v575 = vunpack.c.l.b16 %v562
    %v576 = vunpack.c.h.b16 %v562
    %v577 = vunpack.c.l.b16 %v563
    %v578 = vunpack.c.h.b16 %v563
    %v579 = vunpack.c.l.b16 %v564
    %v580 = vunpack.c.h.b16 %v564
    %v581 = vpack.c.b16 %v575, %v573
    %v582 = vpack.c.b16 %v576, %v574
    %v583 = vpack.c.b16 %v579, %v577
    %v584 = vpack.c.b16 %v580, %v578
    %v590 = vsel %vm225, %v568, 0
    %v593 = vsel %vm225, %v567, 0
    %595 = vmatprep.subr.bf16.mxu0 0
    %596 = vmatpush1.bf16.msra.mxu0 0
    %597 = vmatprep.subr.bf16.mxu0 0
    %598 = vmatpush1.bf16.msra.mxu0 0
    %599 = vmatprep.subr.bf16.mxu0 0
    %600 = vmatpush1.bf16.msra.mxu0 0
    %601 = vmatprep.subr.bf16.mxu0 0
    %602 = vmatpush1.bf16.msra.mxu0 0
    %603 = vmatprep.subr.bf16.mxu0 0
    %604 = vmatpush1.bf16.msra.mxu0 0
    %605 = vmatprep.subr.bf16.mxu0 0
    %606 = vmatpush1.bf16.msra.mxu0 0
    %607 = vmatprep.subr.bf16.mxu0 %v584
    %608 = vmatpush1.bf16.msra.mxu0 %v583
    %609 = vmatprep.subr.bf16.mxu0 %v582
    %610 = vmatpush1.bf16.msra.mxu0 %v581
    %611 = vmatprep.subr.bf16.mxu0 0
    %612 = vmatpush2.bf16.msra.mxu0 0
    %613 = vmatprep.subr.bf16.mxu0 0
    %614 = vmatpush2.bf16.msra.mxu0 0
    %615 = vmatprep.subr.bf16.mxu0 0
    %616 = vmatpush2.bf16.msra.mxu0 0
    %617 = vmatprep.subr.bf16.mxu0 0
    %618 = vmatpush2.bf16.msra.mxu0 0
    %619 = vmatprep.subr.bf16.mxu0 0
    %620 = vmatpush2.bf16.msra.mxu0 0
    %621 = vmatprep.subr.bf16.mxu0 0
    %622 = vmatpush2.bf16.msra.mxu0 0
    %623 = vmatprep.subr.bf16.mxu0 0
    %624 = vmatpush2.bf16.msra.mxu0 0
    %625 = vmatprep.subr.bf16.mxu0 0
    %626 = vmatpush2.bf16.msra.mxu0 0
    %627 = vmatprep.mubr.bf16.mxu0 0
    %628 = vmatmul.mubr.bf16.gmra.mxu0 %v590
    %v629 = vpop.f32.mrf.mxu0
    %v630 = vadd.f32 0.0, %v629
    %v631 = vpop.f32.mrf.mxu0
    %v632 = vadd.f32 0.0, %v631
    %v633 = vpop.f32.mrf.mxu0
    %v634 = vadd.f32 0.0, %v633
    %v635 = vpop.f32.mrf.mxu0
    %v636 = vadd.f32 0.0, %v635
    %637 = vmatprep.mubr.bf16.mxu0 0
    %638 = vmatmul.mubr.bf16.gmra.mxu0 %v593
    %v639 = vpop.f32.mrf.mxu0
    %v640 = vadd.f32 0.0, %v639
    %v641 = vpop.f32.mrf.mxu0
    %v642 = vadd.f32 0.0, %v641
    %v643 = vpop.f32.mrf.mxu0
    %v644 = vadd.f32 0.0, %v643
    %v645 = vpop.f32.mrf.mxu0
    %v646 = vadd.f32 0.0, %v645
    %647 = vdwg.mxu0
    %v648 = vadd.f32 %v552, %v630
    %v649 = vadd.f32 %v553, %v632
    %v650 = vadd.f32 %v554, %v634
    %v651 = vadd.f32 %v555, %v636
    %v652 = vadd.f32 %v556, %v640
    %v653 = vadd.f32 %v557, %v642
    %v654 = vadd.f32 %v558, %v644
    %v655 = vadd.f32 %v559, %v646
    %v656 = vld [vmem:[#allocation2] sm:$0x3]
    %v658 = vlaneseq
    %v659 = vshrl.u32 %v658, 7
    %v660 = vsub.s32 0, %v659
    %v661 = vrot.slane %v656, %v660
    %v662 = vlaneseq
    %v663 = vshrl.u32 %v662, 7
    %v664 = vsub.s32 1, %v663
    %v665 = vrot.slane %v656, %v664
    %v668 = vadd.f32 %v648, %v661
    %v669 = vadd.f32 %v649, %v665
    %v670 = vadd.f32 %v650, %v661
    %v671 = vadd.f32 %v651, %v665
    %v672 = vadd.f32 %v652, %v661
    %v673 = vadd.f32 %v653, %v665
    %v674 = vadd.f32 %v654, %v661
    %v675 = vadd.f32 %v655, %v665
    %v676 = vmax.f32 %v668, 0.0
    %v677 = vmax.f32 %v669, 0.0
    %v678 = vmax.f32 %v670, 0.0
    %v679 = vmax.f32 %v671, 0.0
    %v680 = vmax.f32 %v672, 0.0
    %v681 = vmax.f32 %v673, 0.0
    %v682 = vmax.f32 %v674, 0.0
    %v683 = vmax.f32 %v675, 0.0
    %v684 = vld [vmem:[#allocation5] sm:$0xff]
    %v685 = vld [vmem:[#allocation5 + $0x8] sm:$0x3f]
    %vm686 = vcmask 228352
    %v688 = vsel %vm686, %v684, 0
    %v691 = vsel %vm686, %v685, 0
    %vm693 = vcmask 1043456
    %v695 = vsel %vm693, %v682, 0
    %v698 = vsel %vm693, %v683, 0
    %700 = vmatprep.subr.mxu0 0.0
    %701 = vmatpush1.msra.mxu0 0.0
    %702 = vmatprep.subr.mxu0 0.0
    %703 = vmatpush1.msra.mxu0 0.0
    %704 = vmatprep.subr.mxu0 0.0
    %705 = vmatpush1.msra.mxu0 0.0
    %706 = vmatprep.subr.mxu0 0.0
    %707 = vmatpush1.msra.mxu0 0.0
    %708 = vmatprep.subr.mxu0 0.0
    %709 = vmatpush1.msra.mxu0 0.0
    %710 = vmatprep.subr.mxu0 0.0
    %711 = vmatpush1.msra.mxu0 0.0
    %712 = vmatprep.subr.mxu0 0.0
    %713 = vmatpush1.msra.mxu0 0.0
    %714 = vmatprep.subr.mxu0 0.0
    %715 = vmatpush1.msra.mxu0 0.0
    %716 = vmatprep.subr.mxu0 0.0
    %717 = vmatpush1.msra.mxu0 0.0
    %718 = vmatprep.subr.mxu0 0.0
    %719 = vmatpush1.msra.mxu0 0.0
    %720 = vmatprep.subr.mxu0 0.0
    %721 = vmatpush1.msra.mxu0 0.0
    %722 = vmatprep.subr.mxu0 0.0
    %723 = vmatpush1.msra.mxu0 0.0
    %724 = vmatprep.subr.mxu0 %v698
    %725 = vmatpush1.msra.mxu0 %v695
    %726 = vmatprep.subr.mxu0 %v681
    %727 = vmatpush1.msra.mxu0 %v680
    %728 = vmatprep.subr.mxu0 %v679
    %729 = vmatpush1.msra.mxu0 %v678
    %730 = vmatprep.subr.mxu0 %v677
    %731 = vmatpush1.msra.mxu0 %v676
    %732 = vmatprep.subr.mxu0 0.0
    %733 = vmatpush2.msra.mxu0 0.0
    %734 = vmatprep.subr.mxu0 0.0
    %735 = vmatpush2.msra.mxu0 0.0
    %736 = vmatprep.subr.mxu0 0.0
    %737 = vmatpush2.msra.mxu0 0.0
    %738 = vmatprep.subr.mxu0 0.0
    %739 = vmatpush2.msra.mxu0 0.0
    %740 = vmatprep.subr.mxu0 0.0
    %741 = vmatpush2.msra.mxu0 0.0
    %742 = vmatprep.subr.mxu0 0.0
    %743 = vmatpush2.msra.mxu0 0.0
    %744 = vmatprep.subr.mxu0 0.0
    %745 = vmatpush2.msra.mxu0 0.0
    %746 = vmatprep.subr.mxu0 0.0
    %747 = vmatpush2.msra.mxu0 0.0
    %748 = vmatprep.subr.mxu0 0.0
    %749 = vmatpush2.msra.mxu0 0.0
    %750 = vmatprep.subr.mxu0 0.0
    %751 = vmatpush2.msra.mxu0 0.0
    %752 = vmatprep.subr.mxu0 0.0
    %753 = vmatpush2.msra.mxu0 0.0
    %754 = vmatprep.subr.mxu0 0.0
    %755 = vmatpush2.msra.mxu0 0.0
    %756 = vmatprep.subr.mxu0 0.0
    %757 = vmatpush2.msra.mxu0 0.0
    %758 = vmatprep.subr.mxu0 0.0
    %759 = vmatpush2.msra.mxu0 0.0
    %760 = vmatprep.subr.mxu0 0.0
    %761 = vmatpush2.msra.mxu0 0.0
    %762 = vmatprep.subr.mxu0 0.0
    %763 = vmatpush2.msra.mxu0 0.0
    %764 = vmatprep.mubr.f32.mxu0 0.0
    %765 = vmatmul.mubr.f32.gmra.mxu0 %v688
    %v766 = vpop.f32.mrf.mxu0
    %v767 = vadd.f32 0.0, %v766
    %v768 = vpop.f32.mrf.mxu0
    %v769 = vadd.f32 0.0, %v768
    %770 = vmatprep.mubr.f32.mxu0 0.0
    %771 = vmatmul.mubr.f32.gmra.mxu0 %v691
    %v772 = vpop.f32.mrf.mxu0
    %v773 = vadd.f32 0.0, %v772
    %v774 = vpop.f32.mrf.mxu0
    %v775 = vadd.f32 0.0, %v774
    %776 = vdwg.mxu0
    %v777 = vld [vmem:[#allocation7] sm:$0xff]
    %v778 = vld [vmem:[#allocation7 + $0x8] sm:$0x3f]
    %v780 = vsel %vm686, %v777, 0
    %v783 = vsel %vm686, %v778, 0
    %785 = vmatprep.subr.mxu0 0.0
    %786 = vmatpush1.msra.mxu0 0.0
    %787 = vmatprep.subr.mxu0 0.0
    %788 = vmatpush1.msra.mxu0 0.0
    %789 = vmatprep.subr.mxu0 0.0
    %790 = vmatpush1.msra.mxu0 0.0
    %791 = vmatprep.subr.mxu0 0.0
    %792 = vmatpush1.msra.mxu0 0.0
    %793 = vmatprep.subr.mxu0 0.0
    %794 = vmatpush1.msra.mxu0 0.0
    %795 = vmatprep.subr.mxu0 0.0
    %796 = vmatpush1.msra.mxu0 0.0
    %797 = vmatprep.subr.mxu0 0.0
    %798 = vmatpush1.msra.mxu0 0.0
    %799 = vmatprep.subr.mxu0 0.0
    %800 = vmatpush1.msra.mxu0 0.0
    %801 = vmatprep.subr.mxu0 0.0
    %802 = vmatpush1.msra.mxu0 0.0
    %803 = vmatprep.subr.mxu0 0.0
    %804 = vmatpush1.msra.mxu0 0.0
    %805 = vmatprep.subr.mxu0 0.0
    %806 = vmatpush1.msra.mxu0 0.0
    %807 = vmatprep.subr.mxu0 0.0
    %808 = vmatpush1.msra.mxu0 0.0
    %809 = vmatprep.subr.mxu0 %v698
    %810 = vmatpush1.msra.mxu0 %v695
    %811 = vmatprep.subr.mxu0 %v681
    %812 = vmatpush1.msra.mxu0 %v680
    %813 = vmatprep.subr.mxu0 %v679
    %814 = vmatpush1.msra.mxu0 %v678
    %815 = vmatprep.subr.mxu0 %v677
    %816 = vmatpush1.msra.mxu0 %v676
    %817 = vmatprep.subr.mxu0 0.0
    %818 = vmatpush2.msra.mxu0 0.0
    %819 = vmatprep.subr.mxu0 0.0
    %820 = vmatpush2.msra.mxu0 0.0
    %821 = vmatprep.subr.mxu0 0.0
    %822 = vmatpush2.msra.mxu0 0.0
    %823 = vmatprep.subr.mxu0 0.0
    %824 = vmatpush2.msra.mxu0 0.0
    %825 = vmatprep.subr.mxu0 0.0
    %826 = vmatpush2.msra.mxu0 0.0
    %827 = vmatprep.subr.mxu0 0.0
    %828 = vmatpush2.msra.mxu0 0.0
    %829 = vmatprep.subr.mxu0 0.0
    %830 = vmatpush2.msra.mxu0 0.0
    %831 = vmatprep.subr.mxu0 0.0
    %832 = vmatpush2.msra.mxu0 0.0
    %833 = vmatprep.subr.mxu0 0.0
    %834 = vmatpush2.msra.mxu0 0.0
    %835 = vmatprep.subr.mxu0 0.0
    %836 = vmatpush2.msra.mxu0 0.0
    %837 = vmatprep.subr.mxu0 0.0
    %838 = vmatpush2.msra.mxu0 0.0
    %839 = vmatprep.subr.mxu0 0.0
    %840 = vmatpush2.msra.mxu0 0.0
    %841 = vmatprep.subr.mxu0 0.0
    %842 = vmatpush2.msra.mxu0 0.0
    %843 = vmatprep.subr.mxu0 0.0
    %844 = vmatpush2.msra.mxu0 0.0
    %845 = vmatprep.subr.mxu0 0.0
    %846 = vmatpush2.msra.mxu0 0.0
    %847 = vmatprep.subr.mxu0 0.0
    %848 = vmatpush2.msra.mxu0 0.0
    %849 = vmatprep.mubr.f32.mxu0 0.0
    %850 = vmatmul.mubr.f32.gmra.mxu0 %v780
    %v851 = vpop.f32.mrf.mxu0
    %v852 = vadd.f32 0.0, %v851
    %v853 = vpop.f32.mrf.mxu0
    %v854 = vadd.f32 0.0, %v853
    %855 = vmatprep.mubr.f32.mxu0 0.0
    %856 = vmatmul.mubr.f32.gmra.mxu0 %v783
    %v857 = vpop.f32.mrf.mxu0
    %v858 = vadd.f32 0.0, %v857
    %v859 = vpop.f32.mrf.mxu0
    %v860 = vadd.f32 0.0, %v859
    %861 = vdwg.mxu0
    %v862 = vmax.f32 %v767, %v852
    %v863 = vmax.f32 %v769, %v854
    %v864 = vmax.f32 %v773, %v858
    %v865 = vmax.f32 %v775, %v860
    %v866 = vld [vmem:[%s5] sm:$0xff]
    %v867 = vld [vmem:[%s5 + $0x8] sm:$0xff]
    %v868 = vld [vmem:[%s5 + $0x10] sm:$0xff]
    %v869 = vld [vmem:[%s5 + $0x18] sm:$0xff]
    %v870 = vld [vmem:[%s5 + $0x20] sm:$0xff]
    %v871 = vld [vmem:[%s5 + $0x28] sm:$0xff]
    %v872 = vld [vmem:[%s5 + $0x30] sm:$0xff]
    %v873 = vld [vmem:[%s5 + $0x38] sm:$0xff]
    %v874 = vld [vmem:[%s5 + $0x40] sm:$0xff]
    %v875 = vld [vmem:[%s5 + $0x48] sm:$0xff]
    %v876 = vld [vmem:[%s5 + $0x50] sm:$0xff]
    %v877 = vld [vmem:[%s5 + $0x58] sm:$0xff]
    %v878 = vld [vmem:[%s5 + $0x60] sm:$0xff]
    %v879 = vld [vmem:[%s5 + $0x68] sm:$0xff]
    %v880 = vld [vmem:[%s5 + $0x70] sm:$0xff]
    %v881 = vld [vmem:[%s5 + $0x78] sm:$0xff]
    %v882 = vld [vmem:[%s5 + $0x80] sm:$0xff]
    %v883 = vld [vmem:[%s5 + $0x88] sm:$0xff]
    %v884 = vld [vmem:[%s5 + $0x90] sm:$0xff]
    %v885 = vld [vmem:[%s5 + $0x98] sm:$0xff]
    %v886 = vld [vmem:[%s5 + $0xa0] sm:$0xff]
    %vm887 = vcmask 326656
    %v889 = vsel %vm887, %v863, 0
    %v892 = vsel %vm887, %v865, 0
    %894 = vmatprep.subr.mxu0 0.0
    %895 = vmatpush1.msra.mxu0 %v881
    %896 = vmatprep.subr.mxu0 0.0
    %897 = vmatpush1.msra.mxu0 %v880
    %898 = vmatprep.subr.mxu0 0.0
    %899 = vmatpush1.msra.mxu0 %v879
    %900 = vmatprep.subr.mxu0 0.0
    %901 = vmatpush1.msra.mxu0 %v878
    %902 = vmatprep.subr.mxu0 0.0
    %903 = vmatpush1.msra.mxu0 %v877
    %904 = vmatprep.subr.mxu0 0.0
    %905 = vmatpush1.msra.mxu0 %v876
    %906 = vmatprep.subr.mxu0 0.0
    %907 = vmatpush1.msra.mxu0 %v875
    %908 = vmatprep.subr.mxu0 0.0
    %909 = vmatpush1.msra.mxu0 %v874
    %910 = vmatprep.subr.mxu0 0.0
    %911 = vmatpush1.msra.mxu0 %v873
    %912 = vmatprep.subr.mxu0 0.0
    %913 = vmatpush1.msra.mxu0 %v872
    %914 = vmatprep.subr.mxu0 0.0
    %915 = vmatpush1.msra.mxu0 %v871
    %916 = vmatprep.subr.mxu0 0.0
    %917 = vmatpush1.msra.mxu0 %v870
    %918 = vmatprep.subr.mxu0 0.0
    %919 = vmatpush1.msra.mxu0 %v869
    %920 = vmatprep.subr.mxu0 0.0
    %921 = vmatpush1.msra.mxu0 %v868
    %922 = vmatprep.subr.mxu0 0.0
    %923 = vmatpush1.msra.mxu0 %v867
    %924 = vmatprep.subr.mxu0 0.0
    %925 = vmatpush1.msra.mxu0 %v866
    %926 = vmatprep.subr.mxu0 0.0
    %927 = vmatpush2.msra.mxu0 0.0
    %928 = vmatprep.subr.mxu0 0.0
    %929 = vmatpush2.msra.mxu0 0.0
    %930 = vmatprep.subr.mxu0 0.0
    %931 = vmatpush2.msra.mxu0 0.0
    %932 = vmatprep.subr.mxu0 0.0
    %933 = vmatpush2.msra.mxu0 0.0
    %934 = vmatprep.subr.mxu0 0.0
    %935 = vmatpush2.msra.mxu0 0.0
    %936 = vmatprep.subr.mxu0 0.0
    %937 = vmatpush2.msra.mxu0 0.0
    %938 = vmatprep.subr.mxu0 0.0
    %939 = vmatpush2.msra.mxu0 0.0
    %940 = vmatprep.subr.mxu0 0.0
    %941 = vmatpush2.msra.mxu0 0.0
    %942 = vmatprep.subr.mxu0 0.0
    %943 = vmatpush2.msra.mxu0 0.0
    %944 = vmatprep.subr.mxu0 0.0
    %945 = vmatpush2.msra.mxu0 0.0
    %946 = vmatprep.subr.mxu0 0.0
    %947 = vmatpush2.msra.mxu0 0.0
    %948 = vmatprep.subr.mxu0 0.0
    %949 = vmatpush2.msra.mxu0 %v886
    %950 = vmatprep.subr.mxu0 0.0
    %951 = vmatpush2.msra.mxu0 %v885
    %952 = vmatprep.subr.mxu0 0.0
    %953 = vmatpush2.msra.mxu0 %v884
    %954 = vmatprep.subr.mxu0 0.0
    %955 = vmatpush2.msra.mxu0 %v883
    %956 = vmatprep.subr.mxu0 0.0
    %957 = vmatpush2.msra.mxu0 %v882
    %958 = vmatprep.mubr.f32.mxu0 %v889
    %959 = vmatmul.mubr.f32.gmra.mxu0 %v862
    %v960 = vpop.f32.mrf.mxu0
    %v961 = vadd.f32 0.0, %v960
    %v962 = vpop.f32.mrf.mxu0
    %963 = vmatprep.mubr.f32.mxu0 %v892
    %964 = vmatmul.mubr.f32.gmra.mxu0 %v864
    %v965 = vpop.f32.mrf.mxu0
    %v966 = vadd.f32 0.0, %v965
    %v967 = vpop.f32.mrf.mxu0
    %968 = vdwg.mxu0
    %v969 = vld [vmem:[%s6] sm:$0xff]
    %v970 = vld [vmem:[%s6 + $0x8] sm:$0xff]
    %v971 = vld [vmem:[%s6 + $0x10] sm:$0xff]
    %v972 = vld [vmem:[%s6 + $0x18] sm:$0xff]
    %v973 = vld [vmem:[%s6 + $0x20] sm:$0xff]
    %v974 = vld [vmem:[%s6 + $0x28] sm:$0xff]
    %v975 = vld [vmem:[%s6 + $0x30] sm:$0xff]
    %v976 = vld [vmem:[%s6 + $0x38] sm:$0xff]
    %v977 = vld [vmem:[%s6 + $0x40] sm:$0xff]
    %v978 = vld [vmem:[%s6 + $0x48] sm:$0xff]
    %v979 = vld [vmem:[%s6 + $0x50] sm:$0xff]
    %v980 = vld [vmem:[%s6 + $0x58] sm:$0xff]
    %v981 = vld [vmem:[%s6 + $0x60] sm:$0xff]
    %v982 = vld [vmem:[%s6 + $0x68] sm:$0xff]
    %v983 = vld [vmem:[%s6 + $0x70] sm:$0xff]
    %v984 = vld [vmem:[%s6 + $0x78] sm:$0xff]
    %v985 = vld [vmem:[%s6 + $0x80] sm:$0xff]
    %v986 = vld [vmem:[%s6 + $0x88] sm:$0xff]
    %v987 = vld [vmem:[%s6 + $0x90] sm:$0xff]
    %v988 = vld [vmem:[%s6 + $0x98] sm:$0xff]
    %v989 = vld [vmem:[%s6 + $0xa0] sm:$0xff]
    %990 = vmatprep.subr.mxu0 0.0
    %991 = vmatpush1.msra.mxu0 %v984
    %992 = vmatprep.subr.mxu0 0.0
    %993 = vmatpush1.msra.mxu0 %v983
    %994 = vmatprep.subr.mxu0 0.0
    %995 = vmatpush1.msra.mxu0 %v982
    %996 = vmatprep.subr.mxu0 0.0
    %997 = vmatpush1.msra.mxu0 %v981
    %998 = vmatprep.subr.mxu0 0.0
    %999 = vmatpush1.msra.mxu0 %v980
    %1000 = vmatprep.subr.mxu0 0.0
    %1001 = vmatpush1.msra.mxu0 %v979
    %1002 = vmatprep.subr.mxu0 0.0
    %1003 = vmatpush1.msra.mxu0 %v978
    %1004 = vmatprep.subr.mxu0 0.0
    %1005 = vmatpush1.msra.mxu0 %v977
    %1006 = vmatprep.subr.mxu0 0.0
    %1007 = vmatpush1.msra.mxu0 %v976
    %1008 = vmatprep.subr.mxu0 0.0
    %1009 = vmatpush1.msra.mxu0 %v975
    %1010 = vmatprep.subr.mxu0 0.0
    %1011 = vmatpush1.msra.mxu0 %v974
    %1012 = vmatprep.subr.mxu0 0.0
    %1013 = vmatpush1.msra.mxu0 %v973
    %1014 = vmatprep.subr.mxu0 0.0
    %1015 = vmatpush1.msra.mxu0 %v972
    %1016 = vmatprep.subr.mxu0 0.0
    %1017 = vmatpush1.msra.mxu0 %v971
    %1018 = vmatprep.subr.mxu0 0.0
    %1019 = vmatpush1.msra.mxu0 %v970
    %1020 = vmatprep.subr.mxu0 0.0
    %1021 = vmatpush1.msra.mxu0 %v969
    %1022 = vmatprep.subr.mxu0 0.0
    %1023 = vmatpush2.msra.mxu0 0.0
    %1024 = vmatprep.subr.mxu0 0.0
    %1025 = vmatpush2.msra.mxu0 0.0
    %1026 = vmatprep.subr.mxu0 0.0
    %1027 = vmatpush2.msra.mxu0 0.0
    %1028 = vmatprep.subr.mxu0 0.0
    %1029 = vmatpush2.msra.mxu0 0.0
    %1030 = vmatprep.subr.mxu0 0.0
    %1031 = vmatpush2.msra.mxu0 0.0
    %1032 = vmatprep.subr.mxu0 0.0
    %1033 = vmatpush2.msra.mxu0 0.0
    %1034 = vmatprep.subr.mxu0 0.0
    %1035 = vmatpush2.msra.mxu0 0.0
    %1036 = vmatprep.subr.mxu0 0.0
    %1037 = vmatpush2.msra.mxu0 0.0
    %1038 = vmatprep.subr.mxu0 0.0
    %1039 = vmatpush2.msra.mxu0 0.0
    %1040 = vmatprep.subr.mxu0 0.0
    %1041 = vmatpush2.msra.mxu0 0.0
    %1042 = vmatprep.subr.mxu0 0.0
    %1043 = vmatpush2.msra.mxu0 0.0
    %1044 = vmatprep.subr.mxu0 0.0
    %1045 = vmatpush2.msra.mxu0 %v989
    %1046 = vmatprep.subr.mxu0 0.0
    %1047 = vmatpush2.msra.mxu0 %v988
    %1048 = vmatprep.subr.mxu0 0.0
    %1049 = vmatpush2.msra.mxu0 %v987
    %1050 = vmatprep.subr.mxu0 0.0
    %1051 = vmatpush2.msra.mxu0 %v986
    %1052 = vmatprep.subr.mxu0 0.0
    %1053 = vmatpush2.msra.mxu0 %v985
    %1054 = vmatprep.mubr.f32.mxu0 %v889
    %1055 = vmatmul.mubr.f32.gmra.mxu0 %v862
    %v1056 = vpop.f32.mrf.mxu0
    %v1057 = vadd.f32 0.0, %v1056
    %v1058 = vpop.f32.mrf.mxu0
    %1059 = vmatprep.mubr.f32.mxu0 %v892
    %1060 = vmatmul.mubr.f32.gmra.mxu0 %v864
    %v1061 = vpop.f32.mrf.mxu0
    %v1062 = vadd.f32 0.0, %v1061
    %v1063 = vpop.f32.mrf.mxu0
    %1064 = vdwg.mxu0
    %v1065 = vmax.f32 %v961, %v1057
    %v1066 = vmax.f32 %v966, %v1062
    %v1067 = vld [vmem:[%s7] sm:$0xff]
    %v1068 = vld [vmem:[%s7 + $0x8] sm:$0xff]
    %v1069 = vld [vmem:[%s7 + $0x10] sm:$0xff]
    %v1070 = vld [vmem:[%s7 + $0x18] sm:$0xff]
    %v1071 = vld [vmem:[%s7 + $0x20] sm:$0xff]
    %v1072 = vld [vmem:[%s7 + $0x28] sm:$0xff]
    %v1073 = vld [vmem:[%s7 + $0x30] sm:$0xff]
    %v1074 = vld [vmem:[%s7 + $0x38] sm:$0xff]
    %v1075 = vld [vmem:[%s7 + $0x40] sm:$0xff]
    %v1076 = vld [vmem:[%s7 + $0x48] sm:$0xff]
    %v1077 = vld [vmem:[%s7 + $0x50] sm:$0x33]
    %v1078 = vpack.c.bf16 %v1066, %v1065
    %s1079 = scalar_lea.vmem %s7, 88
    %v1080 = vld [vmem:[%s1079] sm:$0xff]
    %v1081 = vld [vmem:[%s1079 + $0x8] sm:$0xff]
    %v1082 = vld [vmem:[%s1079 + $0x10] sm:$0xff]
    %v1083 = vld [vmem:[%s1079 + $0x18] sm:$0xff]
    %v1084 = vld [vmem:[%s1079 + $0x20] sm:$0xff]
    %v1085 = vld [vmem:[%s1079 + $0x28] sm:$0xff]
    %v1086 = vld [vmem:[%s1079 + $0x30] sm:$0xff]
    %v1087 = vld [vmem:[%s1079 + $0x38] sm:$0xff]
    %v1088 = vld [vmem:[%s1079 + $0x40] sm:$0xff]
    %v1089 = vld [vmem:[%s1079 + $0x48] sm:$0xff]
    %v1090 = vld [vmem:[%s1079 + $0x50] sm:$0x33]
    %v1092 = vshrl.u32 %v1078, 16
    %v1094 = vshll.u32 %v1078, 16
    %v1096 = vrot.slane %v1094, 1
    %v1097 = vor.u32 %v1092, %v1096
    %v1109 = vunpack.c.l.b16 %v1080
    %v1110 = vunpack.c.h.b16 %v1080
    %v1111 = vunpack.c.l.b16 %v1081
    %v1112 = vunpack.c.h.b16 %v1081
    %v1113 = vunpack.c.l.b16 %v1082
    %v1114 = vunpack.c.h.b16 %v1082
    %v1115 = vunpack.c.l.b16 %v1083
    %v1116 = vunpack.c.h.b16 %v1083
    %v1117 = vunpack.c.l.b16 %v1084
    %v1118 = vunpack.c.h.b16 %v1084
    %v1119 = vunpack.c.l.b16 %v1085
    %v1120 = vunpack.c.h.b16 %v1085
    %v1121 = vunpack.c.l.b16 %v1086
    %v1122 = vunpack.c.h.b16 %v1086
    %v1123 = vunpack.c.l.b16 %v1087
    %v1124 = vunpack.c.h.b16 %v1087
    %v1125 = vunpack.c.l.b16 %v1088
    %v1126 = vunpack.c.h.b16 %v1088
    %v1127 = vunpack.c.l.b16 %v1089
    %v1128 = vunpack.c.h.b16 %v1089
    %v1129 = vunpack.c.l.b16 %v1090
    %v1130 = vunpack.c.h.b16 %v1090
    %v1131 = vpack.c.b16 %v1111, %v1109
    %v1132 = vpack.c.b16 %v1112, %v1110
    %v1133 = vpack.c.b16 %v1115, %v1113
    %v1134 = vpack.c.b16 %v1116, %v1114
    %v1135 = vpack.c.b16 %v1119, %v1117
    %v1136 = vpack.c.b16 %v1120, %v1118
    %v1137 = vpack.c.b16 %v1123, %v1121
    %v1138 = vpack.c.b16 %v1124, %v1122
    %v1139 = vpack.c.b16 %v1127, %v1125
    %v1140 = vpack.c.b16 %v1128, %v1126
    %v1141 = vpack.c.b16 %v1129, %v1129
    %v1142 = vpack.c.b16 %v1130, %v1130
    %vm1153 = vcmask 687104
    %v1155 = vsel %vm1153, %v1097, 0
    %vm1157 = vcmask 1041408
    %v1159 = vsel %vm1157, %v1141, 0
    %v1162 = vsel %vm1157, %v1142, 0
    %1164 = vmatprep.subr.bf16.mxu0 0
    %1165 = vmatpush1.bf16.msra.mxu0 0
    %1166 = vmatprep.subr.bf16.mxu0 0
    %1167 = vmatpush1.bf16.msra.mxu0 0
    %1168 = vmatprep.subr.bf16.mxu0 %v1162
    %1169 = vmatpush1.bf16.msra.mxu0 %v1159
    %1170 = vmatprep.subr.bf16.mxu0 %v1140
    %1171 = vmatpush1.bf16.msra.mxu0 %v1139
    %1172 = vmatprep.subr.bf16.mxu0 %v1138
    %1173 = vmatpush1.bf16.msra.mxu0 %v1137
    %1174 = vmatprep.subr.bf16.mxu0 %v1136
    %1175 = vmatpush1.bf16.msra.mxu0 %v1135
    %1176 = vmatprep.subr.bf16.mxu0 %v1134
    %1177 = vmatpush1.bf16.msra.mxu0 %v1133
    %1178 = vmatprep.subr.bf16.mxu0 %v1132
    %1179 = vmatpush1.bf16.msra.mxu0 %v1131
    %1180 = vmatprep.subr.bf16.mxu0 0
    %1181 = vmatpush2.bf16.msra.mxu0 0
    %1182 = vmatprep.subr.bf16.mxu0 0
    %1183 = vmatpush2.bf16.msra.mxu0 0
    %1184 = vmatprep.subr.bf16.mxu0 0
    %1185 = vmatpush2.bf16.msra.mxu0 0
    %1186 = vmatprep.subr.bf16.mxu0 0
    %1187 = vmatpush2.bf16.msra.mxu0 0
    %1188 = vmatprep.subr.bf16.mxu0 0
    %1189 = vmatpush2.bf16.msra.mxu0 0
    %1190 = vmatprep.subr.bf16.mxu0 0
    %1191 = vmatpush2.bf16.msra.mxu0 0
    %1192 = vmatprep.subr.bf16.mxu0 0
    %1193 = vmatpush2.bf16.msra.mxu0 0
    %1194 = vmatprep.subr.bf16.mxu0 0
    %1195 = vmatpush2.bf16.msra.mxu0 0
    %1196 = vmatprep.mubr.bf16.mxu0 0
    %1197 = vmatmul.mubr.bf16.gmra.mxu0 %v1155
    %v1198 = vpop.f32.mrf.mxu0
    %v1199 = vadd.f32 0.0, %v1198
    %v1200 = vpop.f32.mrf.mxu0
    %v1201 = vadd.f32 0.0, %v1200
    %v1202 = vpop.f32.mrf.mxu0
    %v1203 = vadd.f32 0.0, %v1202
    %v1204 = vpop.f32.mrf.mxu0
    %v1205 = vadd.f32 0.0, %v1204
    %1206 = vdwg.mxu0
    %v1218 = vunpack.c.l.b16 %v1067
    %v1219 = vunpack.c.h.b16 %v1067
    %v1220 = vunpack.c.l.b16 %v1068
    %v1221 = vunpack.c.h.b16 %v1068
    %v1222 = vunpack.c.l.b16 %v1069
    %v1223 = vunpack.c.h.b16 %v1069
    %v1224 = vunpack.c.l.b16 %v1070
    %v1225 = vunpack.c.h.b16 %v1070
    %v1226 = vunpack.c.l.b16 %v1071
    %v1227 = vunpack.c.h.b16 %v1071
    %v1228 = vunpack.c.l.b16 %v1072
    %v1229 = vunpack.c.h.b16 %v1072
    %v1230 = vunpack.c.l.b16 %v1073
    %v1231 = vunpack.c.h.b16 %v1073
    %v1232 = vunpack.c.l.b16 %v1074
    %v1233 = vunpack.c.h.b16 %v1074
    %v1234 = vunpack.c.l.b16 %v1075
    %v1235 = vunpack.c.h.b16 %v1075
    %v1236 = vunpack.c.l.b16 %v1076
    %v1237 = vunpack.c.h.b16 %v1076
    %v1238 = vunpack.c.l.b16 %v1077
    %v1239 = vunpack.c.h.b16 %v1077
    %v1240 = vpack.c.b16 %v1220, %v1218
    %v1241 = vpack.c.b16 %v1221, %v1219
    %v1242 = vpack.c.b16 %v1224, %v1222
    %v1243 = vpack.c.b16 %v1225, %v1223
    %v1244 = vpack.c.b16 %v1228, %v1226
    %v1245 = vpack.c.b16 %v1229, %v1227
    %v1246 = vpack.c.b16 %v1232, %v1230
    %v1247 = vpack.c.b16 %v1233, %v1231
    %v1248 = vpack.c.b16 %v1236, %v1234
    %v1249 = vpack.c.b16 %v1237, %v1235
    %v1250 = vpack.c.b16 %v1238, %v1238
    %v1251 = vpack.c.b16 %v1239, %v1239
    %v1262 = vsel %vm1153, %v1078, 0
    %v1265 = vsel %vm1157, %v1250, 0
    %v1268 = vsel %vm1157, %v1251, 0
    %1270 = vmatprep.subr.bf16.mxu0 0
    %1271 = vmatpush1.bf16.msra.mxu0 0
    %1272 = vmatprep.subr.bf16.mxu0 0
    %1273 = vmatpush1.bf16.msra.mxu0 0
    %1274 = vmatprep.subr.bf16.mxu0 %v1268
    %1275 = vmatpush1.bf16.msra.mxu0 %v1265
    %1276 = vmatprep.subr.bf16.mxu0 %v1249
    %1277 = vmatpush1.bf16.msra.mxu0 %v1248
    %1278 = vmatprep.subr.bf16.mxu0 %v1247
    %1279 = vmatpush1.bf16.msra.mxu0 %v1246
    %1280 = vmatprep.subr.bf16.mxu0 %v1245
    %1281 = vmatpush1.bf16.msra.mxu0 %v1244
    %1282 = vmatprep.subr.bf16.mxu0 %v1243
    %1283 = vmatpush1.bf16.msra.mxu0 %v1242
    %1284 = vmatprep.subr.bf16.mxu0 %v1241
    %1285 = vmatpush1.bf16.msra.mxu0 %v1240
    %1286 = vmatprep.subr.bf16.mxu0 0
    %1287 = vmatpush2.bf16.msra.mxu0 0
    %1288 = vmatprep.subr.bf16.mxu0 0
    %1289 = vmatpush2.bf16.msra.mxu0 0
    %1290 = vmatprep.subr.bf16.mxu0 0
    %1291 = vmatpush2.bf16.msra.mxu0 0
    %1292 = vmatprep.subr.bf16.mxu0 0
    %1293 = vmatpush2.bf16.msra.mxu0 0
    %1294 = vmatprep.subr.bf16.mxu0 0
    %1295 = vmatpush2.bf16.msra.mxu0 0
    %1296 = vmatprep.subr.bf16.mxu0 0
    %1297 = vmatpush2.bf16.msra.mxu0 0
    %1298 = vmatprep.subr.bf16.mxu0 0
    %1299 = vmatpush2.bf16.msra.mxu0 0
    %1300 = vmatprep.subr.bf16.mxu0 0
    %1301 = vmatpush2.bf16.msra.mxu0 0
    %1302 = vmatprep.mubr.bf16.mxu0 0
    %1303 = vmatmul.mubr.bf16.gmra.mxu0 %v1262
    %v1304 = vpop.f32.mrf.mxu0
    %v1305 = vadd.f32 %v1199, %v1304
    %v1306 = vpop.f32.mrf.mxu0
    %v1307 = vadd.f32 %v1201, %v1306
    %v1308 = vpop.f32.mrf.mxu0
    %v1309 = vadd.f32 %v1203, %v1308
    %v1310 = vpop.f32.mrf.mxu0
    %v1311 = vadd.f32 %v1205, %v1310
    %1312 = vdwg.mxu0
    %s1313 = scalar_lea.vmem %s7, 176
    %v1314 = vld [vmem:[%s1313] sm:$0xff]
    %v1315 = vld [vmem:[%s1313 + $0x8] sm:$0xff]
    %v1316 = vld [vmem:[%s1313 + $0x10] sm:$0xff]
    %v1317 = vld [vmem:[%s1313 + $0x18] sm:$0xff]
    %v1318 = vld [vmem:[%s1313 + $0x20] sm:$0xff]
    %v1319 = vld [vmem:[%s1313 + $0x28] sm:$0xff]
    %v1320 = vld [vmem:[%s1313 + $0x30] sm:$0xff]
    %v1321 = vld [vmem:[%s1313 + $0x38] sm:$0xff]
    %v1322 = vld [vmem:[%s1313 + $0x40] sm:$0xff]
    %v1323 = vld [vmem:[%s1313 + $0x48] sm:$0xff]
    %v1324 = vld [vmem:[%s1313 + $0x50] sm:$0x33]
    %v1326 = vrot.slane %v1078, 1
    %v1338 = vunpack.c.l.b16 %v1314
    %v1339 = vunpack.c.h.b16 %v1314
    %v1340 = vunpack.c.l.b16 %v1315
    %v1341 = vunpack.c.h.b16 %v1315
    %v1342 = vunpack.c.l.b16 %v1316
    %v1343 = vunpack.c.h.b16 %v1316
    %v1344 = vunpack.c.l.b16 %v1317
    %v1345 = vunpack.c.h.b16 %v1317
    %v1346 = vunpack.c.l.b16 %v1318
    %v1347 = vunpack.c.h.b16 %v1318
    %v1348 = vunpack.c.l.b16 %v1319
    %v1349 = vunpack.c.h.b16 %v1319
    %v1350 = vunpack.c.l.b16 %v1320
    %v1351 = vunpack.c.h.b16 %v1320
    %v1352 = vunpack.c.l.b16 %v1321
    %v1353 = vunpack.c.h.b16 %v1321
    %v1354 = vunpack.c.l.b16 %v1322
    %v1355 = vunpack.c.h.b16 %v1322
    %v1356 = vunpack.c.l.b16 %v1323
    %v1357 = vunpack.c.h.b16 %v1323
    %v1358 = vunpack.c.l.b16 %v1324
    %v1359 = vunpack.c.h.b16 %v1324
    %v1360 = vpack.c.b16 %v1340, %v1338
    %v1361 = vpack.c.b16 %v1341, %v1339
    %v1362 = vpack.c.b16 %v1344, %v1342
    %v1363 = vpack.c.b16 %v1345, %v1343
    %v1364 = vpack.c.b16 %v1348, %v1346
    %v1365 = vpack.c.b16 %v1349, %v1347
    %v1366 = vpack.c.b16 %v1352, %v1350
    %v1367 = vpack.c.b16 %v1353, %v1351
    %v1368 = vpack.c.b16 %v1356, %v1354
    %v1369 = vpack.c.b16 %v1357, %v1355
    %v1370 = vpack.c.b16 %v1358, %v1358
    %v1371 = vpack.c.b16 %v1359, %v1359
    %v1383 = vsel %vm1153, %v1326, 0
    %v1386 = vsel %vm1157, %v1370, 0
    %v1389 = vsel %vm1157, %v1371, 0
    %1391 = vmatprep.subr.bf16.mxu0 0
    %1392 = vmatpush1.bf16.msra.mxu0 0
    %1393 = vmatprep.subr.bf16.mxu0 0
    %1394 = vmatpush1.bf16.msra.mxu0 0
    %1395 = vmatprep.subr.bf16.mxu0 %v1389
    %1396 = vmatpush1.bf16.msra.mxu0 %v1386
    %1397 = vmatprep.subr.bf16.mxu0 %v1369
    %1398 = vmatpush1.bf16.msra.mxu0 %v1368
    %1399 = vmatprep.subr.bf16.mxu0 %v1367
    %1400 = vmatpush1.bf16.msra.mxu0 %v1366
    %1401 = vmatprep.subr.bf16.mxu0 %v1365
    %1402 = vmatpush1.bf16.msra.mxu0 %v1364
    %1403 = vmatprep.subr.bf16.mxu0 %v1363
    %1404 = vmatpush1.bf16.msra.mxu0 %v1362
    %1405 = vmatprep.subr.bf16.mxu0 %v1361
    %1406 = vmatpush1.bf16.msra.mxu0 %v1360
    %1407 = vmatprep.subr.bf16.mxu0 0
    %1408 = vmatpush2.bf16.msra.mxu0 0
    %1409 = vmatprep.subr.bf16.mxu0 0
    %1410 = vmatpush2.bf16.msra.mxu0 0
    %1411 = vmatprep.subr.bf16.mxu0 0
    %1412 = vmatpush2.bf16.msra.mxu0 0
    %1413 = vmatprep.subr.bf16.mxu0 0
    %1414 = vmatpush2.bf16.msra.mxu0 0
    %1415 = vmatprep.subr.bf16.mxu0 0
    %1416 = vmatpush2.bf16.msra.mxu0 0
    %1417 = vmatprep.subr.bf16.mxu0 0
    %1418 = vmatpush2.bf16.msra.mxu0 0
    %1419 = vmatprep.subr.bf16.mxu0 0
    %1420 = vmatpush2.bf16.msra.mxu0 0
    %1421 = vmatprep.subr.bf16.mxu0 0
    %1422 = vmatpush2.bf16.msra.mxu0 0
    %1423 = vmatprep.mubr.bf16.mxu0 0
    %1424 = vmatmul.mubr.bf16.gmra.mxu0 %v1383
    %v1425 = vpop.f32.mrf.mxu0
    %v1426 = vadd.f32 0.0, %v1425
    %v1427 = vpop.f32.mrf.mxu0
    %v1428 = vadd.f32 0.0, %v1427
    %v1429 = vpop.f32.mrf.mxu0
    %v1430 = vadd.f32 0.0, %v1429
    %v1431 = vpop.f32.mrf.mxu0
    %v1432 = vadd.f32 0.0, %v1431
    %1433 = vdwg.mxu0
    %v1434 = vadd.f32 %v1305, %v1426
    %v1435 = vadd.f32 %v1307, %v1428
    %v1436 = vadd.f32 %v1309, %v1430
    %v1437 = vadd.f32 %v1311, %v1432
    %s1438 = scalar_lea.vmem %s7, 264
    %v1439 = vld [vmem:[%s1438] sm:$0xff]
    %v1440 = vld [vmem:[%s1438 + $0x8] sm:$0xff]
    %v1441 = vld [vmem:[%s1438 + $0x10] sm:$0xff]
    %v1442 = vld [vmem:[%s1438 + $0x18] sm:$0xff]
    %v1443 = vld [vmem:[%s1438 + $0x20] sm:$0xff]
    %v1444 = vld [vmem:[%s1438 + $0x28] sm:$0xff]
    %v1445 = vld [vmem:[%s1438 + $0x30] sm:$0xff]
    %v1446 = vld [vmem:[%s1438 + $0x38] sm:$0xff]
    %v1447 = vld [vmem:[%s1438 + $0x40] sm:$0xff]
    %v1448 = vld [vmem:[%s1438 + $0x48] sm:$0xff]
    %v1449 = vld [vmem:[%s1438 + $0x50] sm:$0x33]
    %v1450 = vrot.slane %v1092, 1
    %v1451 = vrot.slane %v1094, 2
    %v1452 = vor.u32 %v1450, %v1451
    %v1464 = vunpack.c.l.b16 %v1439
    %v1465 = vunpack.c.h.b16 %v1439
    %v1466 = vunpack.c.l.b16 %v1440
    %v1467 = vunpack.c.h.b16 %v1440
    %v1468 = vunpack.c.l.b16 %v1441
    %v1469 = vunpack.c.h.b16 %v1441
    %v1470 = vunpack.c.l.b16 %v1442
    %v1471 = vunpack.c.h.b16 %v1442
    %v1472 = vunpack.c.l.b16 %v1443
    %v1473 = vunpack.c.h.b16 %v1443
    %v1474 = vunpack.c.l.b16 %v1444
    %v1475 = vunpack.c.h.b16 %v1444
    %v1476 = vunpack.c.l.b16 %v1445
    %v1477 = vunpack.c.h.b16 %v1445
    %v1478 = vunpack.c.l.b16 %v1446
    %v1479 = vunpack.c.h.b16 %v1446
    %v1480 = vunpack.c.l.b16 %v1447
    %v1481 = vunpack.c.h.b16 %v1447
    %v1482 = vunpack.c.l.b16 %v1448
    %v1483 = vunpack.c.h.b16 %v1448
    %v1484 = vunpack.c.l.b16 %v1449
    %v1485 = vunpack.c.h.b16 %v1449
    %v1486 = vpack.c.b16 %v1466, %v1464
    %v1487 = vpack.c.b16 %v1467, %v1465
    %v1488 = vpack.c.b16 %v1470, %v1468
    %v1489 = vpack.c.b16 %v1471, %v1469
    %v1490 = vpack.c.b16 %v1474, %v1472
    %v1491 = vpack.c.b16 %v1475, %v1473
    %v1492 = vpack.c.b16 %v1478, %v1476
    %v1493 = vpack.c.b16 %v1479, %v1477
    %v1494 = vpack.c.b16 %v1482, %v1480
    %v1495 = vpack.c.b16 %v1483, %v1481
    %v1496 = vpack.c.b16 %v1484, %v1484
    %v1497 = vpack.c.b16 %v1485, %v1485
    %v1509 = vsel %vm1153, %v1452, 0
    %v1512 = vsel %vm1157, %v1496, 0
    %v1515 = vsel %vm1157, %v1497, 0
    %1517 = vmatprep.subr.bf16.mxu0 0
    %1518 = vmatpush1.bf16.msra.mxu0 0
    %1519 = vmatprep.subr.bf16.mxu0 0
    %1520 = vmatpush1.bf16.msra.mxu0 0
    %1521 = vmatprep.subr.bf16.mxu0 %v1515
    %1522 = vmatpush1.bf16.msra.mxu0 %v1512
    %1523 = vmatprep.subr.bf16.mxu0 %v1495
    %1524 = vmatpush1.bf16.msra.mxu0 %v1494
    %1525 = vmatprep.subr.bf16.mxu0 %v1493
    %1526 = vmatpush1.bf16.msra.mxu0 %v1492
    %1527 = vmatprep.subr.bf16.mxu0 %v1491
    %1528 = vmatpush1.bf16.msra.mxu0 %v1490
    %1529 = vmatprep.subr.bf16.mxu0 %v1489
    %1530 = vmatpush1.bf16.msra.mxu0 %v1488
    %1531 = vmatprep.subr.bf16.mxu0 %v1487
    %1532 = vmatpush1.bf16.msra.mxu0 %v1486
    %1533 = vmatprep.subr.bf16.mxu0 0
    %1534 = vmatpush2.bf16.msra.mxu0 0
    %1535 = vmatprep.subr.bf16.mxu0 0
    %1536 = vmatpush2.bf16.msra.mxu0 0
    %1537 = vmatprep.subr.bf16.mxu0 0
    %1538 = vmatpush2.bf16.msra.mxu0 0
    %1539 = vmatprep.subr.bf16.mxu0 0
    %1540 = vmatpush2.bf16.msra.mxu0 0
    %1541 = vmatprep.subr.bf16.mxu0 0
    %1542 = vmatpush2.bf16.msra.mxu0 0
    %1543 = vmatprep.subr.bf16.mxu0 0
    %1544 = vmatpush2.bf16.msra.mxu0 0
    %1545 = vmatprep.subr.bf16.mxu0 0
    %1546 = vmatpush2.bf16.msra.mxu0 0
    %1547 = vmatprep.subr.bf16.mxu0 0
    %1548 = vmatpush2.bf16.msra.mxu0 0
    %1549 = vmatprep.mubr.bf16.mxu0 0
    %1550 = vmatmul.mubr.bf16.gmra.mxu0 %v1509
    %v1551 = vpop.f32.mrf.mxu0
    %v1552 = vadd.f32 0.0, %v1551
    %v1553 = vpop.f32.mrf.mxu0
    %v1554 = vadd.f32 0.0, %v1553
    %v1555 = vpop.f32.mrf.mxu0
    %v1556 = vadd.f32 0.0, %v1555
    %v1557 = vpop.f32.mrf.mxu0
    %v1558 = vadd.f32 0.0, %v1557
    %1559 = vdwg.mxu0
    %v1560 = vadd.f32 %v1434, %v1552
    %v1561 = vadd.f32 %v1435, %v1554
    %v1562 = vadd.f32 %v1436, %v1556
    %v1563 = vadd.f32 %v1437, %v1558
    %s1564 = scalar_lea.vmem %s7, 352
    %v1565 = vld [vmem:[%s1564] sm:$0xff]
    %v1566 = vld [vmem:[%s1564 + $0x8] sm:$0xff]
    %v1567 = vld [vmem:[%s1564 + $0x10] sm:$0xff]
    %v1568 = vld [vmem:[%s1564 + $0x18] sm:$0xff]
    %v1569 = vld [vmem:[%s1564 + $0x20] sm:$0xff]
    %v1570 = vld [vmem:[%s1564 + $0x28] sm:$0xff]
    %v1571 = vld [vmem:[%s1564 + $0x30] sm:$0xff]
    %v1572 = vld [vmem:[%s1564 + $0x38] sm:$0xff]
    %v1573 = vld [vmem:[%s1564 + $0x40] sm:$0xff]
    %v1574 = vld [vmem:[%s1564 + $0x48] sm:$0xff]
    %v1575 = vld [vmem:[%s1564 + $0x50] sm:$0x33]
    %v1576 = vrot.slane %v1078, 2
    %v1588 = vunpack.c.l.b16 %v1565
    %v1589 = vunpack.c.h.b16 %v1565
    %v1590 = vunpack.c.l.b16 %v1566
    %v1591 = vunpack.c.h.b16 %v1566
    %v1592 = vunpack.c.l.b16 %v1567
    %v1593 = vunpack.c.h.b16 %v1567
    %v1594 = vunpack.c.l.b16 %v1568
    %v1595 = vunpack.c.h.b16 %v1568
    %v1596 = vunpack.c.l.b16 %v1569
    %v1597 = vunpack.c.h.b16 %v1569
    %v1598 = vunpack.c.l.b16 %v1570
    %v1599 = vunpack.c.h.b16 %v1570
    %v1600 = vunpack.c.l.b16 %v1571
    %v1601 = vunpack.c.h.b16 %v1571
    %v1602 = vunpack.c.l.b16 %v1572
    %v1603 = vunpack.c.h.b16 %v1572
    %v1604 = vunpack.c.l.b16 %v1573
    %v1605 = vunpack.c.h.b16 %v1573
    %v1606 = vunpack.c.l.b16 %v1574
    %v1607 = vunpack.c.h.b16 %v1574
    %v1608 = vunpack.c.l.b16 %v1575
    %v1609 = vunpack.c.h.b16 %v1575
    %v1610 = vpack.c.b16 %v1590, %v1588
    %v1611 = vpack.c.b16 %v1591, %v1589
    %v1612 = vpack.c.b16 %v1594, %v1592
    %v1613 = vpack.c.b16 %v1595, %v1593
    %v1614 = vpack.c.b16 %v1598, %v1596
    %v1615 = vpack.c.b16 %v1599, %v1597
    %v1616 = vpack.c.b16 %v1602, %v1600
    %v1617 = vpack.c.b16 %v1603, %v1601
    %v1618 = vpack.c.b16 %v1606, %v1604
    %v1619 = vpack.c.b16 %v1607, %v1605
    %v1620 = vpack.c.b16 %v1608, %v1608
    %v1621 = vpack.c.b16 %v1609, %v1609
    %v1633 = vsel %vm1153, %v1576, 0
    %v1636 = vsel %vm1157, %v1620, 0
    %v1639 = vsel %vm1157, %v1621, 0
    %1641 = vmatprep.subr.bf16.mxu0 0
    %1642 = vmatpush1.bf16.msra.mxu0 0
    %1643 = vmatprep.subr.bf16.mxu0 0
    %1644 = vmatpush1.bf16.msra.mxu0 0
    %1645 = vmatprep.subr.bf16.mxu0 %v1639
    %1646 = vmatpush1.bf16.msra.mxu0 %v1636
    %1647 = vmatprep.subr.bf16.mxu0 %v1619
    %1648 = vmatpush1.bf16.msra.mxu0 %v1618
    %1649 = vmatprep.subr.bf16.mxu0 %v1617
    %1650 = vmatpush1.bf16.msra.mxu0 %v1616
    %1651 = vmatprep.subr.bf16.mxu0 %v1615
    %1652 = vmatpush1.bf16.msra.mxu0 %v1614
    %1653 = vmatprep.subr.bf16.mxu0 %v1613
    %1654 = vmatpush1.bf16.msra.mxu0 %v1612
    %1655 = vmatprep.subr.bf16.mxu0 %v1611
    %1656 = vmatpush1.bf16.msra.mxu0 %v1610
    %1657 = vmatprep.subr.bf16.mxu0 0
    %1658 = vmatpush2.bf16.msra.mxu0 0
    %1659 = vmatprep.subr.bf16.mxu0 0
    %1660 = vmatpush2.bf16.msra.mxu0 0
    %1661 = vmatprep.subr.bf16.mxu0 0
    %1662 = vmatpush2.bf16.msra.mxu0 0
    %1663 = vmatprep.subr.bf16.mxu0 0
    %1664 = vmatpush2.bf16.msra.mxu0 0
    %1665 = vmatprep.subr.bf16.mxu0 0
    %1666 = vmatpush2.bf16.msra.mxu0 0
    %1667 = vmatprep.subr.bf16.mxu0 0
    %1668 = vmatpush2.bf16.msra.mxu0 0
    %1669 = vmatprep.subr.bf16.mxu0 0
    %1670 = vmatpush2.bf16.msra.mxu0 0
    %1671 = vmatprep.subr.bf16.mxu0 0
    %1672 = vmatpush2.bf16.msra.mxu0 0
    %1673 = vmatprep.mubr.bf16.mxu0 0
    %1674 = vmatmul.mubr.bf16.gmra.mxu0 %v1633
    %v1675 = vpop.f32.mrf.mxu0
    %v1676 = vadd.f32 0.0, %v1675
    %v1677 = vpop.f32.mrf.mxu0
    %v1678 = vadd.f32 0.0, %v1677
    %v1679 = vpop.f32.mrf.mxu0
    %v1680 = vadd.f32 0.0, %v1679
    %v1681 = vpop.f32.mrf.mxu0
    %v1682 = vadd.f32 0.0, %v1681
    %1683 = vdwg.mxu0
    %v1684 = vadd.f32 %v1560, %v1676
    %v1685 = vadd.f32 %v1561, %v1678
    %v1686 = vadd.f32 %v1562, %v1680
    %v1687 = vadd.f32 %v1563, %v1682
    %v1688 = vld [vmem:[#allocation8] sm:$0x3]
    %v1690 = vlaneseq
    %v1691 = vshrl.u32 %v1690, 7
    %v1692 = vsub.s32 0, %v1691
    %v1693 = vrot.slane %v1688, %v1692
    %v1694 = vlaneseq
    %v1695 = vshrl.u32 %v1694, 7
    %v1696 = vsub.s32 1, %v1695
    %v1697 = vrot.slane %v1688, %v1696
    %v1700 = vadd.f32 %v1684, %v1693
    %v1701 = vadd.f32 %v1685, %v1697
    %v1702 = vadd.f32 %v1686, %v1693
    %v1703 = vadd.f32 %v1687, %v1697
    %v1704 = vmax.f32 %v1700, 0.0
    %v1705 = vmax.f32 %v1701, 0.0
    %v1706 = vmax.f32 %v1702, 0.0
    %v1707 = vmax.f32 %v1703, 0.0
    %v1708 = vld [vmem:[#allocation10] sm:$0x1f]
    %vm1709 = vcmask 80896
    %v1711 = vsel %vm1709, %v1708, 0
    %v1714 = vsel %vm1157, %v1706, 0
    %v1717 = vsel %vm1157, %v1707, 0
    %1719 = vmatprep.subr.mxu0 0.0
    %1720 = vmatpush1.msra.mxu0 0.0
    %1721 = vmatprep.subr.mxu0 0.0
    %1722 = vmatpush1.msra.mxu0 0.0
    %1723 = vmatprep.subr.mxu0 0.0
    %1724 = vmatpush1.msra.mxu0 0.0
    %1725 = vmatprep.subr.mxu0 0.0
    %1726 = vmatpush1.msra.mxu0 0.0
    %1727 = vmatprep.subr.mxu0 0.0
    %1728 = vmatpush1.msra.mxu0 0.0
    %1729 = vmatprep.subr.mxu0 0.0
    %1730 = vmatpush1.msra.mxu0 0.0
    %1731 = vmatprep.subr.mxu0 0.0
    %1732 = vmatpush1.msra.mxu0 0.0
    %1733 = vmatprep.subr.mxu0 0.0
    %1734 = vmatpush1.msra.mxu0 0.0
    %1735 = vmatprep.subr.mxu0 0.0
    %1736 = vmatpush1.msra.mxu0 0.0
    %1737 = vmatprep.subr.mxu0 0.0
    %1738 = vmatpush1.msra.mxu0 0.0
    %1739 = vmatprep.subr.mxu0 0.0
    %1740 = vmatpush1.msra.mxu0 0.0
    %1741 = vmatprep.subr.mxu0 0.0
    %1742 = vmatpush1.msra.mxu0 0.0
    %1743 = vmatprep.subr.mxu0 0.0
    %1744 = vmatpush1.msra.mxu0 0.0
    %1745 = vmatprep.subr.mxu0 0.0
    %1746 = vmatpush1.msra.mxu0 0.0
    %1747 = vmatprep.subr.mxu0 %v1717
    %1748 = vmatpush1.msra.mxu0 %v1714
    %1749 = vmatprep.subr.mxu0 %v1705
    %1750 = vmatpush1.msra.mxu0 %v1704
    %1751 = vmatprep.subr.mxu0 0.0
    %1752 = vmatpush2.msra.mxu0 0.0
    %1753 = vmatprep.subr.mxu0 0.0
    %1754 = vmatpush2.msra.mxu0 0.0
    %1755 = vmatprep.subr.mxu0 0.0
    %1756 = vmatpush2.msra.mxu0 0.0
    %1757 = vmatprep.subr.mxu0 0.0
    %1758 = vmatpush2.msra.mxu0 0.0
    %1759 = vmatprep.subr.mxu0 0.0
    %1760 = vmatpush2.msra.mxu0 0.0
    %1761 = vmatprep.subr.mxu0 0.0
    %1762 = vmatpush2.msra.mxu0 0.0
    %1763 = vmatprep.subr.mxu0 0.0
    %1764 = vmatpush2.msra.mxu0 0.0
    %1765 = vmatprep.subr.mxu0 0.0
    %1766 = vmatpush2.msra.mxu0 0.0
    %1767 = vmatprep.subr.mxu0 0.0
    %1768 = vmatpush2.msra.mxu0 0.0
    %1769 = vmatprep.subr.mxu0 0.0
    %1770 = vmatpush2.msra.mxu0 0.0
    %1771 = vmatprep.subr.mxu0 0.0
    %1772 = vmatpush2.msra.mxu0 0.0
    %1773 = vmatprep.subr.mxu0 0.0
    %1774 = vmatpush2.msra.mxu0 0.0
    %1775 = vmatprep.subr.mxu0 0.0
    %1776 = vmatpush2.msra.mxu0 0.0
    %1777 = vmatprep.subr.mxu0 0.0
    %1778 = vmatpush2.msra.mxu0 0.0
    %1779 = vmatprep.subr.mxu0 0.0
    %1780 = vmatpush2.msra.mxu0 0.0
    %1781 = vmatprep.subr.mxu0 0.0
    %1782 = vmatpush2.msra.mxu0 0.0
    %1783 = vmatprep.mubr.f32.mxu0 0.0
    %1784 = vmatmul.mubr.f32.gmra.mxu0 %v1711
    %v1785 = vpop.f32.mrf.mxu0
    %v1786 = vadd.f32 0.0, %v1785
    %v1787 = vpop.f32.mrf.mxu0
    %v1788 = vadd.f32 0.0, %v1787
    %1789 = vdwg.mxu0
    %v1790 = vld [vmem:[#allocation11] sm:$0x1f]
    %v1792 = vsel %vm1709, %v1790, 0
    %1794 = vmatprep.subr.mxu0 0.0
    %1795 = vmatpush1.msra.mxu0 0.0
    %1796 = vmatprep.subr.mxu0 0.0
    %1797 = vmatpush1.msra.mxu0 0.0
    %1798 = vmatprep.subr.mxu0 0.0
    %1799 = vmatpush1.msra.mxu0 0.0
    %1800 = vmatprep.subr.mxu0 0.0
    %1801 = vmatpush1.msra.mxu0 0.0
    %1802 = vmatprep.subr.mxu0 0.0
    %1803 = vmatpush1.msra.mxu0 0.0
    %1804 = vmatprep.subr.mxu0 0.0
    %1805 = vmatpush1.msra.mxu0 0.0
    %1806 = vmatprep.subr.mxu0 0.0
    %1807 = vmatpush1.msra.mxu0 0.0
    %1808 = vmatprep.subr.mxu0 0.0
    %1809 = vmatpush1.msra.mxu0 0.0
    %1810 = vmatprep.subr.mxu0 0.0
    %1811 = vmatpush1.msra.mxu0 0.0
    %1812 = vmatprep.subr.mxu0 0.0
    %1813 = vmatpush1.msra.mxu0 0.0
    %1814 = vmatprep.subr.mxu0 0.0
    %1815 = vmatpush1.msra.mxu0 0.0
    %1816 = vmatprep.subr.mxu0 0.0
    %1817 = vmatpush1.msra.mxu0 0.0
    %1818 = vmatprep.subr.mxu0 0.0
    %1819 = vmatpush1.msra.mxu0 0.0
    %1820 = vmatprep.subr.mxu0 0.0
    %1821 = vmatpush1.msra.mxu0 0.0
    %1822 = vmatprep.subr.mxu0 %v1717
    %1823 = vmatpush1.msra.mxu0 %v1714
    %1824 = vmatprep.subr.mxu0 %v1705
    %1825 = vmatpush1.msra.mxu0 %v1704
    %1826 = vmatprep.subr.mxu0 0.0
    %1827 = vmatpush2.msra.mxu0 0.0
    %1828 = vmatprep.subr.mxu0 0.0
    %1829 = vmatpush2.msra.mxu0 0.0
    %1830 = vmatprep.subr.mxu0 0.0
    %1831 = vmatpush2.msra.mxu0 0.0
    %1832 = vmatprep.subr.mxu0 0.0
    %1833 = vmatpush2.msra.mxu0 0.0
    %1834 = vmatprep.subr.mxu0 0.0
    %1835 = vmatpush2.msra.mxu0 0.0
    %1836 = vmatprep.subr.mxu0 0.0
    %1837 = vmatpush2.msra.mxu0 0.0
    %1838 = vmatprep.subr.mxu0 0.0
    %1839 = vmatpush2.msra.mxu0 0.0
    %1840 = vmatprep.subr.mxu0 0.0
    %1841 = vmatpush2.msra.mxu0 0.0
    %1842 = vmatprep.subr.mxu0 0.0
    %1843 = vmatpush2.msra.mxu0 0.0
    %1844 = vmatprep.subr.mxu0 0.0
    %1845 = vmatpush2.msra.mxu0 0.0
    %1846 = vmatprep.subr.mxu0 0.0
    %1847 = vmatpush2.msra.mxu0 0.0
    %1848 = vmatprep.subr.mxu0 0.0
    %1849 = vmatpush2.msra.mxu0 0.0
    %1850 = vmatprep.subr.mxu0 0.0
    %1851 = vmatpush2.msra.mxu0 0.0
    %1852 = vmatprep.subr.mxu0 0.0
    %1853 = vmatpush2.msra.mxu0 0.0
    %1854 = vmatprep.subr.mxu0 0.0
    %1855 = vmatpush2.msra.mxu0 0.0
    %1856 = vmatprep.subr.mxu0 0.0
    %1857 = vmatpush2.msra.mxu0 0.0
    %1858 = vmatprep.mubr.f32.mxu0 0.0
    %1859 = vmatmul.mubr.f32.gmra.mxu0 %v1792
    %v1860 = vpop.f32.mrf.mxu0
    %v1861 = vadd.f32 0.0, %v1860
    %v1862 = vpop.f32.mrf.mxu0
    %v1863 = vadd.f32 0.0, %v1862
    %1864 = vdwg.mxu0
    %v1865 = vmax.f32 %v1786, %v1861
    %v1866 = vmax.f32 %v1788, %v1863
    %v1867 = vld [vmem:[%s11] sm:$0xff]
    %v1868 = vld [vmem:[%s11 + $0x8] sm:$0xff]
    %v1869 = vld [vmem:[%s11 + $0x10] sm:$0xff]
    %v1870 = vld [vmem:[%s11 + $0x18] sm:$0xff]
    %v1871 = vld [vmem:[%s11 + $0x20] sm:$0xff]
    %v1872 = vld [vmem:[%s11 + $0x28] sm:$0xff]
    %v1873 = vld [vmem:[%s11 + $0x30] sm:$0xff]
    %v1874 = vld [vmem:[%s11 + $0x38] sm:$0xff]
    %v1875 = vld [vmem:[%s11 + $0x40] sm:$0xff]
    %v1876 = vld [vmem:[%s11 + $0x48] sm:$0xff]
    %v1877 = vld [vmem:[%s11 + $0x50] sm:$0xff]
    %v1878 = vld [vmem:[%s11 + $0x58] sm:$0xff]
    %v1879 = vld [vmem:[%s11 + $0x60] sm:$0xff]
    %v1880 = vld [vmem:[%s11 + $0x68] sm:$0xff]
    %v1881 = vld [vmem:[%s11 + $0x70] sm:$0xff]
    %v1882 = vld [vmem:[%s11 + $0x78] sm:$0xff]
    %v1883 = vld [vmem:[%s11 + $0x80] sm:$0xff]
    %v1884 = vld [vmem:[%s11 + $0x88] sm:$0xff]
    %v1885 = vld [vmem:[%s11 + $0x90] sm:$0xff]
    %v1886 = vld [vmem:[%s11 + $0x98] sm:$0xff]
    %v1888 = vsel %vm225, %v1866, 0
    %1890 = vmatprep.subr.mxu0 0.0
    %1891 = vmatpush1.msra.mxu0 %v1882
    %1892 = vmatprep.subr.mxu0 0.0
    %1893 = vmatpush1.msra.mxu0 %v1881
    %1894 = vmatprep.subr.mxu0 0.0
    %1895 = vmatpush1.msra.mxu0 %v1880
    %1896 = vmatprep.subr.mxu0 0.0
    %1897 = vmatpush1.msra.mxu0 %v1879
    %1898 = vmatprep.subr.mxu0 0.0
    %1899 = vmatpush1.msra.mxu0 %v1878
    %1900 = vmatprep.subr.mxu0 0.0
    %1901 = vmatpush1.msra.mxu0 %v1877
    %1902 = vmatprep.subr.mxu0 0.0
    %1903 = vmatpush1.msra.mxu0 %v1876
    %1904 = vmatprep.subr.mxu0 0.0
    %1905 = vmatpush1.msra.mxu0 %v1875
    %1906 = vmatprep.subr.mxu0 0.0
    %1907 = vmatpush1.msra.mxu0 %v1874
    %1908 = vmatprep.subr.mxu0 0.0
    %1909 = vmatpush1.msra.mxu0 %v1873
    %1910 = vmatprep.subr.mxu0 0.0
    %1911 = vmatpush1.msra.mxu0 %v1872
    %1912 = vmatprep.subr.mxu0 0.0
    %1913 = vmatpush1.msra.mxu0 %v1871
    %1914 = vmatprep.subr.mxu0 0.0
    %1915 = vmatpush1.msra.mxu0 %v1870
    %1916 = vmatprep.subr.mxu0 0.0
    %1917 = vmatpush1.msra.mxu0 %v1869
    %1918 = vmatprep.subr.mxu0 0.0
    %1919 = vmatpush1.msra.mxu0 %v1868
    %1920 = vmatprep.subr.mxu0 0.0
    %1921 = vmatpush1.msra.mxu0 %v1867
    %1922 = vmatprep.subr.mxu0 0.0
    %1923 = vmatpush2.msra.mxu0 0.0
    %1924 = vmatprep.subr.mxu0 0.0
    %1925 = vmatpush2.msra.mxu0 0.0
    %1926 = vmatprep.subr.mxu0 0.0
    %1927 = vmatpush2.msra.mxu0 0.0
    %1928 = vmatprep.subr.mxu0 0.0
    %1929 = vmatpush2.msra.mxu0 0.0
    %1930 = vmatprep.subr.mxu0 0.0
    %1931 = vmatpush2.msra.mxu0 0.0
    %1932 = vmatprep.subr.mxu0 0.0
    %1933 = vmatpush2.msra.mxu0 0.0
    %1934 = vmatprep.subr.mxu0 0.0
    %1935 = vmatpush2.msra.mxu0 0.0
    %1936 = vmatprep.subr.mxu0 0.0
    %1937 = vmatpush2.msra.mxu0 0.0
    %1938 = vmatprep.subr.mxu0 0.0
    %1939 = vmatpush2.msra.mxu0 0.0
    %1940 = vmatprep.subr.mxu0 0.0
    %1941 = vmatpush2.msra.mxu0 0.0
    %1942 = vmatprep.subr.mxu0 0.0
    %1943 = vmatpush2.msra.mxu0 0.0
    %1944 = vmatprep.subr.mxu0 0.0
    %1945 = vmatpush2.msra.mxu0 0.0
    %1946 = vmatprep.subr.mxu0 0.0
    %1947 = vmatpush2.msra.mxu0 %v1886
    %1948 = vmatprep.subr.mxu0 0.0
    %1949 = vmatpush2.msra.mxu0 %v1885
    %1950 = vmatprep.subr.mxu0 0.0
    %1951 = vmatpush2.msra.mxu0 %v1884
    %1952 = vmatprep.subr.mxu0 0.0
    %1953 = vmatpush2.msra.mxu0 %v1883
    %1954 = vmatprep.mubr.f32.mxu0 %v1888
    %1955 = vmatmul.mubr.f32.gmra.mxu0 %v1865
    %v1956 = vpop.f32.mrf.mxu0
    %v1957 = vadd.f32 0.0, %v1956
    %v1958 = vpop.f32.mrf.mxu0
    %1959 = vdwg.mxu0
    %v1960 = vld [vmem:[#allocation13] sm:$0xff]
    %v1961 = vld [vmem:[#allocation13 + $0x8] sm:$0xff]
    %v1962 = vld [vmem:[#allocation13 + $0x10] sm:$0xff]
    %v1963 = vld [vmem:[#allocation13 + $0x18] sm:$0xff]
    %v1964 = vld [vmem:[#allocation13 + $0x20] sm:$0xff]
    %v1965 = vld [vmem:[#allocation13 + $0x28] sm:$0xff]
    %v1966 = vld [vmem:[#allocation13 + $0x30] sm:$0xff]
    %v1967 = vld [vmem:[#allocation13 + $0x38] sm:$0xff]
    %v1968 = vld [vmem:[#allocation13 + $0x40] sm:$0xff]
    %v1969 = vld [vmem:[#allocation13 + $0x48] sm:$0xff]
    %v1970 = vld [vmem:[#allocation13 + $0x50] sm:$0xff]
    %v1971 = vld [vmem:[#allocation13 + $0x58] sm:$0xff]
    %v1972 = vld [vmem:[#allocation13 + $0x60] sm:$0xff]
    %v1973 = vld [vmem:[#allocation13 + $0x68] sm:$0xff]
    %v1974 = vld [vmem:[#allocation13 + $0x70] sm:$0xff]
    %v1975 = vld [vmem:[#allocation13 + $0x78] sm:$0xff]
    %v1976 = vld [vmem:[#allocation13 + $0x80] sm:$0xff]
    %v1977 = vld [vmem:[#allocation13 + $0x88] sm:$0xff]
    %v1978 = vld [vmem:[#allocation13 + $0x90] sm:$0xff]
    %v1979 = vld [vmem:[#allocation13 + $0x98] sm:$0xff]
    %1980 = vmatprep.subr.mxu0 0.0
    %1981 = vmatpush1.msra.mxu0 %v1975
    %1982 = vmatprep.subr.mxu0 0.0
    %1983 = vmatpush1.msra.mxu0 %v1974
    %1984 = vmatprep.subr.mxu0 0.0
    %1985 = vmatpush1.msra.mxu0 %v1973
    %1986 = vmatprep.subr.mxu0 0.0
    %1987 = vmatpush1.msra.mxu0 %v1972
    %1988 = vmatprep.subr.mxu0 0.0
    %1989 = vmatpush1.msra.mxu0 %v1971
    %1990 = vmatprep.subr.mxu0 0.0
    %1991 = vmatpush1.msra.mxu0 %v1970
    %1992 = vmatprep.subr.mxu0 0.0
    %1993 = vmatpush1.msra.mxu0 %v1969
    %1994 = vmatprep.subr.mxu0 0.0
    %1995 = vmatpush1.msra.mxu0 %v1968
    %1996 = vmatprep.subr.mxu0 0.0
    %1997 = vmatpush1.msra.mxu0 %v1967
    %1998 = vmatprep.subr.mxu0 0.0
    %1999 = vmatpush1.msra.mxu0 %v1966
    %2000 = vmatprep.subr.mxu0 0.0
    %2001 = vmatpush1.msra.mxu0 %v1965
    %2002 = vmatprep.subr.mxu0 0.0
    %2003 = vmatpush1.msra.mxu0 %v1964
    %2004 = vmatprep.subr.mxu0 0.0
    %2005 = vmatpush1.msra.mxu0 %v1963
    %2006 = vmatprep.subr.mxu0 0.0
    %2007 = vmatpush1.msra.mxu0 %v1962
    %2008 = vmatprep.subr.mxu0 0.0
    %2009 = vmatpush1.msra.mxu0 %v1961
    %2010 = vmatprep.subr.mxu0 0.0
    %2011 = vmatpush1.msra.mxu0 %v1960
    %2012 = vmatprep.subr.mxu0 0.0
    %2013 = vmatpush2.msra.mxu0 0.0
    %2014 = vmatprep.subr.mxu0 0.0
    %2015 = vmatpush2.msra.mxu0 0.0
    %2016 = vmatprep.subr.mxu0 0.0
    %2017 = vmatpush2.msra.mxu0 0.0
    %2018 = vmatprep.subr.mxu0 0.0
    %2019 = vmatpush2.msra.mxu0 0.0
    %2020 = vmatprep.subr.mxu0 0.0
    %2021 = vmatpush2.msra.mxu0 0.0
    %2022 = vmatprep.subr.mxu0 0.0
    %2023 = vmatpush2.msra.mxu0 0.0
    %2024 = vmatprep.subr.mxu0 0.0
    %2025 = vmatpush2.msra.mxu0 0.0
    %2026 = vmatprep.subr.mxu0 0.0
    %2027 = vmatpush2.msra.mxu0 0.0
    %2028 = vmatprep.subr.mxu0 0.0
    %2029 = vmatpush2.msra.mxu0 0.0
    %2030 = vmatprep.subr.mxu0 0.0
    %2031 = vmatpush2.msra.mxu0 0.0
    %2032 = vmatprep.subr.mxu0 0.0
    %2033 = vmatpush2.msra.mxu0 0.0
    %2034 = vmatprep.subr.mxu0 0.0
    %2035 = vmatpush2.msra.mxu0 0.0
    %2036 = vmatprep.subr.mxu0 0.0
    %2037 = vmatpush2.msra.mxu0 %v1979
    %2038 = vmatprep.subr.mxu0 0.0
    %2039 = vmatpush2.msra.mxu0 %v1978
    %2040 = vmatprep.subr.mxu0 0.0
    %2041 = vmatpush2.msra.mxu0 %v1977
    %2042 = vmatprep.subr.mxu0 0.0
    %2043 = vmatpush2.msra.mxu0 %v1976
    %2044 = vmatprep.mubr.f32.mxu0 %v1888
    %2045 = vmatmul.mubr.f32.gmra.mxu0 %v1865
    %v2046 = vpop.f32.mrf.mxu0
    %v2047 = vadd.f32 0.0, %v2046
    %v2048 = vpop.f32.mrf.mxu0
    %2049 = vdwg.mxu0
    %v2050 = vmax.f32 %v1957, %v2047
    %v2051 = vld [vmem:[%s13] sm:$0xf]
    %v2052 = vld [vmem:[%s13 + $0x4] sm:$0xf]
    %v2053 = vld [vmem:[%s13 + $0x8] sm:$0xf]
    %v2054 = vld [vmem:[%s13 + $0xc] sm:$0xf]
    %v2055 = vld [vmem:[%s13 + $0x10] sm:$0xf]
    %v2056 = vld [vmem:[%s13 + $0x14] sm:$0xf]
    %v2057 = vld [vmem:[%s13 + $0x18] sm:$0xf]
    %v2058 = vld [vmem:[%s13 + $0x1c] sm:$0xf]
    %v2059 = vld [vmem:[%s13 + $0x20] sm:$0xf]
    %v2060 = vld [vmem:[%s13 + $0x24] sm:$0xf]
    %v2061 = vpack.c.bf16 %v2050, %v2050
    %s2062 = scalar_lea.vmem %s13, 40
    %v2063 = vld [vmem:[%s2062] sm:$0xf]
    %v2064 = vld [vmem:[%s2062 + $0x4] sm:$0xf]
    %v2065 = vld [vmem:[%s2062 + $0x8] sm:$0xf]
    %v2066 = vld [vmem:[%s2062 + $0xc] sm:$0xf]
    %v2067 = vld [vmem:[%s2062 + $0x10] sm:$0xf]
    %v2068 = vld [vmem:[%s2062 + $0x14] sm:$0xf]
    %v2069 = vld [vmem:[%s2062 + $0x18] sm:$0xf]
    %v2070 = vld [vmem:[%s2062 + $0x1c] sm:$0xf]
    %v2071 = vld [vmem:[%s2062 + $0x20] sm:$0xf]
    %v2072 = vld [vmem:[%s2062 + $0x24] sm:$0xf]
    %v2074 = vshrl.u32 %v2061, 16
    %v2086 = vunpack.c.l.b16 %v2063
    %v2087 = vunpack.c.l.b16 %v2064
    %v2088 = vunpack.c.l.b16 %v2065
    %v2089 = vunpack.c.l.b16 %v2066
    %v2090 = vunpack.c.l.b16 %v2067
    %v2091 = vunpack.c.l.b16 %v2068
    %v2092 = vunpack.c.l.b16 %v2069
    %v2093 = vunpack.c.l.b16 %v2070
    %v2094 = vunpack.c.l.b16 %v2071
    %v2095 = vunpack.c.l.b16 %v2072
    %v2096 = vpack.c.b16 %v2087, %v2086
    %v2097 = vpack.c.b16 %v2089, %v2088
    %v2098 = vpack.c.b16 %v2091, %v2090
    %v2099 = vpack.c.b16 %v2093, %v2092
    %v2100 = vpack.c.b16 %v2095, %v2094
    %vm2106 = vcmask 654336
    %v2108 = vsel %vm2106, %v2074, 0
    %2110 = vmatprep.subr.bf16.mxu0 0
    %2111 = vmatpush1.bf16.msra.mxu0 0
    %2112 = vmatprep.subr.bf16.mxu0 0
    %2113 = vmatpush1.bf16.msra.mxu0 0
    %2114 = vmatprep.subr.bf16.mxu0 0
    %2115 = vmatpush1.bf16.msra.mxu0 0
    %2116 = vmatprep.subr.bf16.mxu0 0
    %2117 = vmatpush1.bf16.msra.mxu0 %v2100
    %2118 = vmatprep.subr.bf16.mxu0 0
    %2119 = vmatpush1.bf16.msra.mxu0 %v2099
    %2120 = vmatprep.subr.bf16.mxu0 0
    %2121 = vmatpush1.bf16.msra.mxu0 %v2098
    %2122 = vmatprep.subr.bf16.mxu0 0
    %2123 = vmatpush1.bf16.msra.mxu0 %v2097
    %2124 = vmatprep.subr.bf16.mxu0 0
    %2125 = vmatpush1.bf16.msra.mxu0 %v2096
    %2126 = vmatprep.subr.bf16.mxu0 0
    %2127 = vmatpush2.bf16.msra.mxu0 0
    %2128 = vmatprep.subr.bf16.mxu0 0
    %2129 = vmatpush2.bf16.msra.mxu0 0
    %2130 = vmatprep.subr.bf16.mxu0 0
    %2131 = vmatpush2.bf16.msra.mxu0 0
    %2132 = vmatprep.subr.bf16.mxu0 0
    %2133 = vmatpush2.bf16.msra.mxu0 0
    %2134 = vmatprep.subr.bf16.mxu0 0
    %2135 = vmatpush2.bf16.msra.mxu0 0
    %2136 = vmatprep.subr.bf16.mxu0 0
    %2137 = vmatpush2.bf16.msra.mxu0 0
    %2138 = vmatprep.subr.bf16.mxu0 0
    %2139 = vmatpush2.bf16.msra.mxu0 0
    %2140 = vmatprep.subr.bf16.mxu0 0
    %2141 = vmatpush2.bf16.msra.mxu0 0
    %2142 = vmatprep.mubr.bf16.mxu0 0
    %2143 = vmatmul.mubr.bf16.gmra.mxu0 %v2108
    %v2144 = vpop.f32.mrf.mxu0
    %v2145 = vadd.f32 0.0, %v2144
    %v2146 = vpop.f32.mrf.mxu0
    %v2147 = vpop.f32.mrf.mxu0
    %v2148 = vpop.f32.mrf.mxu0
    %2149 = vdwg.mxu0
    %v2160 = vunpack.c.l.b16 %v2051
    %v2161 = vunpack.c.l.b16 %v2052
    %v2162 = vunpack.c.l.b16 %v2053
    %v2163 = vunpack.c.l.b16 %v2054
    %v2164 = vunpack.c.l.b16 %v2055
    %v2165 = vunpack.c.l.b16 %v2056
    %v2166 = vunpack.c.l.b16 %v2057
    %v2167 = vunpack.c.l.b16 %v2058
    %v2168 = vunpack.c.l.b16 %v2059
    %v2169 = vunpack.c.l.b16 %v2060
    %v2170 = vpack.c.b16 %v2161, %v2160
    %v2171 = vpack.c.b16 %v2163, %v2162
    %v2172 = vpack.c.b16 %v2165, %v2164
    %v2173 = vpack.c.b16 %v2167, %v2166
    %v2174 = vpack.c.b16 %v2169, %v2168
    %v2180 = vsel %vm2106, %v2061, 0
    %2182 = vmatprep.subr.bf16.mxu0 0
    %2183 = vmatpush1.bf16.msra.mxu0 0
    %2184 = vmatprep.subr.bf16.mxu0 0
    %2185 = vmatpush1.bf16.msra.mxu0 0
    %2186 = vmatprep.subr.bf16.mxu0 0
    %2187 = vmatpush1.bf16.msra.mxu0 0
    %2188 = vmatprep.subr.bf16.mxu0 0
    %2189 = vmatpush1.bf16.msra.mxu0 %v2174
    %2190 = vmatprep.subr.bf16.mxu0 0
    %2191 = vmatpush1.bf16.msra.mxu0 %v2173
    %2192 = vmatprep.subr.bf16.mxu0 0
    %2193 = vmatpush1.bf16.msra.mxu0 %v2172
    %2194 = vmatprep.subr.bf16.mxu0 0
    %2195 = vmatpush1.bf16.msra.mxu0 %v2171
    %2196 = vmatprep.subr.bf16.mxu0 0
    %2197 = vmatpush1.bf16.msra.mxu0 %v2170
    %2198 = vmatprep.subr.bf16.mxu0 0
    %2199 = vmatpush2.bf16.msra.mxu0 0
    %2200 = vmatprep.subr.bf16.mxu0 0
    %2201 = vmatpush2.bf16.msra.mxu0 0
    %2202 = vmatprep.subr.bf16.mxu0 0
    %2203 = vmatpush2.bf16.msra.mxu0 0
    %2204 = vmatprep.subr.bf16.mxu0 0
    %2205 = vmatpush2.bf16.msra.mxu0 0
    %2206 = vmatprep.subr.bf16.mxu0 0
    %2207 = vmatpush2.bf16.msra.mxu0 0
    %2208 = vmatprep.subr.bf16.mxu0 0
    %2209 = vmatpush2.bf16.msra.mxu0 0
    %2210 = vmatprep.subr.bf16.mxu0 0
    %2211 = vmatpush2.bf16.msra.mxu0 0
    %2212 = vmatprep.subr.bf16.mxu0 0
    %2213 = vmatpush2.bf16.msra.mxu0 0
    %2214 = vmatprep.mubr.bf16.mxu0 0
    %2215 = vmatmul.mubr.bf16.gmra.mxu0 %v2180
    %v2216 = vpop.f32.mrf.mxu0
    %v2217 = vadd.f32 %v2145, %v2216
    %v2218 = vpop.f32.mrf.mxu0
    %v2219 = vpop.f32.mrf.mxu0
    %v2220 = vpop.f32.mrf.mxu0
    %2221 = vdwg.mxu0
    %s2222 = scalar_lea.vmem %s13, 80
    %v2223 = vld [vmem:[%s2222] sm:$0xf]
    %v2224 = vld [vmem:[%s2222 + $0x4] sm:$0xf]
    %v2225 = vld [vmem:[%s2222 + $0x8] sm:$0xf]
    %v2226 = vld [vmem:[%s2222 + $0xc] sm:$0xf]
    %v2227 = vld [vmem:[%s2222 + $0x10] sm:$0xf]
    %v2228 = vld [vmem:[%s2222 + $0x14] sm:$0xf]
    %v2229 = vld [vmem:[%s2222 + $0x18] sm:$0xf]
    %v2230 = vld [vmem:[%s2222 + $0x1c] sm:$0xf]
    %v2231 = vld [vmem:[%s2222 + $0x20] sm:$0xf]
    %v2232 = vld [vmem:[%s2222 + $0x24] sm:$0xf]
    %v2234 = vrot.slane %v2061, 1
    %v2245 = vunpack.c.l.b16 %v2223
    %v2246 = vunpack.c.l.b16 %v2224
    %v2247 = vunpack.c.l.b16 %v2225
    %v2248 = vunpack.c.l.b16 %v2226
    %v2249 = vunpack.c.l.b16 %v2227
    %v2250 = vunpack.c.l.b16 %v2228
    %v2251 = vunpack.c.l.b16 %v2229
    %v2252 = vunpack.c.l.b16 %v2230
    %v2253 = vunpack.c.l.b16 %v2231
    %v2254 = vunpack.c.l.b16 %v2232
    %v2255 = vpack.c.b16 %v2246, %v2245
    %v2256 = vpack.c.b16 %v2248, %v2247
    %v2257 = vpack.c.b16 %v2250, %v2249
    %v2258 = vpack.c.b16 %v2252, %v2251
    %v2259 = vpack.c.b16 %v2254, %v2253
    %v2266 = vsel %vm2106, %v2234, 0
    %2268 = vmatprep.subr.bf16.mxu0 0
    %2269 = vmatpush1.bf16.msra.mxu0 0
    %2270 = vmatprep.subr.bf16.mxu0 0
    %2271 = vmatpush1.bf16.msra.mxu0 0
    %2272 = vmatprep.subr.bf16.mxu0 0
    %2273 = vmatpush1.bf16.msra.mxu0 0
    %2274 = vmatprep.subr.bf16.mxu0 0
    %2275 = vmatpush1.bf16.msra.mxu0 %v2259
    %2276 = vmatprep.subr.bf16.mxu0 0
    %2277 = vmatpush1.bf16.msra.mxu0 %v2258
    %2278 = vmatprep.subr.bf16.mxu0 0
    %2279 = vmatpush1.bf16.msra.mxu0 %v2257
    %2280 = vmatprep.subr.bf16.mxu0 0
    %2281 = vmatpush1.bf16.msra.mxu0 %v2256
    %2282 = vmatprep.subr.bf16.mxu0 0
    %2283 = vmatpush1.bf16.msra.mxu0 %v2255
    %2284 = vmatprep.subr.bf16.mxu0 0
    %2285 = vmatpush2.bf16.msra.mxu0 0
    %2286 = vmatprep.subr.bf16.mxu0 0
    %2287 = vmatpush2.bf16.msra.mxu0 0
    %2288 = vmatprep.subr.bf16.mxu0 0
    %2289 = vmatpush2.bf16.msra.mxu0 0
    %2290 = vmatprep.subr.bf16.mxu0 0
    %2291 = vmatpush2.bf16.msra.mxu0 0
    %2292 = vmatprep.subr.bf16.mxu0 0
    %2293 = vmatpush2.bf16.msra.mxu0 0
    %2294 = vmatprep.subr.bf16.mxu0 0
    %2295 = vmatpush2.bf16.msra.mxu0 0
    %2296 = vmatprep.subr.bf16.mxu0 0
    %2297 = vmatpush2.bf16.msra.mxu0 0
    %2298 = vmatprep.subr.bf16.mxu0 0
    %2299 = vmatpush2.bf16.msra.mxu0 0
    %2300 = vmatprep.mubr.bf16.mxu0 0
    %2301 = vmatmul.mubr.bf16.gmra.mxu0 %v2266
    %v2302 = vpop.f32.mrf.mxu0
    %v2303 = vadd.f32 0.0, %v2302
    %v2304 = vpop.f32.mrf.mxu0
    %v2305 = vpop.f32.mrf.mxu0
    %v2306 = vpop.f32.mrf.mxu0
    %2307 = vdwg.mxu0
    %v2308 = vadd.f32 %v2217, %v2303
    %s2309 = scalar_lea.vmem %s13, 120
    %v2310 = vld [vmem:[%s2309] sm:$0xf]
    %v2311 = vld [vmem:[%s2309 + $0x4] sm:$0xf]
    %v2312 = vld [vmem:[%s2309 + $0x8] sm:$0xf]
    %v2313 = vld [vmem:[%s2309 + $0xc] sm:$0xf]
    %v2314 = vld [vmem:[%s2309 + $0x10] sm:$0xf]
    %v2315 = vld [vmem:[%s2309 + $0x14] sm:$0xf]
    %v2316 = vld [vmem:[%s2309 + $0x18] sm:$0xf]
    %v2317 = vld [vmem:[%s2309 + $0x1c] sm:$0xf]
    %v2318 = vld [vmem:[%s2309 + $0x20] sm:$0xf]
    %v2319 = vld [vmem:[%s2309 + $0x24] sm:$0xf]
    %v2320 = vrot.slane %v2074, 1
    %v2331 = vunpack.c.l.b16 %v2310
    %v2332 = vunpack.c.l.b16 %v2311
    %v2333 = vunpack.c.l.b16 %v2312
    %v2334 = vunpack.c.l.b16 %v2313
    %v2335 = vunpack.c.l.b16 %v2314
    %v2336 = vunpack.c.l.b16 %v2315
    %v2337 = vunpack.c.l.b16 %v2316
    %v2338 = vunpack.c.l.b16 %v2317
    %v2339 = vunpack.c.l.b16 %v2318
    %v2340 = vunpack.c.l.b16 %v2319
    %v2341 = vpack.c.b16 %v2332, %v2331
    %v2342 = vpack.c.b16 %v2334, %v2333
    %v2343 = vpack.c.b16 %v2336, %v2335
    %v2344 = vpack.c.b16 %v2338, %v2337
    %v2345 = vpack.c.b16 %v2340, %v2339
    %v2352 = vsel %vm2106, %v2320, 0
    %2354 = vmatprep.subr.bf16.mxu0 0
    %2355 = vmatpush1.bf16.msra.mxu0 0
    %2356 = vmatprep.subr.bf16.mxu0 0
    %2357 = vmatpush1.bf16.msra.mxu0 0
    %2358 = vmatprep.subr.bf16.mxu0 0
    %2359 = vmatpush1.bf16.msra.mxu0 0
    %2360 = vmatprep.subr.bf16.mxu0 0
    %2361 = vmatpush1.bf16.msra.mxu0 %v2345
    %2362 = vmatprep.subr.bf16.mxu0 0
    %2363 = vmatpush1.bf16.msra.mxu0 %v2344
    %2364 = vmatprep.subr.bf16.mxu0 0
    %2365 = vmatpush1.bf16.msra.mxu0 %v2343
    %2366 = vmatprep.subr.bf16.mxu0 0
    %2367 = vmatpush1.bf16.msra.mxu0 %v2342
    %2368 = vmatprep.subr.bf16.mxu0 0
    %2369 = vmatpush1.bf16.msra.mxu0 %v2341
    %2370 = vmatprep.subr.bf16.mxu0 0
    %2371 = vmatpush2.bf16.msra.mxu0 0
    %2372 = vmatprep.subr.bf16.mxu0 0
    %2373 = vmatpush2.bf16.msra.mxu0 0
    %2374 = vmatprep.subr.bf16.mxu0 0
    %2375 = vmatpush2.bf16.msra.mxu0 0
    %2376 = vmatprep.subr.bf16.mxu0 0
    %2377 = vmatpush2.bf16.msra.mxu0 0
    %2378 = vmatprep.subr.bf16.mxu0 0
    %2379 = vmatpush2.bf16.msra.mxu0 0
    %2380 = vmatprep.subr.bf16.mxu0 0
    %2381 = vmatpush2.bf16.msra.mxu0 0
    %2382 = vmatprep.subr.bf16.mxu0 0
    %2383 = vmatpush2.bf16.msra.mxu0 0
    %2384 = vmatprep.subr.bf16.mxu0 0
    %2385 = vmatpush2.bf16.msra.mxu0 0
    %2386 = vmatprep.mubr.bf16.mxu0 0
    %2387 = vmatmul.mubr.bf16.gmra.mxu0 %v2352
    %v2388 = vpop.f32.mrf.mxu0
    %v2389 = vadd.f32 0.0, %v2388
    %v2390 = vpop.f32.mrf.mxu0
    %v2391 = vpop.f32.mrf.mxu0
    %v2392 = vpop.f32.mrf.mxu0
    %2393 = vdwg.mxu0
    %v2394 = vadd.f32 %v2308, %v2389
    %s2395 = scalar_lea.vmem %s13, 160
    %v2396 = vld [vmem:[%s2395] sm:$0xf]
    %v2397 = vld [vmem:[%s2395 + $0x4] sm:$0xf]
    %v2398 = vld [vmem:[%s2395 + $0x8] sm:$0xf]
    %v2399 = vld [vmem:[%s2395 + $0xc] sm:$0xf]
    %v2400 = vld [vmem:[%s2395 + $0x10] sm:$0xf]
    %v2401 = vld [vmem:[%s2395 + $0x14] sm:$0xf]
    %v2402 = vld [vmem:[%s2395 + $0x18] sm:$0xf]
    %v2403 = vld [vmem:[%s2395 + $0x1c] sm:$0xf]
    %v2404 = vld [vmem:[%s2395 + $0x20] sm:$0xf]
    %v2405 = vld [vmem:[%s2395 + $0x24] sm:$0xf]
    %v2406 = vrot.slane %v2061, 2
    %v2417 = vunpack.c.l.b16 %v2396
    %v2418 = vunpack.c.l.b16 %v2397
    %v2419 = vunpack.c.l.b16 %v2398
    %v2420 = vunpack.c.l.b16 %v2399
    %v2421 = vunpack.c.l.b16 %v2400
    %v2422 = vunpack.c.l.b16 %v2401
    %v2423 = vunpack.c.l.b16 %v2402
    %v2424 = vunpack.c.l.b16 %v2403
    %v2425 = vunpack.c.l.b16 %v2404
    %v2426 = vunpack.c.l.b16 %v2405
    %v2427 = vpack.c.b16 %v2418, %v2417
    %v2428 = vpack.c.b16 %v2420, %v2419
    %v2429 = vpack.c.b16 %v2422, %v2421
    %v2430 = vpack.c.b16 %v2424, %v2423
    %v2431 = vpack.c.b16 %v2426, %v2425
    %v2438 = vsel %vm2106, %v2406, 0
    %2440 = vmatprep.subr.bf16.mxu0 0
    %2441 = vmatpush1.bf16.msra.mxu0 0
    %2442 = vmatprep.subr.bf16.mxu0 0
    %2443 = vmatpush1.bf16.msra.mxu0 0
    %2444 = vmatprep.subr.bf16.mxu0 0
    %2445 = vmatpush1.bf16.msra.mxu0 0
    %2446 = vmatprep.subr.bf16.mxu0 0
    %2447 = vmatpush1.bf16.msra.mxu0 %v2431
    %2448 = vmatprep.subr.bf16.mxu0 0
    %2449 = vmatpush1.bf16.msra.mxu0 %v2430
    %2450 = vmatprep.subr.bf16.mxu0 0
    %2451 = vmatpush1.bf16.msra.mxu0 %v2429
    %2452 = vmatprep.subr.bf16.mxu0 0
    %2453 = vmatpush1.bf16.msra.mxu0 %v2428
    %2454 = vmatprep.subr.bf16.mxu0 0
    %2455 = vmatpush1.bf16.msra.mxu0 %v2427
    %2456 = vmatprep.subr.bf16.mxu0 0
    %2457 = vmatpush2.bf16.msra.mxu0 0
    %2458 = vmatprep.subr.bf16.mxu0 0
    %2459 = vmatpush2.bf16.msra.mxu0 0
    %2460 = vmatprep.subr.bf16.mxu0 0
    %2461 = vmatpush2.bf16.msra.mxu0 0
    %2462 = vmatprep.subr.bf16.mxu0 0
    %2463 = vmatpush2.bf16.msra.mxu0 0
    %2464 = vmatprep.subr.bf16.mxu0 0
    %2465 = vmatpush2.bf16.msra.mxu0 0
    %2466 = vmatprep.subr.bf16.mxu0 0
    %2467 = vmatpush2.bf16.msra.mxu0 0
    %2468 = vmatprep.subr.bf16.mxu0 0
    %2469 = vmatpush2.bf16.msra.mxu0 0
    %2470 = vmatprep.subr.bf16.mxu0 0
    %2471 = vmatpush2.bf16.msra.mxu0 0
    %2472 = vmatprep.mubr.bf16.mxu0 0
    %2473 = vmatmul.mubr.bf16.gmra.mxu0 %v2438
    %v2474 = vpop.f32.mrf.mxu0
    %v2475 = vadd.f32 0.0, %v2474
    %v2476 = vpop.f32.mrf.mxu0
    %v2477 = vpop.f32.mrf.mxu0
    %v2478 = vpop.f32.mrf.mxu0
    %2479 = vdwg.mxu0
    %v2480 = vadd.f32 %v2394, %v2475
    %s2481 = scalar_lea.vmem %s0, 32
    %v2482 = vld [vmem:[%s2481] sm:$0xff]
    %v2483 = vld [vmem:[%s2481 + $0x8] sm:$0xff]
    %v2484 = vld [vmem:[%s2481 + $0x10] sm:$0xff]
    %v2485 = vld [vmem:[%s2481 + $0x18] sm:$0xff]
    %v2486 = vpack.c.bf16 %v2483, %v2482
    %v2487 = vpack.c.bf16 %v2485, %v2484
    %v2489 = vshrl.u32 %v2486, 16
    %v2491 = vshll.u32 %v2486, 16
    %v2493 = vrot.slane %v2491, 1
    %v2494 = vor.u32 %v2489, %v2493
    %v2496 = vshll.u32 %v2487, 16
    %v2498 = vrot.slane %v2496, 1
    %v2499 = vsel %vm189, %v2494, %v2498
    %v2500 = vshrl.u32 %v2487, 16
    %v2502 = vor.u32 %v2500, %v2498
    %v2504 = vsel %vm225, %v2499, 0
    %v2507 = vsel %vm225, %v2502, 0
    %2509 = vmatprep.subr.bf16.mxu0 0
    %2510 = vmatpush1.bf16.msra.mxu0 0
    %2511 = vmatprep.subr.bf16.mxu0 0
    %2512 = vmatpush1.bf16.msra.mxu0 0
    %2513 = vmatprep.subr.bf16.mxu0 0
    %2514 = vmatpush1.bf16.msra.mxu0 0
    %2515 = vmatprep.subr.bf16.mxu0 0
    %2516 = vmatpush1.bf16.msra.mxu0 0
    %2517 = vmatprep.subr.bf16.mxu0 0
    %2518 = vmatpush1.bf16.msra.mxu0 0
    %2519 = vmatprep.subr.bf16.mxu0 0
    %2520 = vmatpush1.bf16.msra.mxu0 0
    %2521 = vmatprep.subr.bf16.mxu0 %v220
    %2522 = vmatpush1.bf16.msra.mxu0 %v219
    %2523 = vmatprep.subr.bf16.mxu0 %v218
    %2524 = vmatpush1.bf16.msra.mxu0 %v217
    %2525 = vmatprep.subr.bf16.mxu0 0
    %2526 = vmatpush2.bf16.msra.mxu0 0
    %2527 = vmatprep.subr.bf16.mxu0 0
    %2528 = vmatpush2.bf16.msra.mxu0 0
    %2529 = vmatprep.subr.bf16.mxu0 0
    %2530 = vmatpush2.bf16.msra.mxu0 0
    %2531 = vmatprep.subr.bf16.mxu0 0
    %2532 = vmatpush2.bf16.msra.mxu0 0
    %2533 = vmatprep.subr.bf16.mxu0 0
    %2534 = vmatpush2.bf16.msra.mxu0 0
    %2535 = vmatprep.subr.bf16.mxu0 0
    %2536 = vmatpush2.bf16.msra.mxu0 0
    %2537 = vmatprep.subr.bf16.mxu0 0
    %2538 = vmatpush2.bf16.msra.mxu0 0
    %2539 = vmatprep.subr.bf16.mxu0 0
    %2540 = vmatpush2.bf16.msra.mxu0 0
    %2541 = vmatprep.mubr.bf16.mxu0 0
    %2542 = vmatmul.mubr.bf16.gmra.mxu0 %v2504
    %v2543 = vpop.f32.mrf.mxu0
    %v2544 = vadd.f32 0.0, %v2543
    %v2545 = vpop.f32.mrf.mxu0
    %v2546 = vadd.f32 0.0, %v2545
    %v2547 = vpop.f32.mrf.mxu0
    %v2548 = vadd.f32 0.0, %v2547
    %v2549 = vpop.f32.mrf.mxu0
    %v2550 = vadd.f32 0.0, %v2549
    %2551 = vmatprep.mubr.bf16.mxu0 0
    %2552 = vmatmul.mubr.bf16.gmra.mxu0 %v2507
    %v2553 = vpop.f32.mrf.mxu0
    %v2554 = vadd.f32 0.0, %v2553
    %v2555 = vpop.f32.mrf.mxu0
    %v2556 = vadd.f32 0.0, %v2555
    %v2557 = vpop.f32.mrf.mxu0
    %v2558 = vadd.f32 0.0, %v2557
    %v2559 = vpop.f32.mrf.mxu0
    %v2560 = vadd.f32 0.0, %v2559
    %2561 = vdwg.mxu0
    %v2562 = vsel %vm225, %v2486, 0
    %v2564 = vsel %vm225, %v2487, 0
    %2566 = vmatprep.subr.bf16.mxu0 0
    %2567 = vmatpush1.bf16.msra.mxu0 0
    %2568 = vmatprep.subr.bf16.mxu0 0
    %2569 = vmatpush1.bf16.msra.mxu0 0
    %2570 = vmatprep.subr.bf16.mxu0 0
    %2571 = vmatpush1.bf16.msra.mxu0 0
    %2572 = vmatprep.subr.bf16.mxu0 0
    %2573 = vmatpush1.bf16.msra.mxu0 0
    %2574 = vmatprep.subr.bf16.mxu0 0
    %2575 = vmatpush1.bf16.msra.mxu0 0
    %2576 = vmatprep.subr.bf16.mxu0 0
    %2577 = vmatpush1.bf16.msra.mxu0 0
    %2578 = vmatprep.subr.bf16.mxu0 %v300
    %2579 = vmatpush1.bf16.msra.mxu0 %v299
    %2580 = vmatprep.subr.bf16.mxu0 %v298
    %2581 = vmatpush1.bf16.msra.mxu0 %v297
    %2582 = vmatprep.subr.bf16.mxu0 0
    %2583 = vmatpush2.bf16.msra.mxu0 0
    %2584 = vmatprep.subr.bf16.mxu0 0
    %2585 = vmatpush2.bf16.msra.mxu0 0
    %2586 = vmatprep.subr.bf16.mxu0 0
    %2587 = vmatpush2.bf16.msra.mxu0 0
    %2588 = vmatprep.subr.bf16.mxu0 0
    %2589 = vmatpush2.bf16.msra.mxu0 0
    %2590 = vmatprep.subr.bf16.mxu0 0
    %2591 = vmatpush2.bf16.msra.mxu0 0
    %2592 = vmatprep.subr.bf16.mxu0 0
    %2593 = vmatpush2.bf16.msra.mxu0 0
    %2594 = vmatprep.subr.bf16.mxu0 0
    %2595 = vmatpush2.bf16.msra.mxu0 0
    %2596 = vmatprep.subr.bf16.mxu0 0
    %2597 = vmatpush2.bf16.msra.mxu0 0
    %2598 = vmatprep.mubr.bf16.mxu0 0
    %2599 = vmatmul.mubr.bf16.gmra.mxu0 %v2562
    %v2600 = vpop.f32.mrf.mxu0
    %v2601 = vadd.f32 %v2544, %v2600
    %v2602 = vpop.f32.mrf.mxu0
    %v2603 = vadd.f32 %v2546, %v2602
    %v2604 = vpop.f32.mrf.mxu0
    %v2605 = vadd.f32 %v2548, %v2604
    %v2606 = vpop.f32.mrf.mxu0
    %v2607 = vadd.f32 %v2550, %v2606
    %2608 = vmatprep.mubr.bf16.mxu0 0
    %2609 = vmatmul.mubr.bf16.gmra.mxu0 %v2564
    %v2610 = vpop.f32.mrf.mxu0
    %v2611 = vadd.f32 %v2554, %v2610
    %v2612 = vpop.f32.mrf.mxu0
    %v2613 = vadd.f32 %v2556, %v2612
    %v2614 = vpop.f32.mrf.mxu0
    %v2615 = vadd.f32 %v2558, %v2614
    %v2616 = vpop.f32.mrf.mxu0
    %v2617 = vadd.f32 %v2560, %v2616
    %2618 = vdwg.mxu0
    %v2621 = vrot.slane %v2486, 1
    %v2622 = vrot.slane %v2487, 1
    %v2623 = vsel %vm369, %v2621, %v2622
    %v2625 = vsel %vm225, %v2623, 0
    %v2628 = vsel %vm225, %v2622, 0
    %2630 = vmatprep.subr.bf16.mxu0 0
    %2631 = vmatpush1.bf16.msra.mxu0 0
    %2632 = vmatprep.subr.bf16.mxu0 0
    %2633 = vmatpush1.bf16.msra.mxu0 0
    %2634 = vmatprep.subr.bf16.mxu0 0
    %2635 = vmatpush1.bf16.msra.mxu0 0
    %2636 = vmatprep.subr.bf16.mxu0 0
    %2637 = vmatpush1.bf16.msra.mxu0 0
    %2638 = vmatprep.subr.bf16.mxu0 0
    %2639 = vmatpush1.bf16.msra.mxu0 0
    %2640 = vmatprep.subr.bf16.mxu0 0
    %2641 = vmatpush1.bf16.msra.mxu0 0
    %2642 = vmatprep.subr.bf16.mxu0 %v388
    %2643 = vmatpush1.bf16.msra.mxu0 %v387
    %2644 = vmatprep.subr.bf16.mxu0 %v386
    %2645 = vmatpush1.bf16.msra.mxu0 %v385
    %2646 = vmatprep.subr.bf16.mxu0 0
    %2647 = vmatpush2.bf16.msra.mxu0 0
    %2648 = vmatprep.subr.bf16.mxu0 0
    %2649 = vmatpush2.bf16.msra.mxu0 0
    %2650 = vmatprep.subr.bf16.mxu0 0
    %2651 = vmatpush2.bf16.msra.mxu0 0
    %2652 = vmatprep.subr.bf16.mxu0 0
    %2653 = vmatpush2.bf16.msra.mxu0 0
    %2654 = vmatprep.subr.bf16.mxu0 0
    %2655 = vmatpush2.bf16.msra.mxu0 0
    %2656 = vmatprep.subr.bf16.mxu0 0
    %2657 = vmatpush2.bf16.msra.mxu0 0
    %2658 = vmatprep.subr.bf16.mxu0 0
    %2659 = vmatpush2.bf16.msra.mxu0 0
    %2660 = vmatprep.subr.bf16.mxu0 0
    %2661 = vmatpush2.bf16.msra.mxu0 0
    %2662 = vmatprep.mubr.bf16.mxu0 0
    %2663 = vmatmul.mubr.bf16.gmra.mxu0 %v2625
    %v2664 = vpop.f32.mrf.mxu0
    %v2665 = vadd.f32 0.0, %v2664
    %v2666 = vpop.f32.mrf.mxu0
    %v2667 = vadd.f32 0.0, %v2666
    %v2668 = vpop.f32.mrf.mxu0
    %v2669 = vadd.f32 0.0, %v2668
    %v2670 = vpop.f32.mrf.mxu0
    %v2671 = vadd.f32 0.0, %v2670
    %2672 = vmatprep.mubr.bf16.mxu0 0
    %2673 = vmatmul.mubr.bf16.gmra.mxu0 %v2628
    %v2674 = vpop.f32.mrf.mxu0
    %v2675 = vadd.f32 0.0, %v2674
    %v2676 = vpop.f32.mrf.mxu0
    %v2677 = vadd.f32 0.0, %v2676
    %v2678 = vpop.f32.mrf.mxu0
    %v2679 = vadd.f32 0.0, %v2678
    %v2680 = vpop.f32.mrf.mxu0
    %v2681 = vadd.f32 0.0, %v2680
    %2682 = vdwg.mxu0
    %v2683 = vadd.f32 %v2601, %v2665
    %v2684 = vadd.f32 %v2603, %v2667
    %v2685 = vadd.f32 %v2605, %v2669
    %v2686 = vadd.f32 %v2607, %v2671
    %v2687 = vadd.f32 %v2611, %v2675
    %v2688 = vadd.f32 %v2613, %v2677
    %v2689 = vadd.f32 %v2615, %v2679
    %v2690 = vadd.f32 %v2617, %v2681
    %v2691 = vrot.slane %v2489, 1
    %v2692 = vrot.slane %v2491, 2
    %v2693 = vor.u32 %v2691, %v2692
    %v2694 = vrot.slane %v2500, 1
    %v2695 = vrot.slane %v2496, 2
    %v2696 = vor.u32 %v2694, %v2695
    %v2697 = vsel %vm465, %v2693, %v2696
    %v2699 = vsel %vm225, %v2697, 0
    %v2702 = vsel %vm225, %v2696, 0
    %2704 = vmatprep.subr.bf16.mxu0 0
    %2705 = vmatpush1.bf16.msra.mxu0 0
    %2706 = vmatprep.subr.bf16.mxu0 0
    %2707 = vmatpush1.bf16.msra.mxu0 0
    %2708 = vmatprep.subr.bf16.mxu0 0
    %2709 = vmatpush1.bf16.msra.mxu0 0
    %2710 = vmatprep.subr.bf16.mxu0 0
    %2711 = vmatpush1.bf16.msra.mxu0 0
    %2712 = vmatprep.subr.bf16.mxu0 0
    %2713 = vmatpush1.bf16.msra.mxu0 0
    %2714 = vmatprep.subr.bf16.mxu0 0
    %2715 = vmatpush1.bf16.msra.mxu0 0
    %2716 = vmatprep.subr.bf16.mxu0 %v488
    %2717 = vmatpush1.bf16.msra.mxu0 %v487
    %2718 = vmatprep.subr.bf16.mxu0 %v486
    %2719 = vmatpush1.bf16.msra.mxu0 %v485
    %2720 = vmatprep.subr.bf16.mxu0 0
    %2721 = vmatpush2.bf16.msra.mxu0 0
    %2722 = vmatprep.subr.bf16.mxu0 0
    %2723 = vmatpush2.bf16.msra.mxu0 0
    %2724 = vmatprep.subr.bf16.mxu0 0
    %2725 = vmatpush2.bf16.msra.mxu0 0
    %2726 = vmatprep.subr.bf16.mxu0 0
    %2727 = vmatpush2.bf16.msra.mxu0 0
    %2728 = vmatprep.subr.bf16.mxu0 0
    %2729 = vmatpush2.bf16.msra.mxu0 0
    %2730 = vmatprep.subr.bf16.mxu0 0
    %2731 = vmatpush2.bf16.msra.mxu0 0
    %2732 = vmatprep.subr.bf16.mxu0 0
    %2733 = vmatpush2.bf16.msra.mxu0 0
    %2734 = vmatprep.subr.bf16.mxu0 0
    %2735 = vmatpush2.bf16.msra.mxu0 0
    %2736 = vmatprep.mubr.bf16.mxu0 0
    %2737 = vmatmul.mubr.bf16.gmra.mxu0 %v2699
    %v2738 = vpop.f32.mrf.mxu0
    %v2739 = vadd.f32 0.0, %v2738
    %v2740 = vpop.f32.mrf.mxu0
    %v2741 = vadd.f32 0.0, %v2740
    %v2742 = vpop.f32.mrf.mxu0
    %v2743 = vadd.f32 0.0, %v2742
    %v2744 = vpop.f32.mrf.mxu0
    %v2745 = vadd.f32 0.0, %v2744
    %2746 = vmatprep.mubr.bf16.mxu0 0
    %2747 = vmatmul.mubr.bf16.gmra.mxu0 %v2702
    %v2748 = vpop.f32.mrf.mxu0
    %v2749 = vadd.f32 0.0, %v2748
    %v2750 = vpop.f32.mrf.mxu0
    %v2751 = vadd.f32 0.0, %v2750
    %v2752 = vpop.f32.mrf.mxu0
    %v2753 = vadd.f32 0.0, %v2752
    %v2754 = vpop.f32.mrf.mxu0
    %v2755 = vadd.f32 0.0, %v2754
    %2756 = vdwg.mxu0
    %v2757 = vadd.f32 %v2683, %v2739
    %v2758 = vadd.f32 %v2684, %v2741
    %v2759 = vadd.f32 %v2685, %v2743
    %v2760 = vadd.f32 %v2686, %v2745
    %v2761 = vadd.f32 %v2687, %v2749
    %v2762 = vadd.f32 %v2688, %v2751
    %v2763 = vadd.f32 %v2689, %v2753
    %v2764 = vadd.f32 %v2690, %v2755
    %v2765 = vrot.slane %v2486, 2
    %v2766 = vrot.slane %v2487, 2
    %v2767 = vsel %vm565, %v2765, %v2766
    %v2769 = vsel %vm225, %v2767, 0
    %v2772 = vsel %vm225, %v2766, 0
    %2774 = vmatprep.subr.bf16.mxu0 0
    %2775 = vmatpush1.bf16.msra.mxu0 0
    %2776 = vmatprep.subr.bf16.mxu0 0
    %2777 = vmatpush1.bf16.msra.mxu0 0
    %2778 = vmatprep.subr.bf16.mxu0 0
    %2779 = vmatpush1.bf16.msra.mxu0 0
    %2780 = vmatprep.subr.bf16.mxu0 0
    %2781 = vmatpush1.bf16.msra.mxu0 0
    %2782 = vmatprep.subr.bf16.mxu0 0
    %2783 = vmatpush1.bf16.msra.mxu0 0
    %2784 = vmatprep.subr.bf16.mxu0 0
    %2785 = vmatpush1.bf16.msra.mxu0 0
    %2786 = vmatprep.subr.bf16.mxu0 %v584
    %2787 = vmatpush1.bf16.msra.mxu0 %v583
    %2788 = vmatprep.subr.bf16.mxu0 %v582
    %2789 = vmatpush1.bf16.msra.mxu0 %v581
    %2790 = vmatprep.subr.bf16.mxu0 0
    %2791 = vmatpush2.bf16.msra.mxu0 0
    %2792 = vmatprep.subr.bf16.mxu0 0
    %2793 = vmatpush2.bf16.msra.mxu0 0
    %2794 = vmatprep.subr.bf16.mxu0 0
    %2795 = vmatpush2.bf16.msra.mxu0 0
    %2796 = vmatprep.subr.bf16.mxu0 0
    %2797 = vmatpush2.bf16.msra.mxu0 0
    %2798 = vmatprep.subr.bf16.mxu0 0
    %2799 = vmatpush2.bf16.msra.mxu0 0
    %2800 = vmatprep.subr.bf16.mxu0 0
    %2801 = vmatpush2.bf16.msra.mxu0 0
    %2802 = vmatprep.subr.bf16.mxu0 0
    %2803 = vmatpush2.bf16.msra.mxu0 0
    %2804 = vmatprep.subr.bf16.mxu0 0
    %2805 = vmatpush2.bf16.msra.mxu0 0
    %2806 = vmatprep.mubr.bf16.mxu0 0
    %2807 = vmatmul.mubr.bf16.gmra.mxu0 %v2769
    %v2808 = vpop.f32.mrf.mxu0
    %v2809 = vadd.f32 0.0, %v2808
    %v2810 = vpop.f32.mrf.mxu0
    %v2811 = vadd.f32 0.0, %v2810
    %v2812 = vpop.f32.mrf.mxu0
    %v2813 = vadd.f32 0.0, %v2812
    %v2814 = vpop.f32.mrf.mxu0
    %v2815 = vadd.f32 0.0, %v2814
    %2816 = vmatprep.mubr.bf16.mxu0 0
    %2817 = vmatmul.mubr.bf16.gmra.mxu0 %v2772
    %v2818 = vpop.f32.mrf.mxu0
    %v2819 = vadd.f32 0.0, %v2818
    %v2820 = vpop.f32.mrf.mxu0
    %v2821 = vadd.f32 0.0, %v2820
    %v2822 = vpop.f32.mrf.mxu0
    %v2823 = vadd.f32 0.0, %v2822
    %v2824 = vpop.f32.mrf.mxu0
    %v2825 = vadd.f32 0.0, %v2824
    %2826 = vdwg.mxu0
    %v2827 = vadd.f32 %v2757, %v2809
    %v2828 = vadd.f32 %v2758, %v2811
    %v2829 = vadd.f32 %v2759, %v2813
    %v2830 = vadd.f32 %v2760, %v2815
    %v2831 = vadd.f32 %v2761, %v2819
    %v2832 = vadd.f32 %v2762, %v2821
    %v2833 = vadd.f32 %v2763, %v2823
    %v2834 = vadd.f32 %v2764, %v2825
    %v2835 = vadd.f32 %v2827, %v661
    %v2836 = vadd.f32 %v2828, %v665
    %v2837 = vadd.f32 %v2829, %v661
    %v2838 = vadd.f32 %v2830, %v665
    %v2839 = vadd.f32 %v2831, %v661
    %v2840 = vadd.f32 %v2832, %v665
    %v2841 = vadd.f32 %v2833, %v661
    %v2842 = vadd.f32 %v2834, %v665
    %v2843 = vmax.f32 %v2835, 0.0
    %v2844 = vmax.f32 %v2836, 0.0
    %v2845 = vmax.f32 %v2837, 0.0
    %v2846 = vmax.f32 %v2838, 0.0
    %v2847 = vmax.f32 %v2839, 0.0
    %v2848 = vmax.f32 %v2840, 0.0
    %v2849 = vmax.f32 %v2841, 0.0
    %v2850 = vmax.f32 %v2842, 0.0
    %v2852 = vsel %vm693, %v2849, 0
    %v2855 = vsel %vm693, %v2850, 0
    %2857 = vmatprep.subr.mxu0 0.0
    %2858 = vmatpush1.msra.mxu0 0.0
    %2859 = vmatprep.subr.mxu0 0.0
    %2860 = vmatpush1.msra.mxu0 0.0
    %2861 = vmatprep.subr.mxu0 0.0
    %2862 = vmatpush1.msra.mxu0 0.0
    %2863 = vmatprep.subr.mxu0 0.0
    %2864 = vmatpush1.msra.mxu0 0.0
    %2865 = vmatprep.subr.mxu0 0.0
    %2866 = vmatpush1.msra.mxu0 0.0
    %2867 = vmatprep.subr.mxu0 0.0
    %2868 = vmatpush1.msra.mxu0 0.0
    %2869 = vmatprep.subr.mxu0 0.0
    %2870 = vmatpush1.msra.mxu0 0.0
    %2871 = vmatprep.subr.mxu0 0.0
    %2872 = vmatpush1.msra.mxu0 0.0
    %2873 = vmatprep.subr.mxu0 0.0
    %2874 = vmatpush1.msra.mxu0 0.0
    %2875 = vmatprep.subr.mxu0 0.0
    %2876 = vmatpush1.msra.mxu0 0.0
    %2877 = vmatprep.subr.mxu0 0.0
    %2878 = vmatpush1.msra.mxu0 0.0
    %2879 = vmatprep.subr.mxu0 0.0
    %2880 = vmatpush1.msra.mxu0 0.0
    %2881 = vmatprep.subr.mxu0 %v2855
    %2882 = vmatpush1.msra.mxu0 %v2852
    %2883 = vmatprep.subr.mxu0 %v2848
    %2884 = vmatpush1.msra.mxu0 %v2847
    %2885 = vmatprep.subr.mxu0 %v2846
    %2886 = vmatpush1.msra.mxu0 %v2845
    %2887 = vmatprep.subr.mxu0 %v2844
    %2888 = vmatpush1.msra.mxu0 %v2843
    %2889 = vmatprep.subr.mxu0 0.0
    %2890 = vmatpush2.msra.mxu0 0.0
    %2891 = vmatprep.subr.mxu0 0.0
    %2892 = vmatpush2.msra.mxu0 0.0
    %2893 = vmatprep.subr.mxu0 0.0
    %2894 = vmatpush2.msra.mxu0 0.0
    %2895 = vmatprep.subr.mxu0 0.0
    %2896 = vmatpush2.msra.mxu0 0.0
    %2897 = vmatprep.subr.mxu0 0.0
    %2898 = vmatpush2.msra.mxu0 0.0
    %2899 = vmatprep.subr.mxu0 0.0
    %2900 = vmatpush2.msra.mxu0 0.0
    %2901 = vmatprep.subr.mxu0 0.0
    %2902 = vmatpush2.msra.mxu0 0.0
    %2903 = vmatprep.subr.mxu0 0.0
    %2904 = vmatpush2.msra.mxu0 0.0
    %2905 = vmatprep.subr.mxu0 0.0
    %2906 = vmatpush2.msra.mxu0 0.0
    %2907 = vmatprep.subr.mxu0 0.0
    %2908 = vmatpush2.msra.mxu0 0.0
    %2909 = vmatprep.subr.mxu0 0.0
    %2910 = vmatpush2.msra.mxu0 0.0
    %2911 = vmatprep.subr.mxu0 0.0
    %2912 = vmatpush2.msra.mxu0 0.0
    %2913 = vmatprep.subr.mxu0 0.0
    %2914 = vmatpush2.msra.mxu0 0.0
    %2915 = vmatprep.subr.mxu0 0.0
    %2916 = vmatpush2.msra.mxu0 0.0
    %2917 = vmatprep.subr.mxu0 0.0
    %2918 = vmatpush2.msra.mxu0 0.0
    %2919 = vmatprep.subr.mxu0 0.0
    %2920 = vmatpush2.msra.mxu0 0.0
    %2921 = vmatprep.mubr.f32.mxu0 0.0
    %2922 = vmatmul.mubr.f32.gmra.mxu0 %v688
    %v2923 = vpop.f32.mrf.mxu0
    %v2924 = vadd.f32 0.0, %v2923
    %v2925 = vpop.f32.mrf.mxu0
    %v2926 = vadd.f32 0.0, %v2925
    %2927 = vmatprep.mubr.f32.mxu0 0.0
    %2928 = vmatmul.mubr.f32.gmra.mxu0 %v691
    %v2929 = vpop.f32.mrf.mxu0
    %v2930 = vadd.f32 0.0, %v2929
    %v2931 = vpop.f32.mrf.mxu0
    %v2932 = vadd.f32 0.0, %v2931
    %2933 = vdwg.mxu0
    %2934 = vmatprep.subr.mxu0 0.0
    %2935 = vmatpush1.msra.mxu0 0.0
    %2936 = vmatprep.subr.mxu0 0.0
    %2937 = vmatpush1.msra.mxu0 0.0
    %2938 = vmatprep.subr.mxu0 0.0
    %2939 = vmatpush1.msra.mxu0 0.0
    %2940 = vmatprep.subr.mxu0 0.0
    %2941 = vmatpush1.msra.mxu0 0.0
    %2942 = vmatprep.subr.mxu0 0.0
    %2943 = vmatpush1.msra.mxu0 0.0
    %2944 = vmatprep.subr.mxu0 0.0
    %2945 = vmatpush1.msra.mxu0 0.0
    %2946 = vmatprep.subr.mxu0 0.0
    %2947 = vmatpush1.msra.mxu0 0.0
    %2948 = vmatprep.subr.mxu0 0.0
    %2949 = vmatpush1.msra.mxu0 0.0
    %2950 = vmatprep.subr.mxu0 0.0
    %2951 = vmatpush1.msra.mxu0 0.0
    %2952 = vmatprep.subr.mxu0 0.0
    %2953 = vmatpush1.msra.mxu0 0.0
    %2954 = vmatprep.subr.mxu0 0.0
    %2955 = vmatpush1.msra.mxu0 0.0
    %2956 = vmatprep.subr.mxu0 0.0
    %2957 = vmatpush1.msra.mxu0 0.0
    %2958 = vmatprep.subr.mxu0 %v2855
    %2959 = vmatpush1.msra.mxu0 %v2852
    %2960 = vmatprep.subr.mxu0 %v2848
    %2961 = vmatpush1.msra.mxu0 %v2847
    %2962 = vmatprep.subr.mxu0 %v2846
    %2963 = vmatpush1.msra.mxu0 %v2845
    %2964 = vmatprep.subr.mxu0 %v2844
    %2965 = vmatpush1.msra.mxu0 %v2843
    %2966 = vmatprep.subr.mxu0 0.0
    %2967 = vmatpush2.msra.mxu0 0.0
    %2968 = vmatprep.subr.mxu0 0.0
    %2969 = vmatpush2.msra.mxu0 0.0
    %2970 = vmatprep.subr.mxu0 0.0
    %2971 = vmatpush2.msra.mxu0 0.0
    %2972 = vmatprep.subr.mxu0 0.0
    %2973 = vmatpush2.msra.mxu0 0.0
    %2974 = vmatprep.subr.mxu0 0.0
    %2975 = vmatpush2.msra.mxu0 0.0
    %2976 = vmatprep.subr.mxu0 0.0
    %2977 = vmatpush2.msra.mxu0 0.0
    %2978 = vmatprep.subr.mxu0 0.0
    %2979 = vmatpush2.msra.mxu0 0.0
    %2980 = vmatprep.subr.mxu0 0.0
    %2981 = vmatpush2.msra.mxu0 0.0
    %2982 = vmatprep.subr.mxu0 0.0
    %2983 = vmatpush2.msra.mxu0 0.0
    %2984 = vmatprep.subr.mxu0 0.0
    %2985 = vmatpush2.msra.mxu0 0.0
    %2986 = vmatprep.subr.mxu0 0.0
    %2987 = vmatpush2.msra.mxu0 0.0
    %2988 = vmatprep.subr.mxu0 0.0
    %2989 = vmatpush2.msra.mxu0 0.0
    %2990 = vmatprep.subr.mxu0 0.0
    %2991 = vmatpush2.msra.mxu0 0.0
    %2992 = vmatprep.subr.mxu0 0.0
    %2993 = vmatpush2.msra.mxu0 0.0
    %2994 = vmatprep.subr.mxu0 0.0
    %2995 = vmatpush2.msra.mxu0 0.0
    %2996 = vmatprep.subr.mxu0 0.0
    %2997 = vmatpush2.msra.mxu0 0.0
    %2998 = vmatprep.mubr.f32.mxu0 0.0
    %2999 = vmatmul.mubr.f32.gmra.mxu0 %v780
    %v3000 = vpop.f32.mrf.mxu0
    %v3001 = vadd.f32 0.0, %v3000
    %v3002 = vpop.f32.mrf.mxu0
    %v3003 = vadd.f32 0.0, %v3002
    %3004 = vmatprep.mubr.f32.mxu0 0.0
    %3005 = vmatmul.mubr.f32.gmra.mxu0 %v783
    %v3006 = vpop.f32.mrf.mxu0
    %v3007 = vadd.f32 0.0, %v3006
    %v3008 = vpop.f32.mrf.mxu0
    %v3009 = vadd.f32 0.0, %v3008
    %3010 = vdwg.mxu0
    %v3011 = vmax.f32 %v2924, %v3001
    %v3012 = vmax.f32 %v2926, %v3003
    %v3013 = vmax.f32 %v2930, %v3007
    %v3014 = vmax.f32 %v2932, %v3009
    %v3016 = vsel %vm887, %v3012, 0
    %v3019 = vsel %vm887, %v3014, 0
    %3021 = vmatprep.subr.mxu0 0.0
    %3022 = vmatpush1.msra.mxu0 %v881
    %3023 = vmatprep.subr.mxu0 0.0
    %3024 = vmatpush1.msra.mxu0 %v880
    %3025 = vmatprep.subr.mxu0 0.0
    %3026 = vmatpush1.msra.mxu0 %v879
    %3027 = vmatprep.subr.mxu0 0.0
    %3028 = vmatpush1.msra.mxu0 %v878
    %3029 = vmatprep.subr.mxu0 0.0
    %3030 = vmatpush1.msra.mxu0 %v877
    %3031 = vmatprep.subr.mxu0 0.0
    %3032 = vmatpush1.msra.mxu0 %v876
    %3033 = vmatprep.subr.mxu0 0.0
    %3034 = vmatpush1.msra.mxu0 %v875
    %3035 = vmatprep.subr.mxu0 0.0
    %3036 = vmatpush1.msra.mxu0 %v874
    %3037 = vmatprep.subr.mxu0 0.0
    %3038 = vmatpush1.msra.mxu0 %v873
    %3039 = vmatprep.subr.mxu0 0.0
    %3040 = vmatpush1.msra.mxu0 %v872
    %3041 = vmatprep.subr.mxu0 0.0
    %3042 = vmatpush1.msra.mxu0 %v871
    %3043 = vmatprep.subr.mxu0 0.0
    %3044 = vmatpush1.msra.mxu0 %v870
    %3045 = vmatprep.subr.mxu0 0.0
    %3046 = vmatpush1.msra.mxu0 %v869
    %3047 = vmatprep.subr.mxu0 0.0
    %3048 = vmatpush1.msra.mxu0 %v868
    %3049 = vmatprep.subr.mxu0 0.0
    %3050 = vmatpush1.msra.mxu0 %v867
    %3051 = vmatprep.subr.mxu0 0.0
    %3052 = vmatpush1.msra.mxu0 %v866
    %3053 = vmatprep.subr.mxu0 0.0
    %3054 = vmatpush2.msra.mxu0 0.0
    %3055 = vmatprep.subr.mxu0 0.0
    %3056 = vmatpush2.msra.mxu0 0.0
    %3057 = vmatprep.subr.mxu0 0.0
    %3058 = vmatpush2.msra.mxu0 0.0
    %3059 = vmatprep.subr.mxu0 0.0
    %3060 = vmatpush2.msra.mxu0 0.0
    %3061 = vmatprep.subr.mxu0 0.0
    %3062 = vmatpush2.msra.mxu0 0.0
    %3063 = vmatprep.subr.mxu0 0.0
    %3064 = vmatpush2.msra.mxu0 0.0
    %3065 = vmatprep.subr.mxu0 0.0
    %3066 = vmatpush2.msra.mxu0 0.0
    %3067 = vmatprep.subr.mxu0 0.0
    %3068 = vmatpush2.msra.mxu0 0.0
    %3069 = vmatprep.subr.mxu0 0.0
    %3070 = vmatpush2.msra.mxu0 0.0
    %3071 = vmatprep.subr.mxu0 0.0
    %3072 = vmatpush2.msra.mxu0 0.0
    %3073 = vmatprep.subr.mxu0 0.0
    %3074 = vmatpush2.msra.mxu0 0.0
    %3075 = vmatprep.subr.mxu0 0.0
    %3076 = vmatpush2.msra.mxu0 %v886
    %3077 = vmatprep.subr.mxu0 0.0
    %3078 = vmatpush2.msra.mxu0 %v885
    %3079 = vmatprep.subr.mxu0 0.0
    %3080 = vmatpush2.msra.mxu0 %v884
    %3081 = vmatprep.subr.mxu0 0.0
    %3082 = vmatpush2.msra.mxu0 %v883
    %3083 = vmatprep.subr.mxu0 0.0
    %3084 = vmatpush2.msra.mxu0 %v882
    %3085 = vmatprep.mubr.f32.mxu0 %v3016
    %3086 = vmatmul.mubr.f32.gmra.mxu0 %v3011
    %v3087 = vpop.f32.mrf.mxu0
    %v3088 = vadd.f32 0.0, %v3087
    %v3089 = vpop.f32.mrf.mxu0
    %3090 = vmatprep.mubr.f32.mxu0 %v3019
    %3091 = vmatmul.mubr.f32.gmra.mxu0 %v3013
    %v3092 = vpop.f32.mrf.mxu0
    %v3093 = vadd.f32 0.0, %v3092
    %v3094 = vpop.f32.mrf.mxu0
    %3095 = vdwg.mxu0
    %3096 = vmatprep.subr.mxu0 0.0
    %3097 = vmatpush1.msra.mxu0 %v984
    %3098 = vmatprep.subr.mxu0 0.0
    %3099 = vmatpush1.msra.mxu0 %v983
    %3100 = vmatprep.subr.mxu0 0.0
    %3101 = vmatpush1.msra.mxu0 %v982
    %3102 = vmatprep.subr.mxu0 0.0
    %3103 = vmatpush1.msra.mxu0 %v981
    %3104 = vmatprep.subr.mxu0 0.0
    %3105 = vmatpush1.msra.mxu0 %v980
    %3106 = vmatprep.subr.mxu0 0.0
    %3107 = vmatpush1.msra.mxu0 %v979
    %3108 = vmatprep.subr.mxu0 0.0
    %3109 = vmatpush1.msra.mxu0 %v978
    %3110 = vmatprep.subr.mxu0 0.0
    %3111 = vmatpush1.msra.mxu0 %v977
    %3112 = vmatprep.subr.mxu0 0.0
    %3113 = vmatpush1.msra.mxu0 %v976
    %3114 = vmatprep.subr.mxu0 0.0
    %3115 = vmatpush1.msra.mxu0 %v975
    %3116 = vmatprep.subr.mxu0 0.0
    %3117 = vmatpush1.msra.mxu0 %v974
    %3118 = vmatprep.subr.mxu0 0.0
    %3119 = vmatpush1.msra.mxu0 %v973
    %3120 = vmatprep.subr.mxu0 0.0
    %3121 = vmatpush1.msra.mxu0 %v972
    %3122 = vmatprep.subr.mxu0 0.0
    %3123 = vmatpush1.msra.mxu0 %v971
    %3124 = vmatprep.subr.mxu0 0.0
    %3125 = vmatpush1.msra.mxu0 %v970
    %3126 = vmatprep.subr.mxu0 0.0
    %3127 = vmatpush1.msra.mxu0 %v969
    %3128 = vmatprep.subr.mxu0 0.0
    %3129 = vmatpush2.msra.mxu0 0.0
    %3130 = vmatprep.subr.mxu0 0.0
    %3131 = vmatpush2.msra.mxu0 0.0
    %3132 = vmatprep.subr.mxu0 0.0
    %3133 = vmatpush2.msra.mxu0 0.0
    %3134 = vmatprep.subr.mxu0 0.0
    %3135 = vmatpush2.msra.mxu0 0.0
    %3136 = vmatprep.subr.mxu0 0.0
    %3137 = vmatpush2.msra.mxu0 0.0
    %3138 = vmatprep.subr.mxu0 0.0
    %3139 = vmatpush2.msra.mxu0 0.0
    %3140 = vmatprep.subr.mxu0 0.0
    %3141 = vmatpush2.msra.mxu0 0.0
    %3142 = vmatprep.subr.mxu0 0.0
    %3143 = vmatpush2.msra.mxu0 0.0
    %3144 = vmatprep.subr.mxu0 0.0
    %3145 = vmatpush2.msra.mxu0 0.0
    %3146 = vmatprep.subr.mxu0 0.0
    %3147 = vmatpush2.msra.mxu0 0.0
    %3148 = vmatprep.subr.mxu0 0.0
    %3149 = vmatpush2.msra.mxu0 0.0
    %3150 = vmatprep.subr.mxu0 0.0
    %3151 = vmatpush2.msra.mxu0 %v989
    %3152 = vmatprep.subr.mxu0 0.0
    %3153 = vmatpush2.msra.mxu0 %v988
    %3154 = vmatprep.subr.mxu0 0.0
    %3155 = vmatpush2.msra.mxu0 %v987
    %3156 = vmatprep.subr.mxu0 0.0
    %3157 = vmatpush2.msra.mxu0 %v986
    %3158 = vmatprep.subr.mxu0 0.0
    %3159 = vmatpush2.msra.mxu0 %v985
    %3160 = vmatprep.mubr.f32.mxu0 %v3016
    %3161 = vmatmul.mubr.f32.gmra.mxu0 %v3011
    %v3162 = vpop.f32.mrf.mxu0
    %v3163 = vadd.f32 0.0, %v3162
    %v3164 = vpop.f32.mrf.mxu0
    %3165 = vmatprep.mubr.f32.mxu0 %v3019
    %3166 = vmatmul.mubr.f32.gmra.mxu0 %v3013
    %v3167 = vpop.f32.mrf.mxu0
    %v3168 = vadd.f32 0.0, %v3167
    %v3169 = vpop.f32.mrf.mxu0
    %3170 = vdwg.mxu0
    %v3171 = vmax.f32 %v3088, %v3163
    %v3172 = vmax.f32 %v3093, %v3168
    %v3173 = vpack.c.bf16 %v3172, %v3171
    %v3175 = vshrl.u32 %v3173, 16
    %v3177 = vshll.u32 %v3173, 16
    %v3179 = vrot.slane %v3177, 1
    %v3180 = vor.u32 %v3175, %v3179
    %v3182 = vsel %vm1153, %v3180, 0
    %3184 = vmatprep.subr.bf16.mxu0 0
    %3185 = vmatpush1.bf16.msra.mxu0 0
    %3186 = vmatprep.subr.bf16.mxu0 0
    %3187 = vmatpush1.bf16.msra.mxu0 0
    %3188 = vmatprep.subr.bf16.mxu0 %v1162
    %3189 = vmatpush1.bf16.msra.mxu0 %v1159
    %3190 = vmatprep.subr.bf16.mxu0 %v1140
    %3191 = vmatpush1.bf16.msra.mxu0 %v1139
    %3192 = vmatprep.subr.bf16.mxu0 %v1138
    %3193 = vmatpush1.bf16.msra.mxu0 %v1137
    %3194 = vmatprep.subr.bf16.mxu0 %v1136
    %3195 = vmatpush1.bf16.msra.mxu0 %v1135
    %3196 = vmatprep.subr.bf16.mxu0 %v1134
    %3197 = vmatpush1.bf16.msra.mxu0 %v1133
    %3198 = vmatprep.subr.bf16.mxu0 %v1132
    %3199 = vmatpush1.bf16.msra.mxu0 %v1131
    %3200 = vmatprep.subr.bf16.mxu0 0
    %3201 = vmatpush2.bf16.msra.mxu0 0
    %3202 = vmatprep.subr.bf16.mxu0 0
    %3203 = vmatpush2.bf16.msra.mxu0 0
    %3204 = vmatprep.subr.bf16.mxu0 0
    %3205 = vmatpush2.bf16.msra.mxu0 0
    %3206 = vmatprep.subr.bf16.mxu0 0
    %3207 = vmatpush2.bf16.msra.mxu0 0
    %3208 = vmatprep.subr.bf16.mxu0 0
    %3209 = vmatpush2.bf16.msra.mxu0 0
    %3210 = vmatprep.subr.bf16.mxu0 0
    %3211 = vmatpush2.bf16.msra.mxu0 0
    %3212 = vmatprep.subr.bf16.mxu0 0
    %3213 = vmatpush2.bf16.msra.mxu0 0
    %3214 = vmatprep.subr.bf16.mxu0 0
    %3215 = vmatpush2.bf16.msra.mxu0 0
    %3216 = vmatprep.mubr.bf16.mxu0 0
    %3217 = vmatmul.mubr.bf16.gmra.mxu0 %v3182
    %v3218 = vpop.f32.mrf.mxu0
    %v3219 = vadd.f32 0.0, %v3218
    %v3220 = vpop.f32.mrf.mxu0
    %v3221 = vadd.f32 0.0, %v3220
    %v3222 = vpop.f32.mrf.mxu0
    %v3223 = vadd.f32 0.0, %v3222
    %v3224 = vpop.f32.mrf.mxu0
    %v3225 = vadd.f32 0.0, %v3224
    %3226 = vdwg.mxu0
    %v3227 = vsel %vm1153, %v3173, 0
    %3229 = vmatprep.subr.bf16.mxu0 0
    %3230 = vmatpush1.bf16.msra.mxu0 0
    %3231 = vmatprep.subr.bf16.mxu0 0
    %3232 = vmatpush1.bf16.msra.mxu0 0
    %3233 = vmatprep.subr.bf16.mxu0 %v1268
    %3234 = vmatpush1.bf16.msra.mxu0 %v1265
    %3235 = vmatprep.subr.bf16.mxu0 %v1249
    %3236 = vmatpush1.bf16.msra.mxu0 %v1248
    %3237 = vmatprep.subr.bf16.mxu0 %v1247
    %3238 = vmatpush1.bf16.msra.mxu0 %v1246
    %3239 = vmatprep.subr.bf16.mxu0 %v1245
    %3240 = vmatpush1.bf16.msra.mxu0 %v1244
    %3241 = vmatprep.subr.bf16.mxu0 %v1243
    %3242 = vmatpush1.bf16.msra.mxu0 %v1242
    %3243 = vmatprep.subr.bf16.mxu0 %v1241
    %3244 = vmatpush1.bf16.msra.mxu0 %v1240
    %3245 = vmatprep.subr.bf16.mxu0 0
    %3246 = vmatpush2.bf16.msra.mxu0 0
    %3247 = vmatprep.subr.bf16.mxu0 0
    %3248 = vmatpush2.bf16.msra.mxu0 0
    %3249 = vmatprep.subr.bf16.mxu0 0
    %3250 = vmatpush2.bf16.msra.mxu0 0
    %3251 = vmatprep.subr.bf16.mxu0 0
    %3252 = vmatpush2.bf16.msra.mxu0 0
    %3253 = vmatprep.subr.bf16.mxu0 0
    %3254 = vmatpush2.bf16.msra.mxu0 0
    %3255 = vmatprep.subr.bf16.mxu0 0
    %3256 = vmatpush2.bf16.msra.mxu0 0
    %3257 = vmatprep.subr.bf16.mxu0 0
    %3258 = vmatpush2.bf16.msra.mxu0 0
    %3259 = vmatprep.subr.bf16.mxu0 0
    %3260 = vmatpush2.bf16.msra.mxu0 0
    %3261 = vmatprep.mubr.bf16.mxu0 0
    %3262 = vmatmul.mubr.bf16.gmra.mxu0 %v3227
    %v3263 = vpop.f32.mrf.mxu0
    %v3264 = vadd.f32 %v3219, %v3263
    %v3265 = vpop.f32.mrf.mxu0
    %v3266 = vadd.f32 %v3221, %v3265
    %v3267 = vpop.f32.mrf.mxu0
    %v3268 = vadd.f32 %v3223, %v3267
    %v3269 = vpop.f32.mrf.mxu0
    %v3270 = vadd.f32 %v3225, %v3269
    %3271 = vdwg.mxu0
    %v3273 = vrot.slane %v3173, 1
    %v3275 = vsel %vm1153, %v3273, 0
    %3277 = vmatprep.subr.bf16.mxu0 0
    %3278 = vmatpush1.bf16.msra.mxu0 0
    %3279 = vmatprep.subr.bf16.mxu0 0
    %3280 = vmatpush1.bf16.msra.mxu0 0
    %3281 = vmatprep.subr.bf16.mxu0 %v1389
    %3282 = vmatpush1.bf16.msra.mxu0 %v1386
    %3283 = vmatprep.subr.bf16.mxu0 %v1369
    %3284 = vmatpush1.bf16.msra.mxu0 %v1368
    %3285 = vmatprep.subr.bf16.mxu0 %v1367
    %3286 = vmatpush1.bf16.msra.mxu0 %v1366
    %3287 = vmatprep.subr.bf16.mxu0 %v1365
    %3288 = vmatpush1.bf16.msra.mxu0 %v1364
    %3289 = vmatprep.subr.bf16.mxu0 %v1363
    %3290 = vmatpush1.bf16.msra.mxu0 %v1362
    %3291 = vmatprep.subr.bf16.mxu0 %v1361
    %3292 = vmatpush1.bf16.msra.mxu0 %v1360
    %3293 = vmatprep.subr.bf16.mxu0 0
    %3294 = vmatpush2.bf16.msra.mxu0 0
    %3295 = vmatprep.subr.bf16.mxu0 0
    %3296 = vmatpush2.bf16.msra.mxu0 0
    %3297 = vmatprep.subr.bf16.mxu0 0
    %3298 = vmatpush2.bf16.msra.mxu0 0
    %3299 = vmatprep.subr.bf16.mxu0 0
    %3300 = vmatpush2.bf16.msra.mxu0 0
    %3301 = vmatprep.subr.bf16.mxu0 0
    %3302 = vmatpush2.bf16.msra.mxu0 0
    %3303 = vmatprep.subr.bf16.mxu0 0
    %3304 = vmatpush2.bf16.msra.mxu0 0
    %3305 = vmatprep.subr.bf16.mxu0 0
    %3306 = vmatpush2.bf16.msra.mxu0 0
    %3307 = vmatprep.subr.bf16.mxu0 0
    %3308 = vmatpush2.bf16.msra.mxu0 0
    %3309 = vmatprep.mubr.bf16.mxu0 0
    %3310 = vmatmul.mubr.bf16.gmra.mxu0 %v3275
    %v3311 = vpop.f32.mrf.mxu0
    %v3312 = vadd.f32 0.0, %v3311
    %v3313 = vpop.f32.mrf.mxu0
    %v3314 = vadd.f32 0.0, %v3313
    %v3315 = vpop.f32.mrf.mxu0
    %v3316 = vadd.f32 0.0, %v3315
    %v3317 = vpop.f32.mrf.mxu0
    %v3318 = vadd.f32 0.0, %v3317
    %3319 = vdwg.mxu0
    %v3320 = vadd.f32 %v3264, %v3312
    %v3321 = vadd.f32 %v3266, %v3314
    %v3322 = vadd.f32 %v3268, %v3316
    %v3323 = vadd.f32 %v3270, %v3318
    %v3324 = vrot.slane %v3175, 1
    %v3325 = vrot.slane %v3177, 2
    %v3326 = vor.u32 %v3324, %v3325
    %v3328 = vsel %vm1153, %v3326, 0
    %3330 = vmatprep.subr.bf16.mxu0 0
    %3331 = vmatpush1.bf16.msra.mxu0 0
    %3332 = vmatprep.subr.bf16.mxu0 0
    %3333 = vmatpush1.bf16.msra.mxu0 0
    %3334 = vmatprep.subr.bf16.mxu0 %v1515
    %3335 = vmatpush1.bf16.msra.mxu0 %v1512
    %3336 = vmatprep.subr.bf16.mxu0 %v1495
    %3337 = vmatpush1.bf16.msra.mxu0 %v1494
    %3338 = vmatprep.subr.bf16.mxu0 %v1493
    %3339 = vmatpush1.bf16.msra.mxu0 %v1492
    %3340 = vmatprep.subr.bf16.mxu0 %v1491
    %3341 = vmatpush1.bf16.msra.mxu0 %v1490
    %3342 = vmatprep.subr.bf16.mxu0 %v1489
    %3343 = vmatpush1.bf16.msra.mxu0 %v1488
    %3344 = vmatprep.subr.bf16.mxu0 %v1487
    %3345 = vmatpush1.bf16.msra.mxu0 %v1486
    %3346 = vmatprep.subr.bf16.mxu0 0
    %3347 = vmatpush2.bf16.msra.mxu0 0
    %3348 = vmatprep.subr.bf16.mxu0 0
    %3349 = vmatpush2.bf16.msra.mxu0 0
    %3350 = vmatprep.subr.bf16.mxu0 0
    %3351 = vmatpush2.bf16.msra.mxu0 0
    %3352 = vmatprep.subr.bf16.mxu0 0
    %3353 = vmatpush2.bf16.msra.mxu0 0
    %3354 = vmatprep.subr.bf16.mxu0 0
    %3355 = vmatpush2.bf16.msra.mxu0 0
    %3356 = vmatprep.subr.bf16.mxu0 0
    %3357 = vmatpush2.bf16.msra.mxu0 0
    %3358 = vmatprep.subr.bf16.mxu0 0
    %3359 = vmatpush2.bf16.msra.mxu0 0
    %3360 = vmatprep.subr.bf16.mxu0 0
    %3361 = vmatpush2.bf16.msra.mxu0 0
    %3362 = vmatprep.mubr.bf16.mxu0 0
    %3363 = vmatmul.mubr.bf16.gmra.mxu0 %v3328
    %v3364 = vpop.f32.mrf.mxu0
    %v3365 = vadd.f32 0.0, %v3364
    %v3366 = vpop.f32.mrf.mxu0
    %v3367 = vadd.f32 0.0, %v3366
    %v3368 = vpop.f32.mrf.mxu0
    %v3369 = vadd.f32 0.0, %v3368
    %v3370 = vpop.f32.mrf.mxu0
    %v3371 = vadd.f32 0.0, %v3370
    %3372 = vdwg.mxu0
    %v3373 = vadd.f32 %v3320, %v3365
    %v3374 = vadd.f32 %v3321, %v3367
    %v3375 = vadd.f32 %v3322, %v3369
    %v3376 = vadd.f32 %v3323, %v3371
    %v3377 = vrot.slane %v3173, 2
    %v3379 = vsel %vm1153, %v3377, 0
    %3381 = vmatprep.subr.bf16.mxu0 0
    %3382 = vmatpush1.bf16.msra.mxu0 0
    %3383 = vmatprep.subr.bf16.mxu0 0
    %3384 = vmatpush1.bf16.msra.mxu0 0
    %3385 = vmatprep.subr.bf16.mxu0 %v1639
    %3386 = vmatpush1.bf16.msra.mxu0 %v1636
    %3387 = vmatprep.subr.bf16.mxu0 %v1619
    %3388 = vmatpush1.bf16.msra.mxu0 %v1618
    %3389 = vmatprep.subr.bf16.mxu0 %v1617
    %3390 = vmatpush1.bf16.msra.mxu0 %v1616
    %3391 = vmatprep.subr.bf16.mxu0 %v1615
    %3392 = vmatpush1.bf16.msra.mxu0 %v1614
    %3393 = vmatprep.subr.bf16.mxu0 %v1613
    %3394 = vmatpush1.bf16.msra.mxu0 %v1612
    %3395 = vmatprep.subr.bf16.mxu0 %v1611
    %3396 = vmatpush1.bf16.msra.mxu0 %v1610
    %3397 = vmatprep.subr.bf16.mxu0 0
    %3398 = vmatpush2.bf16.msra.mxu0 0
    %3399 = vmatprep.subr.bf16.mxu0 0
    %3400 = vmatpush2.bf16.msra.mxu0 0
    %3401 = vmatprep.subr.bf16.mxu0 0
    %3402 = vmatpush2.bf16.msra.mxu0 0
    %3403 = vmatprep.subr.bf16.mxu0 0
    %3404 = vmatpush2.bf16.msra.mxu0 0
    %3405 = vmatprep.subr.bf16.mxu0 0
    %3406 = vmatpush2.bf16.msra.mxu0 0
    %3407 = vmatprep.subr.bf16.mxu0 0
    %3408 = vmatpush2.bf16.msra.mxu0 0
    %3409 = vmatprep.subr.bf16.mxu0 0
    %3410 = vmatpush2.bf16.msra.mxu0 0
    %3411 = vmatprep.subr.bf16.mxu0 0
    %3412 = vmatpush2.bf16.msra.mxu0 0
    %3413 = vmatprep.mubr.bf16.mxu0 0
    %3414 = vmatmul.mubr.bf16.gmra.mxu0 %v3379
    %v3415 = vpop.f32.mrf.mxu0
    %v3416 = vadd.f32 0.0, %v3415
    %v3417 = vpop.f32.mrf.mxu0
    %v3418 = vadd.f32 0.0, %v3417
    %v3419 = vpop.f32.mrf.mxu0
    %v3420 = vadd.f32 0.0, %v3419
    %v3421 = vpop.f32.mrf.mxu0
    %v3422 = vadd.f32 0.0, %v3421
    %3423 = vdwg.mxu0
    %v3424 = vadd.f32 %v3373, %v3416
    %v3425 = vadd.f32 %v3374, %v3418
    %v3426 = vadd.f32 %v3375, %v3420
    %v3427 = vadd.f32 %v3376, %v3422
    %v3428 = vadd.f32 %v3424, %v1693
    %v3429 = vadd.f32 %v3425, %v1697
    %v3430 = vadd.f32 %v3426, %v1693
    %v3431 = vadd.f32 %v3427, %v1697
    %v3432 = vmax.f32 %v3428, 0.0
    %v3433 = vmax.f32 %v3429, 0.0
    %v3434 = vmax.f32 %v3430, 0.0
    %v3435 = vmax.f32 %v3431, 0.0
    %v3437 = vsel %vm1157, %v3434, 0
    %v3440 = vsel %vm1157, %v3435, 0
    %3442 = vmatprep.subr.mxu0 0.0
    %3443 = vmatpush1.msra.mxu0 0.0
    %3444 = vmatprep.subr.mxu0 0.0
    %3445 = vmatpush1.msra.mxu0 0.0
    %3446 = vmatprep.subr.mxu0 0.0
    %3447 = vmatpush1.msra.mxu0 0.0
    %3448 = vmatprep.subr.mxu0 0.0
    %3449 = vmatpush1.msra.mxu0 0.0
    %3450 = vmatprep.subr.mxu0 0.0
    %3451 = vmatpush1.msra.mxu0 0.0
    %3452 = vmatprep.subr.mxu0 0.0
    %3453 = vmatpush1.msra.mxu0 0.0
    %3454 = vmatprep.subr.mxu0 0.0
    %3455 = vmatpush1.msra.mxu0 0.0
    %3456 = vmatprep.subr.mxu0 0.0
    %3457 = vmatpush1.msra.mxu0 0.0
    %3458 = vmatprep.subr.mxu0 0.0
    %3459 = vmatpush1.msra.mxu0 0.0
    %3460 = vmatprep.subr.mxu0 0.0
    %3461 = vmatpush1.msra.mxu0 0.0
    %3462 = vmatprep.subr.mxu0 0.0
    %3463 = vmatpush1.msra.mxu0 0.0
    %3464 = vmatprep.subr.mxu0 0.0
    %3465 = vmatpush1.msra.mxu0 0.0
    %3466 = vmatprep.subr.mxu0 0.0
    %3467 = vmatpush1.msra.mxu0 0.0
    %3468 = vmatprep.subr.mxu0 0.0
    %3469 = vmatpush1.msra.mxu0 0.0
    %3470 = vmatprep.subr.mxu0 %v3440
    %3471 = vmatpush1.msra.mxu0 %v3437
    %3472 = vmatprep.subr.mxu0 %v3433
    %3473 = vmatpush1.msra.mxu0 %v3432
    %3474 = vmatprep.subr.mxu0 0.0
    %3475 = vmatpush2.msra.mxu0 0.0
    %3476 = vmatprep.subr.mxu0 0.0
    %3477 = vmatpush2.msra.mxu0 0.0
    %3478 = vmatprep.subr.mxu0 0.0
    %3479 = vmatpush2.msra.mxu0 0.0
    %3480 = vmatprep.subr.mxu0 0.0
    %3481 = vmatpush2.msra.mxu0 0.0
    %3482 = vmatprep.subr.mxu0 0.0
    %3483 = vmatpush2.msra.mxu0 0.0
    %3484 = vmatprep.subr.mxu0 0.0
    %3485 = vmatpush2.msra.mxu0 0.0
    %3486 = vmatprep.subr.mxu0 0.0
    %3487 = vmatpush2.msra.mxu0 0.0
    %3488 = vmatprep.subr.mxu0 0.0
    %3489 = vmatpush2.msra.mxu0 0.0
    %3490 = vmatprep.subr.mxu0 0.0
    %3491 = vmatpush2.msra.mxu0 0.0
    %3492 = vmatprep.subr.mxu0 0.0
    %3493 = vmatpush2.msra.mxu0 0.0
    %3494 = vmatprep.subr.mxu0 0.0
    %3495 = vmatpush2.msra.mxu0 0.0
    %3496 = vmatprep.subr.mxu0 0.0
    %3497 = vmatpush2.msra.mxu0 0.0
    %3498 = vmatprep.subr.mxu0 0.0
    %3499 = vmatpush2.msra.mxu0 0.0
    %3500 = vmatprep.subr.mxu0 0.0
    %3501 = vmatpush2.msra.mxu0 0.0
    %3502 = vmatprep.subr.mxu0 0.0
    %3503 = vmatpush2.msra.mxu0 0.0
    %3504 = vmatprep.subr.mxu0 0.0
    %3505 = vmatpush2.msra.mxu0 0.0
    %3506 = vmatprep.mubr.f32.mxu0 0.0
    %3507 = vmatmul.mubr.f32.gmra.mxu0 %v1711
    %v3508 = vpop.f32.mrf.mxu0
    %v3509 = vadd.f32 0.0, %v3508
    %v3510 = vpop.f32.mrf.mxu0
    %v3511 = vadd.f32 0.0, %v3510
    %3512 = vdwg.mxu0
    %3513 = vmatprep.subr.mxu0 0.0
    %3514 = vmatpush1.msra.mxu0 0.0
    %3515 = vmatprep.subr.mxu0 0.0
    %3516 = vmatpush1.msra.mxu0 0.0
    %3517 = vmatprep.subr.mxu0 0.0
    %3518 = vmatpush1.msra.mxu0 0.0
    %3519 = vmatprep.subr.mxu0 0.0
    %3520 = vmatpush1.msra.mxu0 0.0
    %3521 = vmatprep.subr.mxu0 0.0
    %3522 = vmatpush1.msra.mxu0 0.0
    %3523 = vmatprep.subr.mxu0 0.0
    %3524 = vmatpush1.msra.mxu0 0.0
    %3525 = vmatprep.subr.mxu0 0.0
    %3526 = vmatpush1.msra.mxu0 0.0
    %3527 = vmatprep.subr.mxu0 0.0
    %3528 = vmatpush1.msra.mxu0 0.0
    %3529 = vmatprep.subr.mxu0 0.0
    %3530 = vmatpush1.msra.mxu0 0.0
    %3531 = vmatprep.subr.mxu0 0.0
    %3532 = vmatpush1.msra.mxu0 0.0
    %3533 = vmatprep.subr.mxu0 0.0
    %3534 = vmatpush1.msra.mxu0 0.0
    %3535 = vmatprep.subr.mxu0 0.0
    %3536 = vmatpush1.msra.mxu0 0.0
    %3537 = vmatprep.subr.mxu0 0.0
    %3538 = vmatpush1.msra.mxu0 0.0
    %3539 = vmatprep.subr.mxu0 0.0
    %3540 = vmatpush1.msra.mxu0 0.0
    %3541 = vmatprep.subr.mxu0 %v3440
    %3542 = vmatpush1.msra.mxu0 %v3437
    %3543 = vmatprep.subr.mxu0 %v3433
    %3544 = vmatpush1.msra.mxu0 %v3432
    %3545 = vmatprep.subr.mxu0 0.0
    %3546 = vmatpush2.msra.mxu0 0.0
    %3547 = vmatprep.subr.mxu0 0.0
    %3548 = vmatpush2.msra.mxu0 0.0
    %3549 = vmatprep.subr.mxu0 0.0
    %3550 = vmatpush2.msra.mxu0 0.0
    %3551 = vmatprep.subr.mxu0 0.0
    %3552 = vmatpush2.msra.mxu0 0.0
    %3553 = vmatprep.subr.mxu0 0.0
    %3554 = vmatpush2.msra.mxu0 0.0
    %3555 = vmatprep.subr.mxu0 0.0
    %3556 = vmatpush2.msra.mxu0 0.0
    %3557 = vmatprep.subr.mxu0 0.0
    %3558 = vmatpush2.msra.mxu0 0.0
    %3559 = vmatprep.subr.mxu0 0.0
    %3560 = vmatpush2.msra.mxu0 0.0
    %3561 = vmatprep.subr.mxu0 0.0
    %3562 = vmatpush2.msra.mxu0 0.0
    %3563 = vmatprep.subr.mxu0 0.0
    %3564 = vmatpush2.msra.mxu0 0.0
    %3565 = vmatprep.subr.mxu0 0.0
    %3566 = vmatpush2.msra.mxu0 0.0
    %3567 = vmatprep.subr.mxu0 0.0
    %3568 = vmatpush2.msra.mxu0 0.0
    %3569 = vmatprep.subr.mxu0 0.0
    %3570 = vmatpush2.msra.mxu0 0.0
    %3571 = vmatprep.subr.mxu0 0.0
    %3572 = vmatpush2.msra.mxu0 0.0
    %3573 = vmatprep.subr.mxu0 0.0
    %3574 = vmatpush2.msra.mxu0 0.0
    %3575 = vmatprep.subr.mxu0 0.0
    %3576 = vmatpush2.msra.mxu0 0.0
    %3577 = vmatprep.mubr.f32.mxu0 0.0
    %3578 = vmatmul.mubr.f32.gmra.mxu0 %v1792
    %v3579 = vpop.f32.mrf.mxu0
    %v3580 = vadd.f32 0.0, %v3579
    %v3581 = vpop.f32.mrf.mxu0
    %v3582 = vadd.f32 0.0, %v3581
    %3583 = vdwg.mxu0
    %v3584 = vmax.f32 %v3509, %v3580
    %v3585 = vmax.f32 %v3511, %v3582
    %v3587 = vsel %vm225, %v3585, 0
    %3589 = vmatprep.subr.mxu0 0.0
    %3590 = vmatpush1.msra.mxu0 %v1882
    %3591 = vmatprep.subr.mxu0 0.0
    %3592 = vmatpush1.msra.mxu0 %v1881
    %3593 = vmatprep.subr.mxu0 0.0
    %3594 = vmatpush1.msra.mxu0 %v1880
    %3595 = vmatprep.subr.mxu0 0.0
    %3596 = vmatpush1.msra.mxu0 %v1879
    %3597 = vmatprep.subr.mxu0 0.0
    %3598 = vmatpush1.msra.mxu0 %v1878
    %3599 = vmatprep.subr.mxu0 0.0
    %3600 = vmatpush1.msra.mxu0 %v1877
    %3601 = vmatprep.subr.mxu0 0.0
    %3602 = vmatpush1.msra.mxu0 %v1876
    %3603 = vmatprep.subr.mxu0 0.0
    %3604 = vmatpush1.msra.mxu0 %v1875
    %3605 = vmatprep.subr.mxu0 0.0
    %3606 = vmatpush1.msra.mxu0 %v1874
    %3607 = vmatprep.subr.mxu0 0.0
    %3608 = vmatpush1.msra.mxu0 %v1873
    %3609 = vmatprep.subr.mxu0 0.0
    %3610 = vmatpush1.msra.mxu0 %v1872
    %3611 = vmatprep.subr.mxu0 0.0
    %3612 = vmatpush1.msra.mxu0 %v1871
    %3613 = vmatprep.subr.mxu0 0.0
    %3614 = vmatpush1.msra.mxu0 %v1870
    %3615 = vmatprep.subr.mxu0 0.0
    %3616 = vmatpush1.msra.mxu0 %v1869
    %3617 = vmatprep.subr.mxu0 0.0
    %3618 = vmatpush1.msra.mxu0 %v1868
    %3619 = vmatprep.subr.mxu0 0.0
    %3620 = vmatpush1.msra.mxu0 %v1867
    %3621 = vmatprep.subr.mxu0 0.0
    %3622 = vmatpush2.msra.mxu0 0.0
    %3623 = vmatprep.subr.mxu0 0.0
    %3624 = vmatpush2.msra.mxu0 0.0
    %3625 = vmatprep.subr.mxu0 0.0
    %3626 = vmatpush2.msra.mxu0 0.0
    %3627 = vmatprep.subr.mxu0 0.0
    %3628 = vmatpush2.msra.mxu0 0.0
    %3629 = vmatprep.subr.mxu0 0.0
    %3630 = vmatpush2.msra.mxu0 0.0
    %3631 = vmatprep.subr.mxu0 0.0
    %3632 = vmatpush2.msra.mxu0 0.0
    %3633 = vmatprep.subr.mxu0 0.0
    %3634 = vmatpush2.msra.mxu0 0.0
    %3635 = vmatprep.subr.mxu0 0.0
    %3636 = vmatpush2.msra.mxu0 0.0
    %3637 = vmatprep.subr.mxu0 0.0
    %3638 = vmatpush2.msra.mxu0 0.0
    %3639 = vmatprep.subr.mxu0 0.0
    %3640 = vmatpush2.msra.mxu0 0.0
    %3641 = vmatprep.subr.mxu0 0.0
    %3642 = vmatpush2.msra.mxu0 0.0
    %3643 = vmatprep.subr.mxu0 0.0
    %3644 = vmatpush2.msra.mxu0 0.0
    %3645 = vmatprep.subr.mxu0 0.0
    %3646 = vmatpush2.msra.mxu0 %v1886
    %3647 = vmatprep.subr.mxu0 0.0
    %3648 = vmatpush2.msra.mxu0 %v1885
    %3649 = vmatprep.subr.mxu0 0.0
    %3650 = vmatpush2.msra.mxu0 %v1884
    %3651 = vmatprep.subr.mxu0 0.0
    %3652 = vmatpush2.msra.mxu0 %v1883
    %3653 = vmatprep.mubr.f32.mxu0 %v3587
    %3654 = vmatmul.mubr.f32.gmra.mxu0 %v3584
    %v3655 = vpop.f32.mrf.mxu0
    %v3656 = vadd.f32 0.0, %v3655
    %v3657 = vpop.f32.mrf.mxu0
    %3658 = vdwg.mxu0
    %3659 = vmatprep.subr.mxu0 0.0
    %3660 = vmatpush1.msra.mxu0 %v1975
    %3661 = vmatprep.subr.mxu0 0.0
    %3662 = vmatpush1.msra.mxu0 %v1974
    %3663 = vmatprep.subr.mxu0 0.0
    %3664 = vmatpush1.msra.mxu0 %v1973
    %3665 = vmatprep.subr.mxu0 0.0
    %3666 = vmatpush1.msra.mxu0 %v1972
    %3667 = vmatprep.subr.mxu0 0.0
    %3668 = vmatpush1.msra.mxu0 %v1971
    %3669 = vmatprep.subr.mxu0 0.0
    %3670 = vmatpush1.msra.mxu0 %v1970
    %3671 = vmatprep.subr.mxu0 0.0
    %3672 = vmatpush1.msra.mxu0 %v1969
    %3673 = vmatprep.subr.mxu0 0.0
    %3674 = vmatpush1.msra.mxu0 %v1968
    %3675 = vmatprep.subr.mxu0 0.0
    %3676 = vmatpush1.msra.mxu0 %v1967
    %3677 = vmatprep.subr.mxu0 0.0
    %3678 = vmatpush1.msra.mxu0 %v1966
    %3679 = vmatprep.subr.mxu0 0.0
    %3680 = vmatpush1.msra.mxu0 %v1965
    %3681 = vmatprep.subr.mxu0 0.0
    %3682 = vmatpush1.msra.mxu0 %v1964
    %3683 = vmatprep.subr.mxu0 0.0
    %3684 = vmatpush1.msra.mxu0 %v1963
    %3685 = vmatprep.subr.mxu0 0.0
    %3686 = vmatpush1.msra.mxu0 %v1962
    %3687 = vmatprep.subr.mxu0 0.0
    %3688 = vmatpush1.msra.mxu0 %v1961
    %3689 = vmatprep.subr.mxu0 0.0
    %3690 = vmatpush1.msra.mxu0 %v1960
    %3691 = vmatprep.subr.mxu0 0.0
    %3692 = vmatpush2.msra.mxu0 0.0
    %3693 = vmatprep.subr.mxu0 0.0
    %3694 = vmatpush2.msra.mxu0 0.0
    %3695 = vmatprep.subr.mxu0 0.0
    %3696 = vmatpush2.msra.mxu0 0.0
    %3697 = vmatprep.subr.mxu0 0.0
    %3698 = vmatpush2.msra.mxu0 0.0
    %3699 = vmatprep.subr.mxu0 0.0
    %3700 = vmatpush2.msra.mxu0 0.0
    %3701 = vmatprep.subr.mxu0 0.0
    %3702 = vmatpush2.msra.mxu0 0.0
    %3703 = vmatprep.subr.mxu0 0.0
    %3704 = vmatpush2.msra.mxu0 0.0
    %3705 = vmatprep.subr.mxu0 0.0
    %3706 = vmatpush2.msra.mxu0 0.0
    %3707 = vmatprep.subr.mxu0 0.0
    %3708 = vmatpush2.msra.mxu0 0.0
    %3709 = vmatprep.subr.mxu0 0.0
    %3710 = vmatpush2.msra.mxu0 0.0
    %3711 = vmatprep.subr.mxu0 0.0
    %3712 = vmatpush2.msra.mxu0 0.0
    %3713 = vmatprep.subr.mxu0 0.0
    %3714 = vmatpush2.msra.mxu0 0.0
    %3715 = vmatprep.subr.mxu0 0.0
    %3716 = vmatpush2.msra.mxu0 %v1979
    %3717 = vmatprep.subr.mxu0 0.0
    %3718 = vmatpush2.msra.mxu0 %v1978
    %3719 = vmatprep.subr.mxu0 0.0
    %3720 = vmatpush2.msra.mxu0 %v1977
    %3721 = vmatprep.subr.mxu0 0.0
    %3722 = vmatpush2.msra.mxu0 %v1976
    %3723 = vmatprep.mubr.f32.mxu0 %v3587
    %3724 = vmatmul.mubr.f32.gmra.mxu0 %v3584
    %v3725 = vpop.f32.mrf.mxu0
    %v3726 = vadd.f32 0.0, %v3725
    %v3727 = vpop.f32.mrf.mxu0
    %3728 = vdwg.mxu0
    %v3729 = vmax.f32 %v3656, %v3726
    %v3730 = vpack.c.bf16 %v3729, %v3729
    %v3732 = vshrl.u32 %v3730, 16
    %v3735 = vsel %vm2106, %v3732, 0
    %3737 = vmatprep.subr.bf16.mxu0 0
    %3738 = vmatpush1.bf16.msra.mxu0 0
    %3739 = vmatprep.subr.bf16.mxu0 0
    %3740 = vmatpush1.bf16.msra.mxu0 0
    %3741 = vmatprep.subr.bf16.mxu0 0
    %3742 = vmatpush1.bf16.msra.mxu0 0
    %3743 = vmatprep.subr.bf16.mxu0 0
    %3744 = vmatpush1.bf16.msra.mxu0 %v2100
    %3745 = vmatprep.subr.bf16.mxu0 0
    %3746 = vmatpush1.bf16.msra.mxu0 %v2099
    %3747 = vmatprep.subr.bf16.mxu0 0
    %3748 = vmatpush1.bf16.msra.mxu0 %v2098
    %3749 = vmatprep.subr.bf16.mxu0 0
    %3750 = vmatpush1.bf16.msra.mxu0 %v2097
    %3751 = vmatprep.subr.bf16.mxu0 0
    %3752 = vmatpush1.bf16.msra.mxu0 %v2096
    %3753 = vmatprep.subr.bf16.mxu0 0
    %3754 = vmatpush2.bf16.msra.mxu0 0
    %3755 = vmatprep.subr.bf16.mxu0 0
    %3756 = vmatpush2.bf16.msra.mxu0 0
    %3757 = vmatprep.subr.bf16.mxu0 0
    %3758 = vmatpush2.bf16.msra.mxu0 0
    %3759 = vmatprep.subr.bf16.mxu0 0
    %3760 = vmatpush2.bf16.msra.mxu0 0
    %3761 = vmatprep.subr.bf16.mxu0 0
    %3762 = vmatpush2.bf16.msra.mxu0 0
    %3763 = vmatprep.subr.bf16.mxu0 0
    %3764 = vmatpush2.bf16.msra.mxu0 0
    %3765 = vmatprep.subr.bf16.mxu0 0
    %3766 = vmatpush2.bf16.msra.mxu0 0
    %3767 = vmatprep.subr.bf16.mxu0 0
    %3768 = vmatpush2.bf16.msra.mxu0 0
    %3769 = vmatprep.mubr.bf16.mxu0 0
    %3770 = vmatmul.mubr.bf16.gmra.mxu0 %v3735
    %v3771 = vpop.f32.mrf.mxu0
    %v3772 = vadd.f32 0.0, %v3771
    %v3773 = vpop.f32.mrf.mxu0
    %v3774 = vpop.f32.mrf.mxu0
    %v3775 = vpop.f32.mrf.mxu0
    %3776 = vdwg.mxu0
    %v3777 = vsel %vm2106, %v3730, 0
    %3779 = vmatprep.subr.bf16.mxu0 0
    %3780 = vmatpush1.bf16.msra.mxu0 0
    %3781 = vmatprep.subr.bf16.mxu0 0
    %3782 = vmatpush1.bf16.msra.mxu0 0
    %3783 = vmatprep.subr.bf16.mxu0 0
    %3784 = vmatpush1.bf16.msra.mxu0 0
    %3785 = vmatprep.subr.bf16.mxu0 0
    %3786 = vmatpush1.bf16.msra.mxu0 %v2174
    %3787 = vmatprep.subr.bf16.mxu0 0
    %3788 = vmatpush1.bf16.msra.mxu0 %v2173
    %3789 = vmatprep.subr.bf16.mxu0 0
    %3790 = vmatpush1.bf16.msra.mxu0 %v2172
    %3791 = vmatprep.subr.bf16.mxu0 0
    %3792 = vmatpush1.bf16.msra.mxu0 %v2171
    %3793 = vmatprep.subr.bf16.mxu0 0
    %3794 = vmatpush1.bf16.msra.mxu0 %v2170
    %3795 = vmatprep.subr.bf16.mxu0 0
    %3796 = vmatpush2.bf16.msra.mxu0 0
    %3797 = vmatprep.subr.bf16.mxu0 0
    %3798 = vmatpush2.bf16.msra.mxu0 0
    %3799 = vmatprep.subr.bf16.mxu0 0
    %3800 = vmatpush2.bf16.msra.mxu0 0
    %3801 = vmatprep.subr.bf16.mxu0 0
    %3802 = vmatpush2.bf16.msra.mxu0 0
    %3803 = vmatprep.subr.bf16.mxu0 0
    %3804 = vmatpush2.bf16.msra.mxu0 0
    %3805 = vmatprep.subr.bf16.mxu0 0
    %3806 = vmatpush2.bf16.msra.mxu0 0
    %3807 = vmatprep.subr.bf16.mxu0 0
    %3808 = vmatpush2.bf16.msra.mxu0 0
    %3809 = vmatprep.subr.bf16.mxu0 0
    %3810 = vmatpush2.bf16.msra.mxu0 0
    %3811 = vmatprep.mubr.bf16.mxu0 0
    %3812 = vmatmul.mubr.bf16.gmra.mxu0 %v3777
    %v3813 = vpop.f32.mrf.mxu0
    %v3814 = vadd.f32 %v3772, %v3813
    %v3815 = vpop.f32.mrf.mxu0
    %v3816 = vpop.f32.mrf.mxu0
    %v3817 = vpop.f32.mrf.mxu0
    %3818 = vdwg.mxu0
    %v3820 = vrot.slane %v3730, 1
    %v3822 = vsel %vm2106, %v3820, 0
    %3824 = vmatprep.subr.bf16.mxu0 0
    %3825 = vmatpush1.bf16.msra.mxu0 0
    %3826 = vmatprep.subr.bf16.mxu0 0
    %3827 = vmatpush1.bf16.msra.mxu0 0
    %3828 = vmatprep.subr.bf16.mxu0 0
    %3829 = vmatpush1.bf16.msra.mxu0 0
    %3830 = vmatprep.subr.bf16.mxu0 0
    %3831 = vmatpush1.bf16.msra.mxu0 %v2259
    %3832 = vmatprep.subr.bf16.mxu0 0
    %3833 = vmatpush1.bf16.msra.mxu0 %v2258
    %3834 = vmatprep.subr.bf16.mxu0 0
    %3835 = vmatpush1.bf16.msra.mxu0 %v2257
    %3836 = vmatprep.subr.bf16.mxu0 0
    %3837 = vmatpush1.bf16.msra.mxu0 %v2256
    %3838 = vmatprep.subr.bf16.mxu0 0
    %3839 = vmatpush1.bf16.msra.mxu0 %v2255
    %3840 = vmatprep.subr.bf16.mxu0 0
    %3841 = vmatpush2.bf16.msra.mxu0 0
    %3842 = vmatprep.subr.bf16.mxu0 0
    %3843 = vmatpush2.bf16.msra.mxu0 0
    %3844 = vmatprep.subr.bf16.mxu0 0
    %3845 = vmatpush2.bf16.msra.mxu0 0
    %3846 = vmatprep.subr.bf16.mxu0 0
    %3847 = vmatpush2.bf16.msra.mxu0 0
    %3848 = vmatprep.subr.bf16.mxu0 0
    %3849 = vmatpush2.bf16.msra.mxu0 0
    %3850 = vmatprep.subr.bf16.mxu0 0
    %3851 = vmatpush2.bf16.msra.mxu0 0
    %3852 = vmatprep.subr.bf16.mxu0 0
    %3853 = vmatpush2.bf16.msra.mxu0 0
    %3854 = vmatprep.subr.bf16.mxu0 0
    %3855 = vmatpush2.bf16.msra.mxu0 0
    %3856 = vmatprep.mubr.bf16.mxu0 0
    %3857 = vmatmul.mubr.bf16.gmra.mxu0 %v3822
    %v3858 = vpop.f32.mrf.mxu0
    %v3859 = vadd.f32 0.0, %v3858
    %v3860 = vpop.f32.mrf.mxu0
    %v3861 = vpop.f32.mrf.mxu0
    %v3862 = vpop.f32.mrf.mxu0
    %3863 = vdwg.mxu0
    %v3864 = vadd.f32 %v3814, %v3859
    %v3865 = vrot.slane %v3732, 1
    %v3867 = vsel %vm2106, %v3865, 0
    %3869 = vmatprep.subr.bf16.mxu0 0
    %3870 = vmatpush1.bf16.msra.mxu0 0
    %3871 = vmatprep.subr.bf16.mxu0 0
    %3872 = vmatpush1.bf16.msra.mxu0 0
    %3873 = vmatprep.subr.bf16.mxu0 0
    %3874 = vmatpush1.bf16.msra.mxu0 0
    %3875 = vmatprep.subr.bf16.mxu0 0
    %3876 = vmatpush1.bf16.msra.mxu0 %v2345
    %3877 = vmatprep.subr.bf16.mxu0 0
    %3878 = vmatpush1.bf16.msra.mxu0 %v2344
    %3879 = vmatprep.subr.bf16.mxu0 0
    %3880 = vmatpush1.bf16.msra.mxu0 %v2343
    %3881 = vmatprep.subr.bf16.mxu0 0
    %3882 = vmatpush1.bf16.msra.mxu0 %v2342
    %3883 = vmatprep.subr.bf16.mxu0 0
    %3884 = vmatpush1.bf16.msra.mxu0 %v2341
    %3885 = vmatprep.subr.bf16.mxu0 0
    %3886 = vmatpush2.bf16.msra.mxu0 0
    %3887 = vmatprep.subr.bf16.mxu0 0
    %3888 = vmatpush2.bf16.msra.mxu0 0
    %3889 = vmatprep.subr.bf16.mxu0 0
    %3890 = vmatpush2.bf16.msra.mxu0 0
    %3891 = vmatprep.subr.bf16.mxu0 0
    %3892 = vmatpush2.bf16.msra.mxu0 0
    %3893 = vmatprep.subr.bf16.mxu0 0
    %3894 = vmatpush2.bf16.msra.mxu0 0
    %3895 = vmatprep.subr.bf16.mxu0 0
    %3896 = vmatpush2.bf16.msra.mxu0 0
    %3897 = vmatprep.subr.bf16.mxu0 0
    %3898 = vmatpush2.bf16.msra.mxu0 0
    %3899 = vmatprep.subr.bf16.mxu0 0
    %3900 = vmatpush2.bf16.msra.mxu0 0
    %3901 = vmatprep.mubr.bf16.mxu0 0
    %3902 = vmatmul.mubr.bf16.gmra.mxu0 %v3867
    %v3903 = vpop.f32.mrf.mxu0
    %v3904 = vadd.f32 0.0, %v3903
    %v3905 = vpop.f32.mrf.mxu0
    %v3906 = vpop.f32.mrf.mxu0
    %v3907 = vpop.f32.mrf.mxu0
    %3908 = vdwg.mxu0
    %v3909 = vadd.f32 %v3864, %v3904
    %v3910 = vrot.slane %v3730, 2
    %v3912 = vsel %vm2106, %v3910, 0
    %3914 = vmatprep.subr.bf16.mxu0 0
    %3915 = vmatpush1.bf16.msra.mxu0 0
    %3916 = vmatprep.subr.bf16.mxu0 0
    %3917 = vmatpush1.bf16.msra.mxu0 0
    %3918 = vmatprep.subr.bf16.mxu0 0
    %3919 = vmatpush1.bf16.msra.mxu0 0
    %3920 = vmatprep.subr.bf16.mxu0 0
    %3921 = vmatpush1.bf16.msra.mxu0 %v2431
    %3922 = vmatprep.subr.bf16.mxu0 0
    %3923 = vmatpush1.bf16.msra.mxu0 %v2430
    %3924 = vmatprep.subr.bf16.mxu0 0
    %3925 = vmatpush1.bf16.msra.mxu0 %v2429
    %3926 = vmatprep.subr.bf16.mxu0 0
    %3927 = vmatpush1.bf16.msra.mxu0 %v2428
    %3928 = vmatprep.subr.bf16.mxu0 0
    %3929 = vmatpush1.bf16.msra.mxu0 %v2427
    %3930 = vmatprep.subr.bf16.mxu0 0
    %3931 = vmatpush2.bf16.msra.mxu0 0
    %3932 = vmatprep.subr.bf16.mxu0 0
    %3933 = vmatpush2.bf16.msra.mxu0 0
    %3934 = vmatprep.subr.bf16.mxu0 0
    %3935 = vmatpush2.bf16.msra.mxu0 0
    %3936 = vmatprep.subr.bf16.mxu0 0
    %3937 = vmatpush2.bf16.msra.mxu0 0
    %3938 = vmatprep.subr.bf16.mxu0 0
    %3939 = vmatpush2.bf16.msra.mxu0 0
    %3940 = vmatprep.subr.bf16.mxu0 0
    %3941 = vmatpush2.bf16.msra.mxu0 0
    %3942 = vmatprep.subr.bf16.mxu0 0
    %3943 = vmatpush2.bf16.msra.mxu0 0
    %3944 = vmatprep.subr.bf16.mxu0 0
    %3945 = vmatpush2.bf16.msra.mxu0 0
    %3946 = vmatprep.mubr.bf16.mxu0 0
    %3947 = vmatmul.mubr.bf16.gmra.mxu0 %v3912
    %v3948 = vpop.f32.mrf.mxu0
    %v3949 = vadd.f32 0.0, %v3948
    %v3950 = vpop.f32.mrf.mxu0
    %v3951 = vpop.f32.mrf.mxu0
    %v3952 = vpop.f32.mrf.mxu0
    %3953 = vdwg.mxu0
    %v3954 = vadd.f32 %v3909, %v3949
    %v3956 = vrot.slane %v3954, 7
    %vm3958 = vcmask 1040384
    %v3959 = vsel %vm3958, %v2480, %v3956
    %v3960 = vld [vmem:[%s14] sm:$0x1]
    %v3962 = vlaneseq
    %v3963 = vshrl.u32 %v3962, 7
    %v3964 = vsub.s32 0, %v3963
    %v3965 = vrot.slane %v3960, %v3964
    %v3967 = vadd.f32 %v3959, %v3965
    %v3968 = vmax.f32 %v3967, 0.0
    %v3969 = vld [vmem:[%s15] sm:$0xf]
    %v3970 = vld [vmem:[%s15 + $0x4] sm:$0xf]
    %v3971 = vld [vmem:[%s15 + $0x8] sm:$0xf]
    %v3972 = vld [vmem:[%s15 + $0xc] sm:$0xf]
    %v3973 = vld [vmem:[%s15 + $0x10] sm:$0xf]
    %v3974 = vld [vmem:[%s15 + $0x14] sm:$0xf]
    %v3975 = vld [vmem:[%s15 + $0x18] sm:$0xf]
    %v3976 = vld [vmem:[%s15 + $0x1c] sm:$0xf]
    %v3977 = vld [vmem:[%s15 + $0x20] sm:$0xf]
    %v3978 = vld [vmem:[%s15 + $0x24] sm:$0xf]
    %v3979 = vld [vmem:[%s15 + $0x28] sm:$0xf]
    %v3980 = vld [vmem:[%s15 + $0x2c] sm:$0xf]
    %v3981 = vld [vmem:[%s15 + $0x30] sm:$0xf]
    %v3982 = vld [vmem:[%s15 + $0x34] sm:$0xf]
    %v3983 = vld [vmem:[%s15 + $0x38] sm:$0xf]
    %v3984 = vpack.c.bf16 %v3968, %v3968
    %v3985 = vld [vmem:[#allocation14] sm:$0x1]
    %v3987 = vlaneseq
    %v3988 = vshrl.u32 %v3987, 7
    %v3989 = vsub.s32 0, %v3988
    %v3990 = vrot.slane %v3985, %v3989
    %v4007 = vunpack.c.l.b16 %v3969
    %v4008 = vunpack.c.l.b16 %v3970
    %v4009 = vunpack.c.l.b16 %v3971
    %v4010 = vunpack.c.l.b16 %v3972
    %v4011 = vunpack.c.l.b16 %v3973
    %v4012 = vunpack.c.l.b16 %v3974
    %v4013 = vunpack.c.l.b16 %v3975
    %v4014 = vunpack.c.l.b16 %v3976
    %v4015 = vunpack.c.l.b16 %v3977
    %v4016 = vunpack.c.l.b16 %v3978
    %v4017 = vunpack.c.l.b16 %v3979
    %v4018 = vunpack.c.l.b16 %v3980
    %v4019 = vunpack.c.l.b16 %v3981
    %v4020 = vunpack.c.l.b16 %v3982
    %v4021 = vunpack.c.l.b16 %v3983
    %v4022 = vpack.c.b16 %v4008, %v4007
    %v4023 = vpack.c.b16 %v4010, %v4009
    %v4024 = vpack.c.b16 %v4012, %v4011
    %v4025 = vpack.c.b16 %v4014, %v4013
    %v4026 = vpack.c.b16 %v4016, %v4015
    %v4027 = vpack.c.b16 %v4018, %v4017
    %v4028 = vpack.c.b16 %v4020, %v4019
    %v4029 = vpack.c.b16 %v4021, %v4021
    %vm4037 = vcmask 982016
    %v4039 = vsel %vm4037, %v3984, 0
    %v4042 = vsel %vm693, %v4029, 0
    %4044 = vmatprep.subr.bf16.mxu0 0
    %4045 = vmatpush1.bf16.msra.mxu0 %v4042
    %4046 = vmatprep.subr.bf16.mxu0 0
    %4047 = vmatpush1.bf16.msra.mxu0 %v4028
    %4048 = vmatprep.subr.bf16.mxu0 0
    %4049 = vmatpush1.bf16.msra.mxu0 %v4027
    %4050 = vmatprep.subr.bf16.mxu0 0
    %4051 = vmatpush1.bf16.msra.mxu0 %v4026
    %4052 = vmatprep.subr.bf16.mxu0 0
    %4053 = vmatpush1.bf16.msra.mxu0 %v4025
    %4054 = vmatprep.subr.bf16.mxu0 0
    %4055 = vmatpush1.bf16.msra.mxu0 %v4024
    %4056 = vmatprep.subr.bf16.mxu0 0
    %4057 = vmatpush1.bf16.msra.mxu0 %v4023
    %4058 = vmatprep.subr.bf16.mxu0 0
    %4059 = vmatpush1.bf16.msra.mxu0 %v4022
    %4060 = vmatprep.subr.bf16.mxu0 0
    %4061 = vmatpush2.bf16.msra.mxu0 0
    %4062 = vmatprep.subr.bf16.mxu0 0
    %4063 = vmatpush2.bf16.msra.mxu0 0
    %4064 = vmatprep.subr.bf16.mxu0 0
    %4065 = vmatpush2.bf16.msra.mxu0 0
    %4066 = vmatprep.subr.bf16.mxu0 0
    %4067 = vmatpush2.bf16.msra.mxu0 0
    %4068 = vmatprep.subr.bf16.mxu0 0
    %4069 = vmatpush2.bf16.msra.mxu0 0
    %4070 = vmatprep.subr.bf16.mxu0 0
    %4071 = vmatpush2.bf16.msra.mxu0 0
    %4072 = vmatprep.subr.bf16.mxu0 0
    %4073 = vmatpush2.bf16.msra.mxu0 0
    %4074 = vmatprep.subr.bf16.mxu0 0
    %4075 = vmatpush2.bf16.msra.mxu0 0
    %4076 = vmatprep.mubr.bf16.mxu0 0
    %4077 = vmatmul.mubr.bf16.gmra.mxu0 %v4039
    %v4078 = vpop.f32.mrf.mxu0
    %v4079 = vadd.f32 %v3990, %v4078
    %v4080 = vpop.f32.mrf.mxu0
    %v4081 = vpop.f32.mrf.mxu0
    %v4082 = vpop.f32.mrf.mxu0
    %4083 = vdwg.mxu0
    %v4084 = vmax.f32 %v4079, 0.0
    %v4085 = vld [vmem:[%s17] sm:$0xf]
    %v4086 = vld [vmem:[%s17 + $0x4] sm:$0xf]
    %v4087 = vld [vmem:[%s17 + $0x8] sm:$0xf]
    %v4088 = vld [vmem:[%s17 + $0xc] sm:$0xf]
    %v4089 = vld [vmem:[%s17 + $0x10] sm:$0xf]
    %v4090 = vld [vmem:[%s17 + $0x14] sm:$0xf]
    %v4091 = vld [vmem:[%s17 + $0x18] sm:$0xf]
    %v4092 = vld [vmem:[%s17 + $0x1c] sm:$0xf]
    %v4093 = vld [vmem:[%s17 + $0x20] sm:$0xf]
    %v4094 = vld [vmem:[%s17 + $0x24] sm:$0xf]
    %v4095 = vld [vmem:[%s17 + $0x28] sm:$0x3]
    %v4096 = vpack.c.bf16 %v4084, %v4084
    %v4097 = vld [vmem:[#allocation16] sm:$0x1]
    %v4099 = vlaneseq
    %v4100 = vshrl.u32 %v4099, 7
    %v4101 = vsub.s32 0, %v4100
    %v4102 = vrot.slane %v4097, %v4101
    %v4115 = vunpack.c.l.b16 %v4085
    %v4116 = vunpack.c.l.b16 %v4086
    %v4117 = vunpack.c.l.b16 %v4087
    %v4118 = vunpack.c.l.b16 %v4088
    %v4119 = vunpack.c.l.b16 %v4089
    %v4120 = vunpack.c.l.b16 %v4090
    %v4121 = vunpack.c.l.b16 %v4091
    %v4122 = vunpack.c.l.b16 %v4092
    %v4123 = vunpack.c.l.b16 %v4093
    %v4124 = vunpack.c.l.b16 %v4094
    %v4125 = vunpack.c.l.b16 %v4095
    %v4126 = vpack.c.b16 %v4116, %v4115
    %v4127 = vpack.c.b16 %v4118, %v4117
    %v4128 = vpack.c.b16 %v4120, %v4119
    %v4129 = vpack.c.b16 %v4122, %v4121
    %v4130 = vpack.c.b16 %v4124, %v4123
    %v4131 = vpack.c.b16 %v4125, %v4125
    %v4138 = vsel %vm1153, %v4096, 0
    %v4141 = vsel %vm1157, %v4131, 0
    %4143 = vmatprep.subr.bf16.mxu0 0
    %4144 = vmatpush1.bf16.msra.mxu0 0
    %4145 = vmatprep.subr.bf16.mxu0 0
    %4146 = vmatpush1.bf16.msra.mxu0 0
    %4147 = vmatprep.subr.bf16.mxu0 0
    %4148 = vmatpush1.bf16.msra.mxu0 %v4141
    %4149 = vmatprep.subr.bf16.mxu0 0
    %4150 = vmatpush1.bf16.msra.mxu0 %v4130
    %4151 = vmatprep.subr.bf16.mxu0 0
    %4152 = vmatpush1.bf16.msra.mxu0 %v4129
    %4153 = vmatprep.subr.bf16.mxu0 0
    %4154 = vmatpush1.bf16.msra.mxu0 %v4128
    %4155 = vmatprep.subr.bf16.mxu0 0
    %4156 = vmatpush1.bf16.msra.mxu0 %v4127
    %4157 = vmatprep.subr.bf16.mxu0 0
    %4158 = vmatpush1.bf16.msra.mxu0 %v4126
    %4159 = vmatprep.subr.bf16.mxu0 0
    %4160 = vmatpush2.bf16.msra.mxu0 0
    %4161 = vmatprep.subr.bf16.mxu0 0
    %4162 = vmatpush2.bf16.msra.mxu0 0
    %4163 = vmatprep.subr.bf16.mxu0 0
    %4164 = vmatpush2.bf16.msra.mxu0 0
    %4165 = vmatprep.subr.bf16.mxu0 0
    %4166 = vmatpush2.bf16.msra.mxu0 0
    %4167 = vmatprep.subr.bf16.mxu0 0
    %4168 = vmatpush2.bf16.msra.mxu0 0
    %4169 = vmatprep.subr.bf16.mxu0 0
    %4170 = vmatpush2.bf16.msra.mxu0 0
    %4171 = vmatprep.subr.bf16.mxu0 0
    %4172 = vmatpush2.bf16.msra.mxu0 0
    %4173 = vmatprep.subr.bf16.mxu0 0
    %4174 = vmatpush2.bf16.msra.mxu0 0
    %4175 = vmatprep.mubr.bf16.mxu0 0
    %4176 = vmatmul.mubr.bf16.gmra.mxu0 %v4138
    %v4177 = vpop.f32.mrf.mxu0
    %v4178 = vadd.f32 %v4102, %v4177
    %v4179 = vpop.f32.mrf.mxu0
    %v4180 = vpop.f32.mrf.mxu0
    %v4181 = vpop.f32.mrf.mxu0
    %4182 = vdwg.mxu0
    %4183 = vst [vmem:[#allocation17] sm:$0x3] %v4178
    // Predicated region
    $region114: #{_lenet_forward.1} parent=1 // pred_check
      _
    $region115: #{_lenet_forward.1} parent=1 // pred_check_branch
      %4185 = sbr.rel (0) target = $region117
    $region116: #{_lenet_forward.1} parent=1 // pred_region
      %s4187 = ssub.s32 32, 32
      %4188 = vsyncadd [#allocation4], %s4187
      %s4190 = sshll.u32 [#allocation17], 4
      %s4191 = int_to_ptr.vmem [resolvable:$true] %s4190
      %4193 = dma.vmem_to_hbm [thread:$0]  %s4191, 32, %s19, [#allocation4]
    $region117: #{_lenet_forward.1} parent=1 // pred_fallthru
      _
    // Predicated region
    $region118: #{_lenet_forward.1} parent=1 // pred_check
      _
    $region119: #{_lenet_forward.1} parent=1 // pred_check_branch
      %4195 = sbr.rel (0) target = $region121
    $region120: #{_lenet_forward.1} parent=1 // pred_region
      %4196 = dma.done [#allocation4], 32
    $region121: #{_lenet_forward.1} parent=1 // pred_fallthru
      _
    %4197 = vsyncpa [#allocation3], 1
    %4198 = vsyncpa [#allocation6], 1
    %4199 = vsyncpa [#allocation9], 1
    %4200 = vsyncpa [#allocation12], 1
    %4201 = vsyncpa [#allocation15], 1
    %4202 = vsyncpa [#allocation4], 1

</llo_original>
